<compile_context>
chip_gen: v6e
topology: v6e:2x2x1
jax: 0.10.0
libtpu: 0.0.40
codegen_flags: <defaults>
</compile_context>

<pallas_src>
import functools
import math

import jax
import jax.numpy as jnp
from jax import lax
from jax.experimental import pallas as pl
from jax.experimental.pallas import tpu as pltpu

EPS = 1e-6
NEG_INF = -1e30               # finite mask value: no NaN risk
VMEM_LIMIT = 64 * 1024 * 1024


def _pick_tile(dim, pref):
    """Largest tile <= pref that evenly divides dim (falls back to full dim)."""
    if dim <= pref:
        return dim
    for t in (pref, 1024, 512, 384, 256, 128, 64, 32, 16, 8):
        if t <= pref and dim % t == 0:
            return t
    return dim


# ------------- fused RMSNorm (+folded reorder) + int8-dequant projection ----------
def _norm_matmul_kernel(x_ref, lnw_ref, w_ref, s_ref, o_ref, xn_sc):
    # RMSNorm computed once per row tile (j == 0) and cached in VMEM for all j tiles.
    @pl.when(pl.program_id(1) == 0)
    def _():
        x = x_ref[...]                                   # (tm, K) f32
        var = jnp.mean(x * x, axis=-1, keepdims=True)
        xn_sc[...] = (x * lax.rsqrt(var + EPS) * lnw_ref[...]).astype(jnp.bfloat16)
    y = jnp.dot(xn_sc[...], w_ref[...].astype(jnp.bfloat16),
                preferred_element_type=jnp.float32) * s_ref[...]
    o_ref[...] = y.astype(o_ref.dtype)


def norm_matmul(x, ln_w, w_i8, w_scale):
    # y = (rmsnorm(x; ln_w) @ dequant(w_i8, w_scale)); reorder/transpose folded offline.
    T, K = x.shape
    N = w_i8.shape[1]
    tm = _pick_tile(T, 256)
    tn = _pick_tile(N, 512)
    grid = (T // tm, N // tn)
    return pl.pallas_call(
        _norm_matmul_kernel,
        grid=grid,
        in_specs=[pl.BlockSpec((tm, K), lambda i, j: (i, 0)),
                  pl.BlockSpec((1, K), lambda i, j: (0, 0)),
                  pl.BlockSpec((K, tn), lambda i, j: (0, j)),
                  pl.BlockSpec((1, tn), lambda i, j: (0, j))],
        out_specs=pl.BlockSpec((tm, tn), lambda i, j: (i, j)),
        out_shape=jax.ShapeDtypeStruct((T, N), jnp.bfloat16),
        scratch_shapes=[pltpu.VMEM((tm, K), jnp.bfloat16)],
        compiler_params=pltpu.CompilerParams(
            dimension_semantics=("parallel", "arbitrary"),
            vmem_limit_bytes=VMEM_LIMIT),
    )(x, ln_w, w_i8, w_scale)


# -------- fused RMSNorm (+folded reorder) + gate/up (int8) + silu*up --------------
def _norm_gateup_kernel(x_ref, lnw_ref, wg_ref, sg_ref, wu_ref, su_ref, h_ref, xn_sc):
    @pl.when(pl.program_id(1) == 0)
    def _():
        x = x_ref[...]
        var = jnp.mean(x * x, axis=-1, keepdims=True)
        xn_sc[...] = (x * lax.rsqrt(var + EPS) * lnw_ref[...]).astype(jnp.bfloat16)
    xn = xn_sc[...]
    g = jnp.dot(xn, wg_ref[...].astype(jnp.bfloat16),
                preferred_element_type=jnp.float32) * sg_ref[...]
    u = jnp.dot(xn, wu_ref[...].astype(jnp.bfloat16),
                preferred_element_type=jnp.float32) * su_ref[...]
    # activate_fp16_i4 == silu(gate) * up
    h_ref[...] = (g * jax.nn.sigmoid(g) * u).astype(jnp.bfloat16)


def norm_gateup(x, ln_w, wg_i8, wg_s, wu_i8, wu_s):
    T, K = x.shape
    N = wg_i8.shape[1]
    tm = _pick_tile(T, 256)
    tn = _pick_tile(N, 512)
    grid = (T // tm, N // tn)
    return pl.pallas_call(
        _norm_gateup_kernel,
        grid=grid,
        in_specs=[pl.BlockSpec((tm, K), lambda i, j: (i, 0)),
                  pl.BlockSpec((1, K), lambda i, j: (0, 0)),
                  pl.BlockSpec((K, tn), lambda i, j: (0, j)),
                  pl.BlockSpec((1, tn), lambda i, j: (0, j)),
                  pl.BlockSpec((K, tn), lambda i, j: (0, j)),
                  pl.BlockSpec((1, tn), lambda i, j: (0, j))],
        out_specs=pl.BlockSpec((tm, tn), lambda i, j: (i, j)),
        out_shape=jax.ShapeDtypeStruct((T, N), jnp.bfloat16),
        scratch_shapes=[pltpu.VMEM((tm, K), jnp.bfloat16)],
        compiler_params=pltpu.CompilerParams(
            dimension_semantics=("parallel", "arbitrary"),
            vmem_limit_bytes=VMEM_LIMIT),
    )(x, ln_w, wg_i8, wg_s, wu_i8, wu_s)


# ---------------- tiled int8-dequant matmul + residual (o_proj / down_proj) -------
def _matmul_residual_kernel(x_ref, w_ref, s_ref, r_ref, o_ref, acc_ref):
    k = pl.program_id(2)

    @pl.when(k == 0)
    def _():
        acc_ref[...] = jnp.zeros_like(acc_ref)

    acc_ref[...] += jnp.dot(x_ref[...], w_ref[...].astype(jnp.bfloat16),
                            preferred_element_type=jnp.float32)

    @pl.when(k == pl.num_programs(2) - 1)
    def _():
        o_ref[...] = (acc_ref[...] * s_ref[...] + r_ref[...]).astype(o_ref.dtype)


def matmul_residual(x, w_i8, w_scale, residual):
    # y = residual + (x @ dequant(w_i8, w_scale));  x is bf16, residual f32.
    T, K = x.shape
    N = w_i8.shape[1]
    tm = _pick_tile(T, 256)
    tn = _pick_tile(N, 512)
    tk = _pick_tile(K, 1024)
    grid = (T // tm, N // tn, K // tk)
    return pl.pallas_call(
        _matmul_residual_kernel,
        grid=grid,
        in_specs=[pl.BlockSpec((tm, tk), lambda i, j, k: (i, k)),
                  pl.BlockSpec((tk, tn), lambda i, j, k: (k, j)),
                  pl.BlockSpec((1, tn), lambda i, j, k: (0, j)),
                  pl.BlockSpec((tm, tn), lambda i, j, k: (i, j))],
        out_specs=pl.BlockSpec((tm, tn), lambda i, j, k: (i, j)),
        out_shape=jax.ShapeDtypeStruct((T, N), jnp.float32),
        scratch_shapes=[pltpu.VMEM((tm, tn), jnp.float32)],
        compiler_params=pltpu.CompilerParams(
            dimension_semantics=("parallel", "parallel", "arbitrary"),
            vmem_limit_bytes=VMEM_LIMIT),
    )(x, w_i8, w_scale, residual)


# ------------------------- RoPE pre-rotation for K (once) -------------------------
def _rope_kernel(x_ref, cos_ref, sins_ref, o_ref):
    x = x_ref[...].astype(jnp.float32)                   # (tr, hd)
    hd = x.shape[-1]
    # rotate_half via XLU roll; the +/- sign is pre-folded into sins.
    o_ref[...] = (x * cos_ref[...] +
                  pltpu.roll(x, hd // 2, 1) * sins_ref[...]).astype(o_ref.dtype)


def rope_rotate(x, cos, sin_signed, num_heads):
    T, H = x.shape
    hd = H // num_heads
    tr = _pick_tile(T, 256)
    grid = (num_heads, T // tr)
    return pl.pallas_call(
        _rope_kernel,
        grid=grid,
        in_specs=[pl.BlockSpec((tr, hd), lambda h, i: (i, h)),
                  pl.BlockSpec((tr, hd), lambda h, i: (i, 0)),
                  pl.BlockSpec((tr, hd), lambda h, i: (i, 0))],
        out_specs=pl.BlockSpec((tr, hd), lambda h, i: (i, h)),
        out_shape=jax.ShapeDtypeStruct((T, H), jnp.bfloat16),
        compiler_params=pltpu.CompilerParams(
            dimension_semantics=("parallel", "parallel")),
    )(x, cos, sin_signed)


# -------------- flash attention, causal, head-gridded, q-RoPE in-kernel -----------
def _flash_kernel(q_ref, k_ref, v_ref, cos_ref, sins_ref, o_ref,
                  m_sc, l_sc, acc_sc, qrot_sc, *, scale):
    qi = pl.program_id(1)
    ki = pl.program_id(2)
    tq = q_ref.shape[0]
    tk = k_ref.shape[0]
    hd = q_ref.shape[1]

    @pl.when(ki == 0)
    def _init():
        m_sc[...] = jnp.full(m_sc.shape, -jnp.inf, jnp.float32)
        l_sc[...] = jnp.zeros(l_sc.shape, jnp.float32)
        acc_sc[...] = jnp.zeros(acc_sc.shape, jnp.float32)
        q = q_ref[...].astype(jnp.float32)               # (tq, hd)
        qr = (q * cos_ref[...] + pltpu.roll(q, hd // 2, 1) * sins_ref[...]) * scale
        qrot_sc[...] = qr.astype(jnp.bfloat16)           # rotated+scaled once per tile

    # tq == tk  =>  kv tiles with ki > qi are entirely in the causal future
    # (their DMA is also avoided by the clamped index_map in the wrapper).
    @pl.when(ki <= qi)
    def _compute():
        s = lax.dot_general(qrot_sc[...], k_ref[...],
                            (((1,), (1,)), ((), ())),
                            preferred_element_type=jnp.float32)    # (tq, tk)
        row = qi * tq + lax.broadcasted_iota(jnp.int32, s.shape, 0)
        col = ki * tk + lax.broadcasted_iota(jnp.int32, s.shape, 1)
        s = jnp.where(row >= col, s, NEG_INF)                      # is_causal=True
        m_prev = m_sc[...]
        m_new = jnp.maximum(m_prev, jnp.max(s, axis=-1, keepdims=True))
        alpha = jnp.exp(m_prev - m_new)
        p = jnp.exp(s - m_new)
        l_sc[...] = alpha * l_sc[...] + jnp.sum(p, axis=-1, keepdims=True)
        acc_sc[...] = alpha * acc_sc[...] + jnp.dot(
            p.astype(jnp.bfloat16), v_ref[...], preferred_element_type=jnp.float32)
        m_sc[...] = m_new

    @pl.when(ki == pl.num_programs(2) - 1)
    def _finalize():
        o_ref[...] = (acc_sc[...] *
                      pl.reciprocal(l_sc[...], approx=True)).astype(o_ref.dtype)


def flash_attention(q, k_rot, v, cos, sin_signed, scale, num_heads):
    # q: (T, H) bf16 (un-rotated); k_rot/v: (T, H) bf16 (k pre-rotated); out (T, H) bf16.
    T, H = q.shape
    hd = H // num_heads
    tq = _pick_tile(T, 256)
    tk = tq                                              # causal clamp assumes tq == tk
    grid = (num_heads, T // tq, T // tk)

    q_map = lambda h, qi, ki: (qi, h)
    # clamp to the causal range: fully-future kv tiles reuse the resident block (no DMA)
    kv_map = lambda h, qi, ki: (jnp.minimum(ki, qi), h)
    cs_map = lambda h, qi, ki: (qi, 0)

    return pl.pallas_call(
        functools.partial(_flash_kernel, scale=scale),
        grid=grid,
        in_specs=[pl.BlockSpec((tq, hd), q_map),
                  pl.BlockSpec((tk, hd), kv_map),
                  pl.BlockSpec((tk, hd), kv_map),
                  pl.BlockSpec((tq, hd), cs_map),
                  pl.BlockSpec((tq, hd), cs_map)],
        out_specs=pl.BlockSpec((tq, hd), q_map),
        out_shape=jax.ShapeDtypeStruct((T, H), jnp.bfloat16),
        scratch_shapes=[pltpu.VMEM((tq, 1), jnp.float32),      # m
                        pltpu.VMEM((tq, 1), jnp.float32),      # l
                        pltpu.VMEM((tq, hd), jnp.float32),     # acc
                        pltpu.VMEM((tq, hd), jnp.bfloat16)],   # rotated, scaled q
        compiler_params=pltpu.CompilerParams(
            dimension_semantics=("parallel", "parallel", "arbitrary"),
            vmem_limit_bytes=VMEM_LIMIT),
    )(q, k_rot, v, cos, sin_signed)


# ---------------------------------- glue ------------------------------------------
def rope_cos_sin(seqlen, dim, beg=0, base=10000.0):
    inv_freq = 1.0 / (base ** (jnp.arange(0, dim, 2, dtype=jnp.float32) / dim))
    t = jnp.arange(beg, beg + seqlen, dtype=jnp.float32)
    freqs = jnp.einsum("i,j->ij", t, inv_freq)
    emb = jnp.concatenate([freqs, freqs], axis=-1)       # (L, dim)
    # fold rotate_half's +/- sign into sin so kernels only need roll * sin_signed
    sign = jnp.concatenate([-jnp.ones((dim // 2,), jnp.float32),
                            jnp.ones((dim // 2,), jnp.float32)])
    return jnp.cos(emb), jnp.sin(emb) * sign[None, :]


def _quantize_per_col(w_t):
    # symmetric per-output-channel int8 (stand-in for the reference's int4/int8 groups)
    amax = jnp.max(jnp.abs(w_t), axis=0, keepdims=True)
    scale = jnp.maximum(amax, 1e-8) / 127.0
    q = jnp.clip(jnp.round(w_t / scale), -127, 127).astype(jnp.int8)
    return q, scale.astype(jnp.float32)


def prepare_params(params):
    """One-time weight prep: fold channel-reorder permutations into the input dim,
    transpose to (in, out), quantize to int8 + per-out-channel scale.  Weights stay
    narrow in HBM and are dequantized in-kernel after the DMA."""
    inv_in = jnp.argsort(params["input_ln_reorder"])
    inv_attn = jnp.argsort(params["attn_reorder"])
    inv_post = jnp.argsort(params["post_ln_reorder"])
    wq_i8, wq_s = _quantize_per_col(params["wq"][:, inv_in].T)
    wo_i8, wo_s = _quantize_per_col(params["wo"][:, inv_attn].T)
    wg_i8, wg_s = _quantize_per_col(params["wg"][:, inv_post].T)
    wu_i8, wu_s = _quantize_per_col(params["wu"][:, inv_post].T)
    wd_i8, wd_s = _quantize_per_col(params["wd"].T)
    H = params["input_ln_w"].shape[0]
    return {
        "input_ln_w": params["input_ln_w"].astype(jnp.float32).reshape(1, H),
        "post_ln_w": params["post_ln_w"].astype(jnp.float32).reshape(1, H),
        "wq_i8": wq_i8, "wq_s": wq_s,
        "wo_i8": wo_i8, "wo_s": wo_s,
        "wg_i8": wg_i8, "wg_s": wg_s,
        "wu_i8": wu_i8, "wu_s": wu_s,
        "wd_i8": wd_i8, "wd_s": wd_s,
    }


def llama_decoder_layer(hidden_states, prep, rand_key, *, num_heads):
    T, H = hidden_states.shape
    hd = H // num_heads

    # pad the sequence to a tile-friendly multiple; trailing padded key positions are
    # hidden from real queries by the causal mask, padded output rows are sliced off.
    row_mult = 128 if T >= 128 else 8
    Tp = ((T + row_mult - 1) // row_mult) * row_mult
    x = jnp.pad(hidden_states, ((0, Tp - T), (0, 0))) if Tp != T else hidden_states

    # ---- input rmsnorm (+ folded reorder) fused with q_proj (int8 weights) ----
    residual = x
    q = norm_matmul(x, prep["input_ln_w"], prep["wq_i8"], prep["wq_s"])   # (Tp,H) bf16
    # TODO(synk): k_proj / v_proj only feed punica's int4 KV-cache ops
    # (init_kv_i4 / append_kv_i4 / batch_decode_i4), which have no Pallas equivalent;
    # the reference prefill SDPA uses randn_like K/V, reproduced here, so those two
    # GEMMs are dead for this path and are skipped.
    kkey, vkey = jax.random.split(rand_key)
    k = jax.random.normal(kkey, (Tp, H), jnp.float32)
    v = jax.random.normal(vkey, (Tp, H), jnp.float32).astype(jnp.bfloat16)

    cos, sin_signed = rope_cos_sin(Tp, hd, beg=0)
    k_rot = rope_rotate(k, cos, sin_signed, num_heads)        # pre-rotate K once, bf16

    attn = flash_attention(q, k_rot, v, cos, sin_signed,
                           1.0 / math.sqrt(hd), num_heads)    # (Tp,H) bf16, no transposes

    # ---- reorder (folded into wo) + o_proj + residual ----
    h1 = matmul_residual(attn, prep["wo_i8"], prep["wo_s"], residual)     # f32

    # ---- post rmsnorm (+ folded reorder) + gate/up + silu*up, then down + residual ---
    residual = h1
    h = norm_gateup(h1, prep["post_ln_w"], prep["wg_i8"], prep["wg_s"],
                    prep["wu_i8"], prep["wu_s"])                          # bf16
    out = matmul_residual(h, prep["wd_i8"], prep["wd_s"], residual)       # f32
    return out[:T] if Tp != T else out


# ---------------------------------- main ------------------------------------------
if __name__ == "__main__":
    # small synthetic config (prefill-only: blen.prefills = [8], decode = 0)
    T = 8             # prefill tokens
    NH = 4            # num_attention_heads
    HD = 128          # head_dim (lane-aligned, as in real Llama)
    H = NH * HD       # hidden_size = 512
    I = 1024          # intermediate_size

    key = jax.random.PRNGKey(0)
    ks = jax.random.split(key, 16)

    def w(k_, shape, scale=0.05):
        return jax.random.normal(k_, shape, jnp.float32) * scale

    params = {
        "input_ln_w": jnp.ones((H,), jnp.float32),
        "input_ln_reorder": jax.random.permutation(ks[0], H).astype(jnp.int32),
        "post_ln_w": jnp.ones((H,), jnp.float32),
        "post_ln_reorder": jax.random.permutation(ks[1], H).astype(jnp.int32),
        "attn_reorder": jax.random.permutation(ks[2], H).astype(jnp.int32),
        "wq": w(ks[3], (H, H)),
        "wk": w(ks[4], (H, H)),   # unused: only feeds the untranslated kv-cache ops
        "wv": w(ks[5], (H, H)),   # unused: only feeds the untranslated kv-cache ops
        "wo": w(ks[6], (H, H)),
        "wg": w(ks[7], (I, H)),
        "wu": w(ks[8], (I, H)),
        "wd": w(ks[9], (H, I)),
    }
    prep = prepare_params(params)

    hidden_states = jax.random.normal(ks[10], (T, H), jnp.float32)
    rand_key = ks[11]

    layer = jax.jit(functools.partial(llama_decoder_layer, num_heads=NH))
    out = jax.block_until_ready(layer(hidden_states, prep, rand_key))

    assert out.shape == (T, H) and out.dtype == jnp.float32
    assert bool(jnp.all(jnp.isfinite(out)))
    print("KERNEL_OK")
</pallas_src>

<mosaic_0001>
module attributes {stable_mosaic.version = 11 : i64} {
  func.func @_norm_matmul_kernel(%arg0: i32, %arg1: i32, %arg2: memref<8x512xf32, #tpu.memory_space<vmem>>, %arg3: memref<1x512xf32, #tpu.memory_space<vmem>>, %arg4: memref<512x512xi8, #tpu.memory_space<vmem>>, %arg5: memref<1x512xf32, #tpu.memory_space<vmem>>, %arg6: memref<8x512xbf16, #tpu.memory_space<vmem>>, %arg7: memref<8x512xbf16, #tpu.memory_space<vmem>>) attributes {dimension_semantics = [#tpu.dimension_semantics<parallel>, #tpu.dimension_semantics<arbitrary>], iteration_bounds = array<i64: 1, 1>, scalar_prefetch = 0 : i64, scratch_operands = 1 : i64, tpu.core_type = #tpu.core_type<tc>, window_params = [{transform_indices = @transform_0, window_bounds = array<i64: 8, 512>}, {pipeline_mode = #tpu.pipeline_mode<synchronous>, transform_indices = @transform_1, window_bounds = array<i64: 1, 512>}, {transform_indices = @transform_2, window_bounds = array<i64: 512, 512>}, {transform_indices = @transform_3, window_bounds = array<i64: 1, 512>}, {transform_indices = @transform_4, window_bounds = array<i64: 8, 512>}]} {
    %c0_i32 = arith.constant 0 : i32
    %0 = arith.cmpi eq, %arg1, %c0_i32 : i32
    %1 = arith.extui %0 : i1 to i32
    %c0_i32_0 = arith.constant 0 : i32
    %2 = arith.cmpi ne, %1, %c0_i32_0 : i32
    scf.if %2 {
      %c0_8 = arith.constant 0 : index
      %c0_9 = arith.constant 0 : index
      %12 = vector.load %arg2[%c0_8, %c0_9] : memref<8x512xf32, #tpu.memory_space<vmem>>, vector<8x512xf32>
      %13 = arith.mulf %12, %12 : vector<8x512xf32>
      %cst_10 = arith.constant dense<0.000000e+00> : vector<8xf32>
      %14 = vector.multi_reduction <add>, %13, %cst_10 [1] : vector<8x512xf32> to vector<8xf32>
      %15 = vector.shape_cast %14 : vector<8xf32> to vector<8x1xf32>
      %cst_11 = arith.constant 5.120000e+02 : f32
      %16 = vector.broadcast %cst_11 : f32 to vector<8x1xf32>
      %17 = arith.divf %15, %16 : vector<8x1xf32>
      %cst_12 = arith.constant 9.99999997E-7 : f32
      %18 = vector.broadcast %cst_12 : f32 to vector<8x1xf32>
      %19 = arith.addf %17, %18 : vector<8x1xf32>
      %20 = math.rsqrt %19 : vector<8x1xf32>
      %21 = vector.broadcast %20 : vector<8x1xf32> to vector<8x512xf32>
      %22 = arith.mulf %12, %21 : vector<8x512xf32>
      %c0_13 = arith.constant 0 : index
      %c0_14 = arith.constant 0 : index
      %23 = vector.load %arg3[%c0_13, %c0_14] : memref<1x512xf32, #tpu.memory_space<vmem>>, vector<1x512xf32>
      %24 = vector.broadcast %23 : vector<1x512xf32> to vector<8x512xf32>
      %25 = arith.mulf %22, %24 : vector<8x512xf32>
      %26 = arith.truncf %25 : vector<8x512xf32> to vector<8x512xbf16>
      %c0_15 = arith.constant 0 : index
      %c0_16 = arith.constant 0 : index
      %27 = vector.load %arg7[%c0_15, %c0_16] : memref<8x512xbf16, #tpu.memory_space<vmem>>, vector<8x512xbf16>
      tpu.vector_store %arg7[%c0_15, %c0_16], %26 {strides = array<i32>} : memref<8x512xbf16, #tpu.memory_space<vmem>>, vector<8x512xbf16>,
    } else {
    }
    %c0 = arith.constant 0 : index
    %c0_1 = arith.constant 0 : index
    %3 = vector.load %arg7[%c0, %c0_1] : memref<8x512xbf16, #tpu.memory_space<vmem>>, vector<8x512xbf16>
    %c0_2 = arith.constant 0 : index
    %c0_3 = arith.constant 0 : index
    %4 = vector.load %arg4[%c0_2, %c0_3] : memref<512x512xi8, #tpu.memory_space<vmem>>, vector<512x512xi8>
    %5 = arith.sitofp %4 : vector<512x512xi8> to vector<512x512xbf16>
    %cst = arith.constant dense<0.000000e+00> : vector<8x512xf32>
    %6 = tpu.matmul %3, %5, %cst {dimension_numbers = #tpu.dot_dimension_numbers<[1], [0], [0], [1], [0, 0, 1, 1], [], []>} : vector<8x512xbf16>, vector<512x512xbf16>, vector<8x512xf32> -> vector<8x512xf32>
    %c0_4 = arith.constant 0 : index
    %c0_5 = arith.constant 0 : index
    %7 = vector.load %arg5[%c0_4, %c0_5] : memref<1x512xf32, #tpu.memory_space<vmem>>, vector<1x512xf32>
    %8 = vector.broadcast %7 : vector<1x512xf32> to vector<8x512xf32>
    %9 = arith.mulf %6, %8 : vector<8x512xf32>
    %10 = arith.truncf %9 : vector<8x512xf32> to vector<8x512xbf16>
    %c0_6 = arith.constant 0 : index
    %c0_7 = arith.constant 0 : index
    %11 = vector.load %arg6[%c0_6, %c0_7] : memref<8x512xbf16, #tpu.memory_space<vmem>>, vector<8x512xbf16>
    tpu.vector_store %arg6[%c0_6, %c0_7], %10 {strides = array<i32>} : memref<8x512xbf16, #tpu.memory_space<vmem>>, vector<8x512xbf16>,
    return
  }
  func.func @transform_0(%arg0: i32, %arg1: i32) -> (i32, i32) {
    %c0_i32 = arith.constant 0 : i32
    %c0_i32_0 = arith.constant 0 : i32
    return %arg0, %c0_i32 : i32, i32
  }
  func.func @transform_1(%arg0: i32, %arg1: i32) -> (i32, i32) {
    %c0_i32 = arith.constant 0 : i32
    %c0_i32_0 = arith.constant 0 : i32
    %c0_i32_1 = arith.constant 0 : i32
    return %c0_i32, %c0_i32_0 : i32, i32
  }
  func.func @transform_2(%arg0: i32, %arg1: i32) -> (i32, i32) {
    %c0_i32 = arith.constant 0 : i32
    %c0_i32_0 = arith.constant 0 : i32
    return %c0_i32, %arg1 : i32, i32
  }
  func.func @transform_3(%arg0: i32, %arg1: i32) -> (i32, i32) {
    %c0_i32 = arith.constant 0 : i32
    %c0_i32_0 = arith.constant 0 : i32
    return %c0_i32, %arg1 : i32, i32
  }
  func.func @transform_4(%arg0: i32, %arg1: i32) -> (i32, i32) {
    %c0_i32 = arith.constant 0 : i32
    return %arg0, %arg1 : i32, i32
  }
}

module attributes {stable_mosaic.version = 11 : i64} {
  func.func @_rope_kernel(%arg0: i32, %arg1: i32, %arg2: memref<8x128xf32, #tpu.memory_space<vmem>>, %arg3: memref<8x128xf32, #tpu.memory_space<vmem>>, %arg4: memref<8x128xf32, #tpu.memory_space<vmem>>, %arg5: memref<8x128xbf16, #tpu.memory_space<vmem>>) attributes {dimension_semantics = [#tpu.dimension_semantics<parallel>, #tpu.dimension_semantics<parallel>], iteration_bounds = array<i64: 4, 1>, scalar_prefetch = 0 : i64, scratch_operands = 0 : i64, tpu.core_type = #tpu.core_type<tc>, window_params = [{transform_indices = @transform_0, window_bounds = array<i64: 8, 128>}, {transform_indices = @transform_1, window_bounds = array<i64: 8, 128>}, {transform_indices = @transform_2, window_bounds = array<i64: 8, 128>}, {transform_indices = @transform_3, window_bounds = array<i64: 8, 128>}]} {
    %c0 = arith.constant 0 : index
    %c0_0 = arith.constant 0 : index
    %0 = vector.load %arg2[%c0, %c0_0] : memref<8x128xf32, #tpu.memory_space<vmem>>, vector<8x128xf32>
    %c0_1 = arith.constant 0 : index
    %c0_2 = arith.constant 0 : index
    %1 = vector.load %arg3[%c0_1, %c0_2] : memref<8x128xf32, #tpu.memory_space<vmem>>, vector<8x128xf32>
    %2 = arith.mulf %0, %1 : vector<8x128xf32>
    %c64_i32 = arith.constant 64 : i32
    %3 = tpu.dynamic_rotate %0 by %c64_i32 dim 1 : vector<8x128xf32>, i32 -> vector<8x128xf32>
    %c0_3 = arith.constant 0 : index
    %c0_4 = arith.constant 0 : index
    %4 = vector.load %arg4[%c0_3, %c0_4] : memref<8x128xf32, #tpu.memory_space<vmem>>, vector<8x128xf32>
    %5 = arith.mulf %3, %4 : vector<8x128xf32>
    %6 = arith.addf %2, %5 : vector<8x128xf32>
    %7 = arith.truncf %6 : vector<8x128xf32> to vector<8x128xbf16>
    %c0_5 = arith.constant 0 : index
    %c0_6 = arith.constant 0 : index
    %8 = vector.load %arg5[%c0_5, %c0_6] : memref<8x128xbf16, #tpu.memory_space<vmem>>, vector<8x128xbf16>
    tpu.vector_store %arg5[%c0_5, %c0_6], %7 {strides = array<i32>} : memref<8x128xbf16, #tpu.memory_space<vmem>>, vector<8x128xbf16>,
    return
  }
  func.func @transform_0(%arg0: i32, %arg1: i32) -> (i32, i32) {
    %c0_i32 = arith.constant 0 : i32
    return %arg1, %arg0 : i32, i32
  }
  func.func @transform_1(%arg0: i32, %arg1: i32) -> (i32, i32) {
    %c0_i32 = arith.constant 0 : i32
    %c0_i32_0 = arith.constant 0 : i32
    return %arg1, %c0_i32 : i32, i32
  }
  func.func @transform_2(%arg0: i32, %arg1: i32) -> (i32, i32) {
    %c0_i32 = arith.constant 0 : i32
    %c0_i32_0 = arith.constant 0 : i32
    return %arg1, %c0_i32 : i32, i32
  }
  func.func @transform_3(%arg0: i32, %arg1: i32) -> (i32, i32) {
    %c0_i32 = arith.constant 0 : i32
    return %arg1, %arg0 : i32, i32
  }
}

module attributes {stable_mosaic.version = 11 : i64} {
  func.func @_flash_kernel(%arg0: i32, %arg1: i32, %arg2: i32, %arg3: memref<8x128xbf16, #tpu.memory_space<vmem>>, %arg4: memref<8x128xbf16, #tpu.memory_space<vmem>>, %arg5: memref<8x128xbf16, #tpu.memory_space<vmem>>, %arg6: memref<8x128xf32, #tpu.memory_space<vmem>>, %arg7: memref<8x128xf32, #tpu.memory_space<vmem>>, %arg8: memref<8x128xbf16, #tpu.memory_space<vmem>>, %arg9: memref<8x1xf32, #tpu.memory_space<vmem>>, %arg10: memref<8x1xf32, #tpu.memory_space<vmem>>, %arg11: memref<8x128xf32, #tpu.memory_space<vmem>>, %arg12: memref<8x128xbf16, #tpu.memory_space<vmem>>) attributes {dimension_semantics = [#tpu.dimension_semantics<parallel>, #tpu.dimension_semantics<parallel>, #tpu.dimension_semantics<arbitrary>], iteration_bounds = array<i64: 4, 1, 1>, scalar_prefetch = 0 : i64, scratch_operands = 4 : i64, tpu.core_type = #tpu.core_type<tc>, window_params = [{transform_indices = @transform_0, window_bounds = array<i64: 8, 128>}, {transform_indices = @transform_1, window_bounds = array<i64: 8, 128>}, {transform_indices = @transform_2, window_bounds = array<i64: 8, 128>}, {transform_indices = @transform_3, window_bounds = array<i64: 8, 128>}, {transform_indices = @transform_4, window_bounds = array<i64: 8, 128>}, {transform_indices = @transform_5, window_bounds = array<i64: 8, 128>}]} {
    %c0_i32 = arith.constant 0 : i32
    %0 = arith.cmpi eq, %arg2, %c0_i32 : i32
    %1 = arith.extui %0 : i1 to i32
    %c0_i32_0 = arith.constant 0 : i32
    %2 = arith.cmpi ne, %1, %c0_i32_0 : i32
    scf.if %2 {
      %cst = arith.constant 0xFF800000 : f32
      %9 = vector.broadcast %cst : f32 to vector<8x1xf32>
      %c0 = arith.constant 0 : index
      %c0_4 = arith.constant 0 : index
      %10 = vector.load %arg9[%c0, %c0_4] : memref<8x1xf32, #tpu.memory_space<vmem>>, vector<8x1xf32>
      tpu.vector_store %arg9[%c0, %c0_4], %9 {strides = array<i32>} : memref<8x1xf32, #tpu.memory_space<vmem>>, vector<8x1xf32>,
      %cst_5 = arith.constant 0.000000e+00 : f32
      %11 = vector.broadcast %cst_5 : f32 to vector<8x1xf32>
      %c0_6 = arith.constant 0 : index
      %c0_7 = arith.constant 0 : index
      %12 = vector.load %arg10[%c0_6, %c0_7] : memref<8x1xf32, #tpu.memory_space<vmem>>, vector<8x1xf32>
      tpu.vector_store %arg10[%c0_6, %c0_7], %11 {strides = array<i32>} : memref<8x1xf32, #tpu.memory_space<vmem>>, vector<8x1xf32>,
      %cst_8 = arith.constant 0.000000e+00 : f32
      %13 = vector.broadcast %cst_8 : f32 to vector<8x128xf32>
      %c0_9 = arith.constant 0 : index
      %c0_10 = arith.constant 0 : index
      %14 = vector.load %arg11[%c0_9, %c0_10] : memref<8x128xf32, #tpu.memory_space<vmem>>, vector<8x128xf32>
      tpu.vector_store %arg11[%c0_9, %c0_10], %13 {strides = array<i32>} : memref<8x128xf32, #tpu.memory_space<vmem>>, vector<8x128xf32>,
      %c0_11 = arith.constant 0 : index
      %c0_12 = arith.constant 0 : index
      %15 = vector.load %arg3[%c0_11, %c0_12] : memref<8x128xbf16, #tpu.memory_space<vmem>>, vector<8x128xbf16>
      %16 = arith.extf %15 : vector<8x128xbf16> to vector<8x128xf32>
      %c0_13 = arith.constant 0 : index
      %c0_14 = arith.constant 0 : index
      %17 = vector.load %arg6[%c0_13, %c0_14] : memref<8x128xf32, #tpu.memory_space<vmem>>, vector<8x128xf32>
      %18 = arith.mulf %16, %17 : vector<8x128xf32>
      %c64_i32 = arith.constant 64 : i32
      %19 = tpu.dynamic_rotate %16 by %c64_i32 dim 1 : vector<8x128xf32>, i32 -> vector<8x128xf32>
      %c0_15 = arith.constant 0 : index
      %c0_16 = arith.constant 0 : index
      %20 = vector.load %arg7[%c0_15, %c0_16] : memref<8x128xf32, #tpu.memory_space<vmem>>, vector<8x128xf32>
      %21 = arith.mulf %19, %20 : vector<8x128xf32>
      %22 = arith.addf %18, %21 : vector<8x128xf32>
      %cst_17 = arith.constant 0.0883883461 : f32
      %23 = vector.broadcast %cst_17 : f32 to vector<8x128xf32>
      %24 = arith.mulf %22, %23 : vector<8x128xf32>
      %25 = arith.truncf %24 : vector<8x128xf32> to vector<8x128xbf16>
      %c0_18 = arith.constant 0 : index
      %c0_19 = arith.constant 0 : index
      %26 = vector.load %arg12[%c0_18, %c0_19] : memref<8x128xbf16, #tpu.memory_space<vmem>>, vector<8x128xbf16>
      tpu.vector_store %arg12[%c0_18, %c0_19], %25 {strides = array<i32>} : memref<8x128xbf16, #tpu.memory_space<vmem>>, vector<8x128xbf16>,
    } else {
    }
    %3 = arith.cmpi sle, %arg2, %arg1 : i32
    %4 = arith.extui %3 : i1 to i32
    %c0_i32_1 = arith.constant 0 : i32
    %5 = arith.cmpi ne, %4, %c0_i32_1 : i32
    scf.if %5 {
      %c0 = arith.constant 0 : index
      %c0_4 = arith.constant 0 : index
      %9 = vector.load %arg12[%c0, %c0_4] : memref<8x128xbf16, #tpu.memory_space<vmem>>, vector<8x128xbf16>
      %c0_5 = arith.constant 0 : index
      %c0_6 = arith.constant 0 : index
      %10 = vector.load %arg4[%c0_5, %c0_6] : memref<8x128xbf16, #tpu.memory_space<vmem>>, vector<8x128xbf16>
      %cst = arith.constant dense<0.000000e+00> : vector<8x8xf32>
      %11 = tpu.matmul %9, %10, %cst {dimension_numbers = #tpu.dot_dimension_numbers<[1], [1], [0], [0], [0, 0, 1, 0], [], []>} : vector<8x128xbf16>, vector<8x128xbf16>, vector<8x8xf32> -> vector<8x8xf32>
      %c8_i32 = arith.constant 8 : i32
      %12 = arith.muli %arg1, %c8_i32 : i32
      %13 = tpu.iota {dimensions = array<i32: 0>} : vector<8x8xi32>
      %14 = vector.broadcast %12 : i32 to vector<8x8xi32>
      %15 = arith.addi %14, %13 : vector<8x8xi32>
      %c8_i32_7 = arith.constant 8 : i32
      %16 = arith.muli %arg2, %c8_i32_7 : i32
      %17 = tpu.iota {dimensions = array<i32: 1>} : vector<8x8xi32>
      %18 = vector.broadcast %16 : i32 to vector<8x8xi32>
      %19 = arith.addi %18, %17 : vector<8x8xi32>
      %20 = arith.cmpi sge, %15, %19 : vector<8x8xi32>
      %cst_8 = arith.constant -1.000000e+30 : f32
      %21 = vector.broadcast %cst_8 : f32 to vector<8x8xf32>
      %22 = arith.select %20, %11, %21 : vector<8x8xi1>, vector<8x8xf32>
      %c0_9 = arith.constant 0 : index
      %c0_10 = arith.constant 0 : index
      %23 = vector.load %arg9[%c0_9, %c0_10] : memref<8x1xf32, #tpu.memory_space<vmem>>, vector<8x1xf32>
      %cst_11 = arith.constant dense<0xFF800000> : vector<8xf32>
      %24 = vector.multi_reduction <maximumf>, %22, %cst_11 [1] : vector<8x8xf32> to vector<8xf32>
      %25 = vector.shape_cast %24 : vector<8xf32> to vector<8x1xf32>
      %26 = arith.maximumf %23, %25 : vector<8x1xf32>
      %27 = arith.subf %23, %26 : vector<8x1xf32>
      %28 = math.exp %27 : vector<8x1xf32>
      %29 = vector.broadcast %26 : vector<8x1xf32> to vector<8x8xf32>
      %30 = arith.subf %22, %29 : vector<8x8xf32>
      %31 = math.exp %30 : vector<8x8xf32>
      %c0_12 = arith.constant 0 : index
      %c0_13 = arith.constant 0 : index
      %32 = vector.load %arg10[%c0_12, %c0_13] : memref<8x1xf32, #tpu.memory_space<vmem>>, vector<8x1xf32>
      %33 = arith.mulf %28, %32 : vector<8x1xf32>
      %cst_14 = arith.constant dense<0.000000e+00> : vector<8xf32>
      %34 = vector.multi_reduction <add>, %31, %cst_14 [1] : vector<8x8xf32> to vector<8xf32>
      %35 = vector.shape_cast %34 : vector<8xf32> to vector<8x1xf32>
      %36 = arith.addf %33, %35 : vector<8x1xf32>
      %c0_15 = arith.constant 0 : index
      %c0_16 = arith.constant 0 : index
      %37 = vector.load %arg10[%c0_15, %c0_16] : memref<8x1xf32, #tpu.memory_space<vmem>>, vector<8x1xf32>
      tpu.vector_store %arg10[%c0_15, %c0_16], %36 {strides = array<i32>} : memref<8x1xf32, #tpu.memory_space<vmem>>, vector<8x1xf32>,
      %c0_17 = arith.constant 0 : index
      %c0_18 = arith.constant 0 : index
      %38 = vector.load %arg11[%c0_17, %c0_18] : memref<8x128xf32, #tpu.memory_space<vmem>>, vector<8x128xf32>
      %39 = vector.broadcast %28 : vector<8x1xf32> to vector<8x128xf32>
      %40 = arith.mulf %39, %38 : vector<8x128xf32>
      %41 = arith.truncf %31 : vector<8x8xf32> to vector<8x8xbf16>
      %c0_19 = arith.constant 0 : index
      %c0_20 = arith.constant 0 : index
      %42 = vector.load %arg5[%c0_19, %c0_20] : memref<8x128xbf16, #tpu.memory_space<vmem>>, vector<8x128xbf16>
      %cst_21 = arith.constant dense<0.000000e+00> : vector<8x128xf32>
      %43 = tpu.matmul %41, %42, %cst_21 {dimension_numbers = #tpu.dot_dimension_numbers<[1], [0], [0], [1], [0, 0, 1, 1], [], []>} : vector<8x8xbf16>, vector<8x128xbf16>, vector<8x128xf32> -> vector<8x128xf32>
      %44 = arith.addf %40, %43 : vector<8x128xf32>
      %c0_22 = arith.constant 0 : index
      %c0_23 = arith.constant 0 : index
      %45 = vector.load %arg11[%c0_22, %c0_23] : memref<8x128xf32, #tpu.memory_space<vmem>>, vector<8x128xf32>
      tpu.vector_store %arg11[%c0_22, %c0_23], %44 {strides = array<i32>} : memref<8x128xf32, #tpu.memory_space<vmem>>, vector<8x128xf32>,
      %c0_24 = arith.constant 0 : index
      %c0_25 = arith.constant 0 : index
      %46 = vector.load %arg9[%c0_24, %c0_25] : memref<8x1xf32, #tpu.memory_space<vmem>>, vector<8x1xf32>
      tpu.vector_store %arg9[%c0_24, %c0_25], %26 {strides = array<i32>} : memref<8x1xf32, #tpu.memory_space<vmem>>, vector<8x1xf32>,
    } else {
    }
    %c0_i32_2 = arith.constant 0 : i32
    %6 = arith.cmpi eq, %arg2, %c0_i32_2 : i32
    %7 = arith.extui %6 : i1 to i32
    %c0_i32_3 = arith.constant 0 : i32
    %8 = arith.cmpi ne, %7, %c0_i32_3 : i32
    scf.if %8 {
      %c0 = arith.constant 0 : index
      %c0_4 = arith.constant 0 : index
      %9 = vector.load %arg11[%c0, %c0_4] : memref<8x128xf32, #tpu.memory_space<vmem>>, vector<8x128xf32>
      %c0_5 = arith.constant 0 : index
      %c0_6 = arith.constant 0 : index
      %10 = vector.load %arg10[%c0_5, %c0_6] : memref<8x1xf32, #tpu.memory_space<vmem>>, vector<8x1xf32>
      %11 = tpu.reciprocal %10 {approx = true} : vector<8x1xf32> -> vector<8x1xf32>
      %12 = vector.broadcast %11 : vector<8x1xf32> to vector<8x128xf32>
      %13 = arith.mulf %9, %12 : vector<8x128xf32>
      %14 = arith.truncf %13 : vector<8x128xf32> to vector<8x128xbf16>
      %c0_7 = arith.constant 0 : index
      %c0_8 = arith.constant 0 : index
      %15 = vector.load %arg8[%c0_7, %c0_8] : memref<8x128xbf16, #tpu.memory_space<vmem>>, vector<8x128xbf16>
      tpu.vector_store %arg8[%c0_7, %c0_8], %14 {strides = array<i32>} : memref<8x128xbf16, #tpu.memory_space<vmem>>, vector<8x128xbf16>,
    } else {
    }
    return
  }
  func.func @transform_0(%arg0: i32, %arg1: i32, %arg2: i32) -> (i32, i32) {
    %c0_i32 = arith.constant 0 : i32
    return %arg1, %arg0 : i32, i32
  }
  func.func @transform_1(%arg0: i32, %arg1: i32, %arg2: i32) -> (i32, i32) {
    %0 = arith.minsi %arg2, %arg1 : i32
    %c0_i32 = arith.constant 0 : i32
    return %0, %arg0 : i32, i32
  }
  func.func @transform_2(%arg0: i32, %arg1: i32, %arg2: i32) -> (i32, i32) {
    %0 = arith.minsi %arg2, %arg1 : i32
    %c0_i32 = arith.constant 0 : i32
    return %0, %arg0 : i32, i32
  }
  func.func @transform_3(%arg0: i32, %arg1: i32, %arg2: i32) -> (i32, i32) {
    %c0_i32 = arith.constant 0 : i32
    %c0_i32_0 = arith.constant 0 : i32
    return %arg1, %c0_i32 : i32, i32
  }
  func.func @transform_4(%arg0: i32, %arg1: i32, %arg2: i32) -> (i32, i32) {
    %c0_i32 = arith.constant 0 : i32
    %c0_i32_0 = arith.constant 0 : i32
    return %arg1, %c0_i32 : i32, i32
  }
  func.func @transform_5(%arg0: i32, %arg1: i32, %arg2: i32) -> (i32, i32) {
    %c0_i32 = arith.constant 0 : i32
    return %arg1, %arg0 : i32, i32
  }
}

module attributes {stable_mosaic.version = 11 : i64} {
  func.func @_matmul_residual_kernel(%arg0: i32, %arg1: i32, %arg2: i32, %arg3: memref<8x512xbf16, #tpu.memory_space<vmem>>, %arg4: memref<512x512xi8, #tpu.memory_space<vmem>>, %arg5: memref<1x512xf32, #tpu.memory_space<vmem>>, %arg6: memref<8x512xf32, #tpu.memory_space<vmem>>, %arg7: memref<8x512xf32, #tpu.memory_space<vmem>>, %arg8: memref<8x512xf32, #tpu.memory_space<vmem>>) attributes {dimension_semantics = [#tpu.dimension_semantics<parallel>, #tpu.dimension_semantics<parallel>, #tpu.dimension_semantics<arbitrary>], iteration_bounds = array<i64: 1, 1, 1>, scalar_prefetch = 0 : i64, scratch_operands = 1 : i64, tpu.core_type = #tpu.core_type<tc>, window_params = [{transform_indices = @transform_0, window_bounds = array<i64: 8, 512>}, {transform_indices = @transform_1, window_bounds = array<i64: 512, 512>}, {transform_indices = @transform_2, window_bounds = array<i64: 1, 512>}, {transform_indices = @transform_3, window_bounds = array<i64: 8, 512>}, {transform_indices = @transform_4, window_bounds = array<i64: 8, 512>}]} {
    %c0_i32 = arith.constant 0 : i32
    %0 = arith.cmpi eq, %arg2, %c0_i32 : i32
    %1 = arith.extui %0 : i1 to i32
    %c0_i32_0 = arith.constant 0 : i32
    %2 = arith.cmpi ne, %1, %c0_i32_0 : i32
    scf.if %2 {
      %cst_10 = arith.constant 0.000000e+00 : f32
      %13 = vector.broadcast %cst_10 : f32 to vector<8x512xf32>
      %c0_11 = arith.constant 0 : index
      %c0_12 = arith.constant 0 : index
      %14 = vector.load %arg8[%c0_11, %c0_12] : memref<8x512xf32, #tpu.memory_space<vmem>>, vector<8x512xf32>
      tpu.vector_store %arg8[%c0_11, %c0_12], %13 {strides = array<i32>} : memref<8x512xf32, #tpu.memory_space<vmem>>, vector<8x512xf32>,
    } else {
    }
    %c0 = arith.constant 0 : index
    %c0_1 = arith.constant 0 : index
    %3 = vector.load %arg8[%c0, %c0_1] : memref<8x512xf32, #tpu.memory_space<vmem>>, vector<8x512xf32>
    %c0_2 = arith.constant 0 : index
    %c0_3 = arith.constant 0 : index
    %4 = vector.load %arg3[%c0_2, %c0_3] : memref<8x512xbf16, #tpu.memory_space<vmem>>, vector<8x512xbf16>
    %c0_4 = arith.constant 0 : index
    %c0_5 = arith.constant 0 : index
    %5 = vector.load %arg4[%c0_4, %c0_5] : memref<512x512xi8, #tpu.memory_space<vmem>>, vector<512x512xi8>
    %6 = arith.sitofp %5 : vector<512x512xi8> to vector<512x512xbf16>
    %cst = arith.constant dense<0.000000e+00> : vector<8x512xf32>
    %7 = tpu.matmul %4, %6, %cst {dimension_numbers = #tpu.dot_dimension_numbers<[1], [0], [0], [1], [0, 0, 1, 1], [], []>} : vector<8x512xbf16>, vector<512x512xbf16>, vector<8x512xf32> -> vector<8x512xf32>
    %8 = arith.addf %3, %7 : vector<8x512xf32>
    %c0_6 = arith.constant 0 : index
    %c0_7 = arith.constant 0 : index
    %9 = vector.load %arg8[%c0_6, %c0_7] : memref<8x512xf32, #tpu.memory_space<vmem>>, vector<8x512xf32>
    tpu.vector_store %arg8[%c0_6, %c0_7], %8 {strides = array<i32>} : memref<8x512xf32, #tpu.memory_space<vmem>>, vector<8x512xf32>,
    %c0_i32_8 = arith.constant 0 : i32
    %10 = arith.cmpi eq, %arg2, %c0_i32_8 : i32
    %11 = arith.extui %10 : i1 to i32
    %c0_i32_9 = arith.constant 0 : i32
    %12 = arith.cmpi ne, %11, %c0_i32_9 : i32
    scf.if %12 {
      %c0_10 = arith.constant 0 : index
      %c0_11 = arith.constant 0 : index
      %13 = vector.load %arg8[%c0_10, %c0_11] : memref<8x512xf32, #tpu.memory_space<vmem>>, vector<8x512xf32>
      %c0_12 = arith.constant 0 : index
      %c0_13 = arith.constant 0 : index
      %14 = vector.load %arg5[%c0_12, %c0_13] : memref<1x512xf32, #tpu.memory_space<vmem>>, vector<1x512xf32>
      %15 = vector.broadcast %14 : vector<1x512xf32> to vector<8x512xf32>
      %16 = arith.mulf %13, %15 : vector<8x512xf32>
      %c0_14 = arith.constant 0 : index
      %c0_15 = arith.constant 0 : index
      %17 = vector.load %arg6[%c0_14, %c0_15] : memref<8x512xf32, #tpu.memory_space<vmem>>, vector<8x512xf32>
      %18 = arith.addf %16, %17 : vector<8x512xf32>
      %c0_16 = arith.constant 0 : index
      %c0_17 = arith.constant 0 : index
      %19 = vector.load %arg7[%c0_16, %c0_17] : memref<8x512xf32, #tpu.memory_space<vmem>>, vector<8x512xf32>
      tpu.vector_store %arg7[%c0_16, %c0_17], %18 {strides = array<i32>} : memref<8x512xf32, #tpu.memory_space<vmem>>, vector<8x512xf32>,
    } else {
    }
    return
  }
  func.func @transform_0(%arg0: i32, %arg1: i32, %arg2: i32) -> (i32, i32) {
    %c0_i32 = arith.constant 0 : i32
    return %arg0, %arg2 : i32, i32
  }
  func.func @transform_1(%arg0: i32, %arg1: i32, %arg2: i32) -> (i32, i32) {
    %c0_i32 = arith.constant 0 : i32
    return %arg2, %arg1 : i32, i32
  }
  func.func @transform_2(%arg0: i32, %arg1: i32, %arg2: i32) -> (i32, i32) {
    %c0_i32 = arith.constant 0 : i32
    %c0_i32_0 = arith.constant 0 : i32
    return %c0_i32, %arg1 : i32, i32
  }
  func.func @transform_3(%arg0: i32, %arg1: i32, %arg2: i32) -> (i32, i32) {
    %c0_i32 = arith.constant 0 : i32
    return %arg0, %arg1 : i32, i32
  }
  func.func @transform_4(%arg0: i32, %arg1: i32, %arg2: i32) -> (i32, i32) {
    %c0_i32 = arith.constant 0 : i32
    return %arg0, %arg1 : i32, i32
  }
}

module attributes {stable_mosaic.version = 11 : i64} {
  func.func @_matmul_residual_kernel(%arg0: i32, %arg1: i32, %arg2: i32, %arg3: memref<8x1024xbf16, #tpu.memory_space<vmem>>, %arg4: memref<1024x512xi8, #tpu.memory_space<vmem>>, %arg5: memref<1x512xf32, #tpu.memory_space<vmem>>, %arg6: memref<8x512xf32, #tpu.memory_space<vmem>>, %arg7: memref<8x512xf32, #tpu.memory_space<vmem>>, %arg8: memref<8x512xf32, #tpu.memory_space<vmem>>) attributes {dimension_semantics = [#tpu.dimension_semantics<parallel>, #tpu.dimension_semantics<parallel>, #tpu.dimension_semantics<arbitrary>], iteration_bounds = array<i64: 1, 1, 1>, scalar_prefetch = 0 : i64, scratch_operands = 1 : i64, tpu.core_type = #tpu.core_type<tc>, window_params = [{transform_indices = @transform_0, window_bounds = array<i64: 8, 1024>}, {transform_indices = @transform_1, window_bounds = array<i64: 1024, 512>}, {transform_indices = @transform_2, window_bounds = array<i64: 1, 512>}, {transform_indices = @transform_3, window_bounds = array<i64: 8, 512>}, {transform_indices = @transform_4, window_bounds = array<i64: 8, 512>}]} {
    %c0_i32 = arith.constant 0 : i32
    %0 = arith.cmpi eq, %arg2, %c0_i32 : i32
    %1 = arith.extui %0 : i1 to i32
    %c0_i32_0 = arith.constant 0 : i32
    %2 = arith.cmpi ne, %1, %c0_i32_0 : i32
    scf.if %2 {
      %cst_10 = arith.constant 0.000000e+00 : f32
      %13 = vector.broadcast %cst_10 : f32 to vector<8x512xf32>
      %c0_11 = arith.constant 0 : index
      %c0_12 = arith.constant 0 : index
      %14 = vector.load %arg8[%c0_11, %c0_12] : memref<8x512xf32, #tpu.memory_space<vmem>>, vector<8x512xf32>
      tpu.vector_store %arg8[%c0_11, %c0_12], %13 {strides = array<i32>} : memref<8x512xf32, #tpu.memory_space<vmem>>, vector<8x512xf32>,
    } else {
    }
    %c0 = arith.constant 0 : index
    %c0_1 = arith.constant 0 : index
    %3 = vector.load %arg8[%c0, %c0_1] : memref<8x512xf32, #tpu.memory_space<vmem>>, vector<8x512xf32>
    %c0_2 = arith.constant 0 : index
    %c0_3 = arith.constant 0 : index
    %4 = vector.load %arg3[%c0_2, %c0_3] : memref<8x1024xbf16, #tpu.memory_space<vmem>>, vector<8x1024xbf16>
    %c0_4 = arith.constant 0 : index
    %c0_5 = arith.constant 0 : index
    %5 = vector.load %arg4[%c0_4, %c0_5] : memref<1024x512xi8, #tpu.memory_space<vmem>>, vector<1024x512xi8>
    %6 = arith.sitofp %5 : vector<1024x512xi8> to vector<1024x512xbf16>
    %cst = arith.constant dense<0.000000e+00> : vector<8x512xf32>
    %7 = tpu.matmul %4, %6, %cst {dimension_numbers = #tpu.dot_dimension_numbers<[1], [0], [0], [1], [0, 0, 1, 1], [], []>} : vector<8x1024xbf16>, vector<1024x512xbf16>, vector<8x512xf32> -> vector<8x512xf32>
    %8 = arith.addf %3, %7 : vector<8x512xf32>
    %c0_6 = arith.constant 0 : index
    %c0_7 = arith.constant 0 : index
    %9 = vector.load %arg8[%c0_6, %c0_7] : memref<8x512xf32, #tpu.memory_space<vmem>>, vector<8x512xf32>
    tpu.vector_store %arg8[%c0_6, %c0_7], %8 {strides = array<i32>} : memref<8x512xf32, #tpu.memory_space<vmem>>, vector<8x512xf32>,
    %c0_i32_8 = arith.constant 0 : i32
    %10 = arith.cmpi eq, %arg2, %c0_i32_8 : i32
    %11 = arith.extui %10 : i1 to i32
    %c0_i32_9 = arith.constant 0 : i32
    %12 = arith.cmpi ne, %11, %c0_i32_9 : i32
    scf.if %12 {
      %c0_10 = arith.constant 0 : index
      %c0_11 = arith.constant 0 : index
      %13 = vector.load %arg8[%c0_10, %c0_11] : memref<8x512xf32, #tpu.memory_space<vmem>>, vector<8x512xf32>
      %c0_12 = arith.constant 0 : index
      %c0_13 = arith.constant 0 : index
      %14 = vector.load %arg5[%c0_12, %c0_13] : memref<1x512xf32, #tpu.memory_space<vmem>>, vector<1x512xf32>
      %15 = vector.broadcast %14 : vector<1x512xf32> to vector<8x512xf32>
      %16 = arith.mulf %13, %15 : vector<8x512xf32>
      %c0_14 = arith.constant 0 : index
      %c0_15 = arith.constant 0 : index
      %17 = vector.load %arg6[%c0_14, %c0_15] : memref<8x512xf32, #tpu.memory_space<vmem>>, vector<8x512xf32>
      %18 = arith.addf %16, %17 : vector<8x512xf32>
      %c0_16 = arith.constant 0 : index
      %c0_17 = arith.constant 0 : index
      %19 = vector.load %arg7[%c0_16, %c0_17] : memref<8x512xf32, #tpu.memory_space<vmem>>, vector<8x512xf32>
      tpu.vector_store %arg7[%c0_16, %c0_17], %18 {strides = array<i32>} : memref<8x512xf32, #tpu.memory_space<vmem>>, vector<8x512xf32>,
    } else {
    }
    return
  }
  func.func @transform_0(%arg0: i32, %arg1: i32, %arg2: i32) -> (i32, i32) {
    %c0_i32 = arith.constant 0 : i32
    return %arg0, %arg2 : i32, i32
  }
  func.func @transform_1(%arg0: i32, %arg1: i32, %arg2: i32) -> (i32, i32) {
    %c0_i32 = arith.constant 0 : i32
    return %arg2, %arg1 : i32, i32
  }
  func.func @transform_2(%arg0: i32, %arg1: i32, %arg2: i32) -> (i32, i32) {
    %c0_i32 = arith.constant 0 : i32
    %c0_i32_0 = arith.constant 0 : i32
    return %c0_i32, %arg1 : i32, i32
  }
  func.func @transform_3(%arg0: i32, %arg1: i32, %arg2: i32) -> (i32, i32) {
    %c0_i32 = arith.constant 0 : i32
    return %arg0, %arg1 : i32, i32
  }
  func.func @transform_4(%arg0: i32, %arg1: i32, %arg2: i32) -> (i32, i32) {
    %c0_i32 = arith.constant 0 : i32
    return %arg0, %arg1 : i32, i32
  }
}

module attributes {stable_mosaic.version = 11 : i64} {
  func.func @_norm_gateup_kernel(%arg0: i32, %arg1: i32, %arg2: memref<8x512xf32, #tpu.memory_space<vmem>>, %arg3: memref<1x512xf32, #tpu.memory_space<vmem>>, %arg4: memref<512x512xi8, #tpu.memory_space<vmem>>, %arg5: memref<1x512xf32, #tpu.memory_space<vmem>>, %arg6: memref<512x512xi8, #tpu.memory_space<vmem>>, %arg7: memref<1x512xf32, #tpu.memory_space<vmem>>, %arg8: memref<8x512xbf16, #tpu.memory_space<vmem>>, %arg9: memref<8x512xbf16, #tpu.memory_space<vmem>>) attributes {dimension_semantics = [#tpu.dimension_semantics<parallel>, #tpu.dimension_semantics<arbitrary>], iteration_bounds = array<i64: 1, 2>, scalar_prefetch = 0 : i64, scratch_operands = 1 : i64, tpu.core_type = #tpu.core_type<tc>, window_params = [{transform_indices = @transform_0, window_bounds = array<i64: 8, 512>}, {pipeline_mode = #tpu.pipeline_mode<synchronous>, transform_indices = @transform_1, window_bounds = array<i64: 1, 512>}, {transform_indices = @transform_2, window_bounds = array<i64: 512, 512>}, {transform_indices = @transform_3, window_bounds = array<i64: 1, 512>}, {transform_indices = @transform_4, window_bounds = array<i64: 512, 512>}, {transform_indices = @transform_5, window_bounds = array<i64: 1, 512>}, {transform_indices = @transform_6, window_bounds = array<i64: 8, 512>}]} {
    %c0_i32 = arith.constant 0 : i32
    %0 = arith.cmpi eq, %arg1, %c0_i32 : i32
    %1 = arith.extui %0 : i1 to i32
    %c0_i32_0 = arith.constant 0 : i32
    %2 = arith.cmpi ne, %1, %c0_i32_0 : i32
    scf.if %2 {
      %c0_14 = arith.constant 0 : index
      %c0_15 = arith.constant 0 : index
      %25 = vector.load %arg2[%c0_14, %c0_15] : memref<8x512xf32, #tpu.memory_space<vmem>>, vector<8x512xf32>
      %26 = arith.mulf %25, %25 : vector<8x512xf32>
      %cst_16 = arith.constant dense<0.000000e+00> : vector<8xf32>
      %27 = vector.multi_reduction <add>, %26, %cst_16 [1] : vector<8x512xf32> to vector<8xf32>
      %28 = vector.shape_cast %27 : vector<8xf32> to vector<8x1xf32>
      %cst_17 = arith.constant 5.120000e+02 : f32
      %29 = vector.broadcast %cst_17 : f32 to vector<8x1xf32>
      %30 = arith.divf %28, %29 : vector<8x1xf32>
      %cst_18 = arith.constant 9.99999997E-7 : f32
      %31 = vector.broadcast %cst_18 : f32 to vector<8x1xf32>
      %32 = arith.addf %30, %31 : vector<8x1xf32>
      %33 = math.rsqrt %32 : vector<8x1xf32>
      %34 = vector.broadcast %33 : vector<8x1xf32> to vector<8x512xf32>
      %35 = arith.mulf %25, %34 : vector<8x512xf32>
      %c0_19 = arith.constant 0 : index
      %c0_20 = arith.constant 0 : index
      %36 = vector.load %arg3[%c0_19, %c0_20] : memref<1x512xf32, #tpu.memory_space<vmem>>, vector<1x512xf32>
      %37 = vector.broadcast %36 : vector<1x512xf32> to vector<8x512xf32>
      %38 = arith.mulf %35, %37 : vector<8x512xf32>
      %39 = arith.truncf %38 : vector<8x512xf32> to vector<8x512xbf16>
      %c0_21 = arith.constant 0 : index
      %c0_22 = arith.constant 0 : index
      %40 = vector.load %arg9[%c0_21, %c0_22] : memref<8x512xbf16, #tpu.memory_space<vmem>>, vector<8x512xbf16>
      tpu.vector_store %arg9[%c0_21, %c0_22], %39 {strides = array<i32>} : memref<8x512xbf16, #tpu.memory_space<vmem>>, vector<8x512xbf16>,
    } else {
    }
    %c0 = arith.constant 0 : index
    %c0_1 = arith.constant 0 : index
    %3 = vector.load %arg9[%c0, %c0_1] : memref<8x512xbf16, #tpu.memory_space<vmem>>, vector<8x512xbf16>
    %c0_2 = arith.constant 0 : index
    %c0_3 = arith.constant 0 : index
    %4 = vector.load %arg4[%c0_2, %c0_3] : memref<512x512xi8, #tpu.memory_space<vmem>>, vector<512x512xi8>
    %5 = arith.sitofp %4 : vector<512x512xi8> to vector<512x512xbf16>
    %cst = arith.constant dense<0.000000e+00> : vector<8x512xf32>
    %6 = tpu.matmul %3, %5, %cst {dimension_numbers = #tpu.dot_dimension_numbers<[1], [0], [0], [1], [0, 0, 1, 1], [], []>} : vector<8x512xbf16>, vector<512x512xbf16>, vector<8x512xf32> -> vector<8x512xf32>
    %c0_4 = arith.constant 0 : index
    %c0_5 = arith.constant 0 : index
    %7 = vector.load %arg5[%c0_4, %c0_5] : memref<1x512xf32, #tpu.memory_space<vmem>>, vector<1x512xf32>
    %8 = vector.broadcast %7 : vector<1x512xf32> to vector<8x512xf32>
    %9 = arith.mulf %6, %8 : vector<8x512xf32>
    %c0_6 = arith.constant 0 : index
    %c0_7 = arith.constant 0 : index
    %10 = vector.load %arg6[%c0_6, %c0_7] : memref<512x512xi8, #tpu.memory_space<vmem>>, vector<512x512xi8>
    %11 = arith.sitofp %10 : vector<512x512xi8> to vector<512x512xbf16>
    %cst_8 = arith.constant dense<0.000000e+00> : vector<8x512xf32>
    %12 = tpu.matmul %3, %11, %cst_8 {dimension_numbers = #tpu.dot_dimension_numbers<[1], [0], [0], [1], [0, 0, 1, 1], [], []>} : vector<8x512xbf16>, vector<512x512xbf16>, vector<8x512xf32> -> vector<8x512xf32>
    %c0_9 = arith.constant 0 : index
    %c0_10 = arith.constant 0 : index
    %13 = vector.load %arg7[%c0_9, %c0_10] : memref<1x512xf32, #tpu.memory_space<vmem>>, vector<1x512xf32>
    %14 = vector.broadcast %13 : vector<1x512xf32> to vector<8x512xf32>
    %15 = arith.mulf %12, %14 : vector<8x512xf32>
    %16 = arith.negf %9 : vector<8x512xf32>
    %17 = math.exp %16 : vector<8x512xf32>
    %cst_11 = arith.constant 1.000000e+00 : f32
    %18 = vector.broadcast %cst_11 : f32 to vector<8x512xf32>
    %19 = arith.addf %18, %17 : vector<8x512xf32>
    %20 = arith.divf %18, %19 : vector<8x512xf32>
    %21 = arith.mulf %9, %20 : vector<8x512xf32>
    %22 = arith.mulf %21, %15 : vector<8x512xf32>
    %23 = arith.truncf %22 : vector<8x512xf32> to vector<8x512xbf16>
    %c0_12 = arith.constant 0 : index
    %c0_13 = arith.constant 0 : index
    %24 = vector.load %arg8[%c0_12, %c0_13] : memref<8x512xbf16, #tpu.memory_space<vmem>>, vector<8x512xbf16>
    tpu.vector_store %arg8[%c0_12, %c0_13], %23 {strides = array<i32>} : memref<8x512xbf16, #tpu.memory_space<vmem>>, vector<8x512xbf16>,
    return
  }
  func.func @transform_0(%arg0: i32, %arg1: i32) -> (i32, i32) {
    %c0_i32 = arith.constant 0 : i32
    %c0_i32_0 = arith.constant 0 : i32
    return %arg0, %c0_i32 : i32, i32
  }
  func.func @transform_1(%arg0: i32, %arg1: i32) -> (i32, i32) {
    %c0_i32 = arith.constant 0 : i32
    %c0_i32_0 = arith.constant 0 : i32
    %c0_i32_1 = arith.constant 0 : i32
    return %c0_i32, %c0_i32_0 : i32, i32
  }
  func.func @transform_2(%arg0: i32, %arg1: i32) -> (i32, i32) {
    %c0_i32 = arith.constant 0 : i32
    %c0_i32_0 = arith.constant 0 : i32
    return %c0_i32, %arg1 : i32, i32
  }
  func.func @transform_3(%arg0: i32, %arg1: i32) -> (i32, i32) {
    %c0_i32 = arith.constant 0 : i32
    %c0_i32_0 = arith.constant 0 : i32
    return %c0_i32, %arg1 : i32, i32
  }
  func.func @transform_4(%arg0: i32, %arg1: i32) -> (i32, i32) {
    %c0_i32 = arith.constant 0 : i32
    %c0_i32_0 = arith.constant 0 : i32
    return %c0_i32, %arg1 : i32, i32
  }
  func.func @transform_5(%arg0: i32, %arg1: i32) -> (i32, i32) {
    %c0_i32 = arith.constant 0 : i32
    %c0_i32_0 = arith.constant 0 : i32
    return %c0_i32, %arg1 : i32, i32
  }
  func.func @transform_6(%arg0: i32, %arg1: i32) -> (i32, i32) {
    %c0_i32 = arith.constant 0 : i32
    return %arg0, %arg1 : i32, i32
  }
}

</mosaic_0001>

<llo_original>
// kernel: llama_decoder_layer.7
$region0: #{llama_decoder_layer.7}
  #allocation0 [shape = 'u32[]', space=smem, size = 0x4, offset = 0x4, fixed_abs, tag = 'smem constant byte address 0x4 - core index']
  #allocation1 [shape = 'u32[144,128]{1,0:T(1,128)}', space=vmem, size = 0x12000, scoped, tag = 'internal scratch']
  %s0 = inlined_call_operand.vmem [shape: f32[8,512], index: 0, kind: input, shape index: {}]
  %s1 = inlined_call_operand.vmem [shape: f32[8,128], index: 1, kind: input, shape index: {}]
  %s2 = inlined_call_operand.vmem [shape: f32[8,128], index: 2, kind: input, shape index: {}]
  %s3 = inlined_call_operand.vmem [shape: bf16[8,512], index: 3, kind: output, shape index: {}]
  %s4 = sld [smem:[#allocation0]]
  $region45: #{llama_decoder_layer.7} parent=0
    _
  %s6 = ssub.s32 1, %s4
  %s7 = scalar_select 0, %s6, %s4
  loop: start=0, step=1, limit=6
  $region2: #{llama_decoder_layer.7} parent=0 // loop_pre_header
    _
  $region3: #{llama_decoder_layer.7} parent=0 // loop_header
    %s9 = sphi 0, %s13
    %p10 = scmp.ge.s32.totalorder %s9, 6
    %s16 = sphi 0, %s28
    %s17 = sphi 0, %s24
    %s18 = sphi 0, %s16
    %s19 = sphi 0, %s17
    %s20 = sphi 0, %s18
    %s21 = sphi 0, %s19
    %s33 = sphi 0, %s35
    %s36 = sphi 0, %s33
    %s37 = sphi 0, %s36
    %s53 = sphi 0, %s37
    %s59 = sphi 0, %s61
    %s62 = sphi 0, %s59
    %s63 = sphi 0, %s62
    %s79 = sphi 0, %s63
    %s85 = sphi 0, %s87
    %s88 = sphi 0, %s85
    %s89 = sphi 0, %s88
    %s105 = sphi 0, %s89
    %s113 = sphi 0, %s115
    %s116 = sphi 0, %s113
    %s117 = sphi 0, %s116
    %s133 = sphi 0, %s117
  $region4: #{llama_decoder_layer.7} parent=0 // loop_header_branch
    %12 = sbr.rel (%p10) target = $region8
  $region5: #{llama_decoder_layer.7} parent=0 // loop_body
    %s14 = ssub.s32 %s9, 1
    %s15 = ssub.s32 %s9, 2
    %s22 = sadd.s32 1, %s17
    %p23 = scmp.ge.s32.totalorder %s22, 1
    %s24 = scalar_select %p23, 0, %s22
    %s25 = sadd.s32 1, %s16
    %s26 = scalar_select %p23, %s25, %s16
    %p27 = scmp.ge.s32.totalorder %s26, 4
    %s28 = scalar_select %p27, 0, %s26
    %s29 = ssub.s32 %s17, %s24
    %s30 = ssub.s32 %s16, %s28
    %s31 = sor.u32 %s29, %s30
    %p32 = scmp.eq.s32.totalorder %s31, 0
    %s34 = sadd.s32 %s33, 1
    %s35 = scalar_select %p32, %s33, %s34
    %p38 = pneg %p32
    %p39 = scmp.eq.s32.totalorder %s9, 3
    %p40 = por %p38, %p39
    %p41 = scmp.ne.s32.totalorder %s33, %s36
    %p42 = scmp.eq.s32.totalorder %s9, 0
    %p43 = por %p41, %p42
    %p44 = scmp.ne.s32.totalorder %s33, %s36
    %p45 = scmp.eq.s32.totalorder %s14, 3
    %p46 = por %p44, %p45
    %p47 = scmp.ne.s32.totalorder %s36, %s37
    %p48 = scmp.eq.s32.totalorder %s14, 0
    %p49 = por %p47, %p48
    %p50 = scmp.ne.s32.totalorder %s36, %s37
    %p51 = scmp.eq.s32.totalorder %s15, 3
    %p52 = por %p50, %p51
    %p54 = scmp.ne.s32.totalorder %s37, %s53
    %p55 = scmp.eq.s32.totalorder %s15, 0
    %p56 = por %p54, %p55
    %s57 = ssub.s32 %s17, %s24
    %p58 = scmp.eq.s32.totalorder %s57, 0
    %s60 = sadd.s32 %s59, 1
    %s61 = scalar_select %p58, %s59, %s60
    %p64 = pneg %p58
    %p65 = scmp.eq.s32.totalorder %s9, 3
    %p66 = por %p64, %p65
    %p67 = scmp.ne.s32.totalorder %s59, %s62
    %p68 = scmp.eq.s32.totalorder %s9, 0
    %p69 = por %p67, %p68
    %p70 = scmp.ne.s32.totalorder %s59, %s62
    %p71 = scmp.eq.s32.totalorder %s14, 3
    %p72 = por %p70, %p71
    %p73 = scmp.ne.s32.totalorder %s62, %s63
    %p74 = scmp.eq.s32.totalorder %s14, 0
    %p75 = por %p73, %p74
    %p76 = scmp.ne.s32.totalorder %s62, %s63
    %p77 = scmp.eq.s32.totalorder %s15, 3
    %p78 = por %p76, %p77
    %p80 = scmp.ne.s32.totalorder %s63, %s79
    %p81 = scmp.eq.s32.totalorder %s15, 0
    %p82 = por %p80, %p81
    %s83 = ssub.s32 %s17, %s24
    %p84 = scmp.eq.s32.totalorder %s83, 0
    %s86 = sadd.s32 %s85, 1
    %s87 = scalar_select %p84, %s85, %s86
    %p90 = pneg %p84
    %p91 = scmp.eq.s32.totalorder %s9, 3
    %p92 = por %p90, %p91
    %p93 = scmp.ne.s32.totalorder %s85, %s88
    %p94 = scmp.eq.s32.totalorder %s9, 0
    %p95 = por %p93, %p94
    %p96 = scmp.ne.s32.totalorder %s85, %s88
    %p97 = scmp.eq.s32.totalorder %s14, 3
    %p98 = por %p96, %p97
    %p99 = scmp.ne.s32.totalorder %s88, %s89
    %p100 = scmp.eq.s32.totalorder %s14, 0
    %p101 = por %p99, %p100
    %p102 = scmp.ne.s32.totalorder %s88, %s89
    %p103 = scmp.eq.s32.totalorder %s15, 3
    %p104 = por %p102, %p103
    %p106 = scmp.ne.s32.totalorder %s89, %s105
    %p107 = scmp.eq.s32.totalorder %s15, 0
    %p108 = por %p106, %p107
    %s109 = ssub.s32 %s17, %s24
    %s110 = ssub.s32 %s16, %s28
    %s111 = sor.u32 %s109, %s110
    %p112 = scmp.eq.s32.totalorder %s111, 0
    %s114 = sadd.s32 %s113, 1
    %s115 = scalar_select %p112, %s113, %s114
    %p118 = pneg %p112
    %p119 = scmp.eq.s32.totalorder %s9, 3
    %p120 = por %p118, %p119
    %p121 = scmp.ne.s32.totalorder %s113, %s116
    %p122 = scmp.eq.s32.totalorder %s9, 0
    %p123 = por %p121, %p122
    %p124 = scmp.ne.s32.totalorder %s113, %s116
    %p125 = scmp.eq.s32.totalorder %s14, 3
    %p126 = por %p124, %p125
    %p127 = scmp.ne.s32.totalorder %s116, %s117
    %p128 = scmp.eq.s32.totalorder %s14, 0
    %p129 = por %p127, %p128
    %p130 = scmp.ne.s32.totalorder %s116, %s117
    %p131 = scmp.eq.s32.totalorder %s15, 3
    %p132 = por %p130, %p131
    %p134 = scmp.ne.s32.totalorder %s117, %s133
    %p135 = scmp.eq.s32.totalorder %s15, 0
    %p136 = por %p134, %p135
    %p137 = scmp.le.s32.totalorder 1, %s9
    %p138 = scmp.lt.s32.totalorder %s9, 5
    %p139 = pnand %p137, %p138
    %p140 = pneg %p139
    // Predicated region
    $region9: #{llama_decoder_layer.7} parent=5 // pred_check
      _
    $region10: #{llama_decoder_layer.7} parent=5 // pred_check_branch
      %142 = sbr.rel (%p139) target = $region12
    $region11: #{llama_decoder_layer.7} parent=5 // pred_region
      %s143 = ssub.s32 %s9, 1
      // Predicated region
      $region13: #{llama_decoder_layer.7} parent=11 // pred_check
        %p144 = pneg %p75
      $region14: #{llama_decoder_layer.7} parent=11 // pred_check_branch
        %146 = sbr.rel (%p144) target = $region16
      $region15: #{llama_decoder_layer.7} parent=11 // pred_region
        %p147 = scmp.lt.s32.totalorder %s19, 0
        %s148 = scalar_select %p147, %s19, 0
        %s149 = smul.addr %s148, 8
        %s150 = scalar_lea.vmem %s1, %s149
      $region16: #{llama_decoder_layer.7} parent=11 // pred_fallthru
        _
      // Predicated region
      $region17: #{llama_decoder_layer.7} parent=11 // pred_check
        %p151 = pneg %p101
      $region18: #{llama_decoder_layer.7} parent=11 // pred_check_branch
        %153 = sbr.rel (%p151) target = $region20
      $region19: #{llama_decoder_layer.7} parent=11 // pred_region
        %p154 = scmp.lt.s32.totalorder %s19, 0
        %s155 = scalar_select %p154, %s19, 0
        %s156 = smul.addr %s155, 8
        %s157 = scalar_lea.vmem %s2, %s156
      $region20: #{llama_decoder_layer.7} parent=11 // pred_fallthru
        _
    $region12: #{llama_decoder_layer.7} parent=5 // pred_fallthru
      _
    %p158 = scmp.lt.s32.totalorder %s9, 4
    // Predicated region
    $region21: #{llama_decoder_layer.7} parent=5 // pred_check
      %p159 = pneg %p158
    $region22: #{llama_decoder_layer.7} parent=5 // pred_check_branch
      %161 = sbr.rel (%p159) target = $region24
    $region23: #{llama_decoder_layer.7} parent=5 // pred_region
      // Predicated region
      $region25: #{llama_decoder_layer.7} parent=23 // pred_check
        %p162 = pneg %p43
      $region26: #{llama_decoder_layer.7} parent=23 // pred_check_branch
        %164 = sbr.rel (%p162) target = $region28
      $region27: #{llama_decoder_layer.7} parent=23 // pred_region
        %p165 = scmp.lt.s32.totalorder %s17, 0
        %s166 = scalar_select %p165, %s17, 0
        %p167 = scmp.lt.s32.totalorder %s16, 3
        %s168 = scalar_select %p167, %s16, 3
        %s169 = smul.addr %s166, 4
        %s170 = sadd.s32 %s168, %s169
        %s171 = smul.addr %s170, 8
        %s172 = scalar_lea.vmem %s0, %s171
      $region28: #{llama_decoder_layer.7} parent=23 // pred_fallthru
        _
    $region24: #{llama_decoder_layer.7} parent=5 // pred_fallthru
      _
    %p173 = scmp.le.s32.totalorder 1, %s9
    %p174 = scmp.lt.s32.totalorder %s9, 5
    %p175 = pnand %p173, %p174
    %p176 = pneg %p175
    // Predicated region
    $region29: #{llama_decoder_layer.7} parent=5 // pred_check
      _
    $region30: #{llama_decoder_layer.7} parent=5 // pred_check_branch
      %178 = sbr.rel (%p175) target = $region32
    $region31: #{llama_decoder_layer.7} parent=5 // pred_region
      %s179 = ssub.s32 %s9, 1
      %p180 = scmp.lt.s32.totalorder %s19, 0
      %s181 = scalar_select %p180, %s19, 0
      %p182 = scmp.lt.s32.totalorder %s18, 3
      %s183 = scalar_select %p182, %s18, 3
      %s184 = smul.addr %s181, 4
      %s185 = sadd.s32 %s183, %s184
      %s186 = smul.addr %s185, 8
      %s187 = scalar_lea.vmem %s0, %s186
      %p188 = pneg %p49
      %p189 = pneg %p46
      %p190 = scmp.lt.s32.totalorder %s19, 0
      %s191 = scalar_select %p190, %s19, 0
      %s192 = smul.addr %s191, 8
      %s193 = scalar_lea.vmem %s1, %s192
      %p194 = pneg %p75
      %p195 = pneg %p72
      %p196 = scmp.lt.s32.totalorder %s19, 0
      %s197 = scalar_select %p196, %s19, 0
      %s198 = smul.addr %s197, 8
      %s199 = scalar_lea.vmem %s2, %s198
      %p200 = pneg %p101
      %p201 = pneg %p98
      %p202 = pneg %p129
      %p203 = pneg %p126
      %p204 = scmp.lt.s32.totalorder %s19, 0
      %s205 = scalar_select %p204, %s19, 0
      %p206 = scmp.lt.s32.totalorder %s18, 3
      %s207 = scalar_select %p206, %s18, 3
      %s208 = smul.addr %s205, 4
      %s209 = sadd.s32 %s207, %s208
      %s210 = smul.addr %s209, 4
      %s211 = scalar_lea.vmem %s3, %s210
      %p212 = scmp.lt.s32.totalorder %s19, 0
      %s213 = scalar_select %p212, %s19, 0
      %p214 = scmp.lt.s32.totalorder %s18, 3
      %s215 = scalar_select %p214, %s18, 3
      %s216 = smul.addr %s213, 4
      %s217 = sadd.s32 %s215, %s216
      %s218 = smul.addr %s217, 8
      %s219 = scalar_lea.vmem %s0, %s218
      %p220 = scmp.lt.s32.totalorder %s19, 0
      %s221 = scalar_select %p220, %s19, 0
      %s222 = smul.addr %s221, 8
      %s223 = scalar_lea.vmem %s1, %s222
      %p224 = scmp.lt.s32.totalorder %s19, 0
      %s225 = scalar_select %p224, %s19, 0
      %s226 = smul.addr %s225, 8
      %s227 = scalar_lea.vmem %s2, %s226
      %p228 = scmp.lt.s32.totalorder %s19, 0
      %s229 = scalar_select %p228, %s19, 0
      %p230 = scmp.lt.s32.totalorder %s18, 3
      %s231 = scalar_select %p230, %s18, 3
      %s232 = smul.addr %s229, 4
      %s233 = sadd.s32 %s231, %s232
      %s234 = smul.addr %s233, 4
      %s235 = scalar_lea.vmem %s3, %s234
      %v236 = vld [vmem:[%s219] sm:$0xff]
      %v237 = vld [vmem:[%s223] sm:$0xff]
      %v238 = vmul.f32 %v236, %v237
      %239 = vrot.lane.b32.xlu0 %v236, 64
      %v240 = vpop.permute.xlu0 %239
      %v241 = vld [vmem:[%s227] sm:$0xff]
      %v242 = vmul.f32 %v240, %v241
      %v243 = vadd.f32 %v238, %v242
      %v244 = vpack.c.bf16 %v243, %v243
      %245 = vst [vmem:[%s235] sm:$0xf] %v244
      %p246 = scmp.lt.s32.totalorder %s19, 0
      %s247 = scalar_select %p246, %s19, 0
      %p248 = scmp.lt.s32.totalorder %s18, 3
      %s249 = scalar_select %p248, %s18, 3
      %s250 = smul.addr %s247, 4
      %s251 = sadd.s32 %s249, %s250
      %s252 = smul.addr %s251, 4
      %s253 = scalar_lea.vmem %s3, %s252
      // Predicated region
      $region33: #{llama_decoder_layer.7} parent=31 // pred_check
        %p254 = pneg %p126
      $region34: #{llama_decoder_layer.7} parent=31 // pred_check_branch
        %256 = sbr.rel (%p254) target = $region36
      $region35: #{llama_decoder_layer.7} parent=31 // pred_region
        _
      $region36: #{llama_decoder_layer.7} parent=31 // pred_fallthru
        _
    $region32: #{llama_decoder_layer.7} parent=5 // pred_fallthru
      _
    %p257 = scmp.le.s32.totalorder 2, %s9
    // Predicated region
    $region37: #{llama_decoder_layer.7} parent=5 // pred_check
      %p258 = pneg %p257
    $region38: #{llama_decoder_layer.7} parent=5 // pred_check_branch
      %260 = sbr.rel (%p258) target = $region40
    $region39: #{llama_decoder_layer.7} parent=5 // pred_region
      %s261 = ssub.s32 %s9, 2
      // Predicated region
      $region41: #{llama_decoder_layer.7} parent=39 // pred_check
        %p262 = pneg %p132
      $region42: #{llama_decoder_layer.7} parent=39 // pred_check_branch
        %264 = sbr.rel (%p262) target = $region44
      $region43: #{llama_decoder_layer.7} parent=39 // pred_region
        %p265 = scmp.lt.s32.totalorder %s21, 0
        %s266 = scalar_select %p265, %s21, 0
        %p267 = scmp.lt.s32.totalorder %s20, 3
        %s268 = scalar_select %p267, %s20, 3
        %s269 = smul.addr %s266, 4
        %s270 = sadd.s32 %s268, %s269
        %s271 = smul.addr %s270, 4
        %s272 = scalar_lea.vmem %s3, %s271
      $region44: #{llama_decoder_layer.7} parent=39 // pred_fallthru
        _
    $region40: #{llama_decoder_layer.7} parent=5 // pred_fallthru
      _
  $region6: #{llama_decoder_layer.7} parent=0 // loop_footer
    %s13 = sadd.s32 1, %s9
  $region7: #{llama_decoder_layer.7} parent=0 // loop_footer_branch
    %8 = sbr.rel target = $region3
  $region8: #{llama_decoder_layer.7} parent=0 // loop_exit
    _

// kernel: llama_decoder_layer.8
$region0: #{llama_decoder_layer.8}
  #allocation0 [shape = 'u32[]', space=smem, size = 0x4, offset = 0x4, fixed_abs, tag = 'smem constant byte address 0x4 - core index']
  #allocation1 [shape = 'u32[144,128]{1,0:T(1,128)}', space=vmem, size = 0x12000, scoped, tag = 'internal scratch']
  #allocation2 [shape = 'f32[8,1]{1,0:T(8,128)}', space=vmem, size = 0x1000, scoped, tag = 'scratch operand']
  #allocation3 [shape = 'f32[8,1]{1,0:T(8,128)}', space=vmem, size = 0x1000, scoped, tag = 'scratch operand']
  #allocation4 [shape = 'f32[8,128]{1,0:T(8,128)}', space=vmem, size = 0x1000, scoped, tag = 'scratch operand']
  #allocation5 [shape = 'bf16[8,128]{1,0:T(8,128)(2,1)}', space=vmem, size = 0x800, scoped, tag = 'scratch operand']
  %s0 = inlined_call_operand.vmem [shape: bf16[8,512], index: 0, kind: input, shape index: {}]
  %s1 = inlined_call_operand.vmem [shape: bf16[8,512], index: 1, kind: input, shape index: {}]
  %s2 = inlined_call_operand.vmem [shape: bf16[8,512], index: 2, kind: input, shape index: {}]
  %s3 = inlined_call_operand.vmem [shape: f32[8,128], index: 3, kind: input, shape index: {}]
  %s4 = inlined_call_operand.vmem [shape: f32[8,128], index: 4, kind: input, shape index: {}]
  %s5 = inlined_call_operand.vmem [shape: bf16[8,512], index: 5, kind: output, shape index: {}]
  %s6 = sld [smem:[#allocation0]]
  $region65: #{llama_decoder_layer.8} parent=0
    _
  %s8 = ssub.s32 1, %s6
  %s9 = scalar_select 0, %s8, %s6
  loop: start=0, step=1, limit=6
  $region2: #{llama_decoder_layer.8} parent=0 // loop_pre_header
    _
  $region3: #{llama_decoder_layer.8} parent=0 // loop_header
    %s11 = sphi 0, %s15
    %p12 = scmp.ge.s32.totalorder %s11, 6
    %s18 = sphi 0, %s37
    %s19 = sphi 0, %s33
    %s20 = sphi 0, %s29
    %s21 = sphi 0, %s18
    %s22 = sphi 0, %s19
    %s23 = sphi 0, %s20
    %s24 = sphi 0, %s21
    %s25 = sphi 0, %s22
    %s26 = sphi 0, %s23
    %s42 = sphi 0, %s44
    %s45 = sphi 0, %s42
    %s46 = sphi 0, %s45
    %s62 = sphi 0, %s46
    %s74 = sphi 0, %s76
    %s77 = sphi 0, %s74
    %s78 = sphi 0, %s77
    %s94 = sphi 0, %s78
    %s106 = sphi 0, %s108
    %s109 = sphi 0, %s106
    %s110 = sphi 0, %s109
    %s126 = sphi 0, %s110
    %s132 = sphi 0, %s134
    %s135 = sphi 0, %s132
    %s136 = sphi 0, %s135
    %s152 = sphi 0, %s136
    %s158 = sphi 0, %s160
    %s161 = sphi 0, %s158
    %s162 = sphi 0, %s161
    %s178 = sphi 0, %s162
    %s186 = sphi 0, %s188
    %s189 = sphi 0, %s186
    %s190 = sphi 0, %s189
    %s206 = sphi 0, %s190
  $region4: #{llama_decoder_layer.8} parent=0 // loop_header_branch
    %14 = sbr.rel (%p12) target = $region8
  $region5: #{llama_decoder_layer.8} parent=0 // loop_body
    %s16 = ssub.s32 %s11, 1
    %s17 = ssub.s32 %s11, 2
    %s27 = sadd.s32 1, %s20
    %p28 = scmp.ge.s32.totalorder %s27, 1
    %s29 = scalar_select %p28, 0, %s27
    %s30 = sadd.s32 1, %s19
    %s31 = scalar_select %p28, %s30, %s19
    %p32 = scmp.ge.s32.totalorder %s31, 1
    %s33 = scalar_select %p32, 0, %s31
    %s34 = sadd.s32 1, %s18
    %s35 = scalar_select %p32, %s34, %s18
    %p36 = scmp.ge.s32.totalorder %s35, 4
    %s37 = scalar_select %p36, 0, %s35
    %s38 = ssub.s32 %s19, %s33
    %s39 = ssub.s32 %s18, %s37
    %s40 = sor.u32 %s38, %s39
    %p41 = scmp.eq.s32.totalorder %s40, 0
    %s43 = sadd.s32 %s42, 1
    %s44 = scalar_select %p41, %s42, %s43
    %p47 = pneg %p41
    %p48 = scmp.eq.s32.totalorder %s11, 3
    %p49 = por %p47, %p48
    %p50 = scmp.ne.s32.totalorder %s42, %s45
    %p51 = scmp.eq.s32.totalorder %s11, 0
    %p52 = por %p50, %p51
    %p53 = scmp.ne.s32.totalorder %s42, %s45
    %p54 = scmp.eq.s32.totalorder %s16, 3
    %p55 = por %p53, %p54
    %p56 = scmp.ne.s32.totalorder %s45, %s46
    %p57 = scmp.eq.s32.totalorder %s16, 0
    %p58 = por %p56, %p57
    %p59 = scmp.ne.s32.totalorder %s45, %s46
    %p60 = scmp.eq.s32.totalorder %s17, 3
    %p61 = por %p59, %p60
    %p63 = scmp.ne.s32.totalorder %s46, %s62
    %p64 = scmp.eq.s32.totalorder %s17, 0
    %p65 = por %p63, %p64
    %p66 = scmp.lt.s32.totalorder %s20, %s19
    %s67 = scalar_select %p66, %s20, %s19
    %p68 = scmp.lt.s32.totalorder %s29, %s33
    %s69 = scalar_select %p68, %s29, %s33
    %s70 = ssub.s32 %s67, %s69
    %s71 = ssub.s32 %s18, %s37
    %s72 = sor.u32 %s70, %s71
    %p73 = scmp.eq.s32.totalorder %s72, 0
    %s75 = sadd.s32 %s74, 1
    %s76 = scalar_select %p73, %s74, %s75
    %p79 = pneg %p73
    %p80 = scmp.eq.s32.totalorder %s11, 3
    %p81 = por %p79, %p80
    %p82 = scmp.ne.s32.totalorder %s74, %s77
    %p83 = scmp.eq.s32.totalorder %s11, 0
    %p84 = por %p82, %p83
    %p85 = scmp.ne.s32.totalorder %s74, %s77
    %p86 = scmp.eq.s32.totalorder %s16, 3
    %p87 = por %p85, %p86
    %p88 = scmp.ne.s32.totalorder %s77, %s78
    %p89 = scmp.eq.s32.totalorder %s16, 0
    %p90 = por %p88, %p89
    %p91 = scmp.ne.s32.totalorder %s77, %s78
    %p92 = scmp.eq.s32.totalorder %s17, 3
    %p93 = por %p91, %p92
    %p95 = scmp.ne.s32.totalorder %s78, %s94
    %p96 = scmp.eq.s32.totalorder %s17, 0
    %p97 = por %p95, %p96
    %p98 = scmp.lt.s32.totalorder %s20, %s19
    %s99 = scalar_select %p98, %s20, %s19
    %p100 = scmp.lt.s32.totalorder %s29, %s33
    %s101 = scalar_select %p100, %s29, %s33
    %s102 = ssub.s32 %s99, %s101
    %s103 = ssub.s32 %s18, %s37
    %s104 = sor.u32 %s102, %s103
    %p105 = scmp.eq.s32.totalorder %s104, 0
    %s107 = sadd.s32 %s106, 1
    %s108 = scalar_select %p105, %s106, %s107
    %p111 = pneg %p105
    %p112 = scmp.eq.s32.totalorder %s11, 3
    %p113 = por %p111, %p112
    %p114 = scmp.ne.s32.totalorder %s106, %s109
    %p115 = scmp.eq.s32.totalorder %s11, 0
    %p116 = por %p114, %p115
    %p117 = scmp.ne.s32.totalorder %s106, %s109
    %p118 = scmp.eq.s32.totalorder %s16, 3
    %p119 = por %p117, %p118
    %p120 = scmp.ne.s32.totalorder %s109, %s110
    %p121 = scmp.eq.s32.totalorder %s16, 0
    %p122 = por %p120, %p121
    %p123 = scmp.ne.s32.totalorder %s109, %s110
    %p124 = scmp.eq.s32.totalorder %s17, 3
    %p125 = por %p123, %p124
    %p127 = scmp.ne.s32.totalorder %s110, %s126
    %p128 = scmp.eq.s32.totalorder %s17, 0
    %p129 = por %p127, %p128
    %s130 = ssub.s32 %s19, %s33
    %p131 = scmp.eq.s32.totalorder %s130, 0
    %s133 = sadd.s32 %s132, 1
    %s134 = scalar_select %p131, %s132, %s133
    %p137 = pneg %p131
    %p138 = scmp.eq.s32.totalorder %s11, 3
    %p139 = por %p137, %p138
    %p140 = scmp.ne.s32.totalorder %s132, %s135
    %p141 = scmp.eq.s32.totalorder %s11, 0
    %p142 = por %p140, %p141
    %p143 = scmp.ne.s32.totalorder %s132, %s135
    %p144 = scmp.eq.s32.totalorder %s16, 3
    %p145 = por %p143, %p144
    %p146 = scmp.ne.s32.totalorder %s135, %s136
    %p147 = scmp.eq.s32.totalorder %s16, 0
    %p148 = por %p146, %p147
    %p149 = scmp.ne.s32.totalorder %s135, %s136
    %p150 = scmp.eq.s32.totalorder %s17, 3
    %p151 = por %p149, %p150
    %p153 = scmp.ne.s32.totalorder %s136, %s152
    %p154 = scmp.eq.s32.totalorder %s17, 0
    %p155 = por %p153, %p154
    %s156 = ssub.s32 %s19, %s33
    %p157 = scmp.eq.s32.totalorder %s156, 0
    %s159 = sadd.s32 %s158, 1
    %s160 = scalar_select %p157, %s158, %s159
    %p163 = pneg %p157
    %p164 = scmp.eq.s32.totalorder %s11, 3
    %p165 = por %p163, %p164
    %p166 = scmp.ne.s32.totalorder %s158, %s161
    %p167 = scmp.eq.s32.totalorder %s11, 0
    %p168 = por %p166, %p167
    %p169 = scmp.ne.s32.totalorder %s158, %s161
    %p170 = scmp.eq.s32.totalorder %s16, 3
    %p171 = por %p169, %p170
    %p172 = scmp.ne.s32.totalorder %s161, %s162
    %p173 = scmp.eq.s32.totalorder %s16, 0
    %p174 = por %p172, %p173
    %p175 = scmp.ne.s32.totalorder %s161, %s162
    %p176 = scmp.eq.s32.totalorder %s17, 3
    %p177 = por %p175, %p176
    %p179 = scmp.ne.s32.totalorder %s162, %s178
    %p180 = scmp.eq.s32.totalorder %s17, 0
    %p181 = por %p179, %p180
    %s182 = ssub.s32 %s19, %s33
    %s183 = ssub.s32 %s18, %s37
    %s184 = sor.u32 %s182, %s183
    %p185 = scmp.eq.s32.totalorder %s184, 0
    %s187 = sadd.s32 %s186, 1
    %s188 = scalar_select %p185, %s186, %s187
    %p191 = pneg %p185
    %p192 = scmp.eq.s32.totalorder %s11, 3
    %p193 = por %p191, %p192
    %p194 = scmp.ne.s32.totalorder %s186, %s189
    %p195 = scmp.eq.s32.totalorder %s11, 0
    %p196 = por %p194, %p195
    %p197 = scmp.ne.s32.totalorder %s186, %s189
    %p198 = scmp.eq.s32.totalorder %s16, 3
    %p199 = por %p197, %p198
    %p200 = scmp.ne.s32.totalorder %s189, %s190
    %p201 = scmp.eq.s32.totalorder %s16, 0
    %p202 = por %p200, %p201
    %p203 = scmp.ne.s32.totalorder %s189, %s190
    %p204 = scmp.eq.s32.totalorder %s17, 3
    %p205 = por %p203, %p204
    %p207 = scmp.ne.s32.totalorder %s190, %s206
    %p208 = scmp.eq.s32.totalorder %s17, 0
    %p209 = por %p207, %p208
    %p210 = scmp.le.s32.totalorder 1, %s11
    %p211 = scmp.lt.s32.totalorder %s11, 5
    %p212 = pnand %p210, %p211
    %p213 = pneg %p212
    // Predicated region
    $region9: #{llama_decoder_layer.8} parent=5 // pred_check
      _
    $region10: #{llama_decoder_layer.8} parent=5 // pred_check_branch
      %215 = sbr.rel (%p212) target = $region12
    $region11: #{llama_decoder_layer.8} parent=5 // pred_region
      %s216 = ssub.s32 %s11, 1
      // Predicated region
      $region13: #{llama_decoder_layer.8} parent=11 // pred_check
        %p217 = pneg %p148
      $region14: #{llama_decoder_layer.8} parent=11 // pred_check_branch
        %219 = sbr.rel (%p217) target = $region16
      $region15: #{llama_decoder_layer.8} parent=11 // pred_region
        %p220 = scmp.lt.s32.totalorder %s22, 0
        %s221 = scalar_select %p220, %s22, 0
        %s222 = smul.addr %s221, 8
        %s223 = scalar_lea.vmem %s3, %s222
      $region16: #{llama_decoder_layer.8} parent=11 // pred_fallthru
        _
      // Predicated region
      $region17: #{llama_decoder_layer.8} parent=11 // pred_check
        %p224 = pneg %p174
      $region18: #{llama_decoder_layer.8} parent=11 // pred_check_branch
        %226 = sbr.rel (%p224) target = $region20
      $region19: #{llama_decoder_layer.8} parent=11 // pred_region
        %p227 = scmp.lt.s32.totalorder %s22, 0
        %s228 = scalar_select %p227, %s22, 0
        %s229 = smul.addr %s228, 8
        %s230 = scalar_lea.vmem %s4, %s229
      $region20: #{llama_decoder_layer.8} parent=11 // pred_fallthru
        _
    $region12: #{llama_decoder_layer.8} parent=5 // pred_fallthru
      _
    %p231 = scmp.lt.s32.totalorder %s11, 4
    // Predicated region
    $region21: #{llama_decoder_layer.8} parent=5 // pred_check
      %p232 = pneg %p231
    $region22: #{llama_decoder_layer.8} parent=5 // pred_check_branch
      %234 = sbr.rel (%p232) target = $region24
    $region23: #{llama_decoder_layer.8} parent=5 // pred_region
      // Predicated region
      $region25: #{llama_decoder_layer.8} parent=23 // pred_check
        %p235 = pneg %p52
      $region26: #{llama_decoder_layer.8} parent=23 // pred_check_branch
        %237 = sbr.rel (%p235) target = $region28
      $region27: #{llama_decoder_layer.8} parent=23 // pred_region
        %p238 = scmp.lt.s32.totalorder %s19, 0
        %s239 = scalar_select %p238, %s19, 0
        %p240 = scmp.lt.s32.totalorder %s18, 3
        %s241 = scalar_select %p240, %s18, 3
        %s242 = smul.addr %s239, 4
        %s243 = sadd.s32 %s241, %s242
        %s244 = smul.addr %s243, 4
        %s245 = scalar_lea.vmem %s0, %s244
      $region28: #{llama_decoder_layer.8} parent=23 // pred_fallthru
        _
      // Predicated region
      $region29: #{llama_decoder_layer.8} parent=23 // pred_check
        %p246 = pneg %p84
      $region30: #{llama_decoder_layer.8} parent=23 // pred_check_branch
        %248 = sbr.rel (%p246) target = $region32
      $region31: #{llama_decoder_layer.8} parent=23 // pred_region
        %p249 = scmp.lt.s32.totalorder %s20, %s19
        %s250 = scalar_select %p249, %s20, %s19
        %p251 = scmp.lt.s32.totalorder %s250, 0
        %s252 = scalar_select %p251, %s250, 0
        %p253 = scmp.lt.s32.totalorder %s18, 3
        %s254 = scalar_select %p253, %s18, 3
        %s255 = smul.addr %s252, 4
        %s256 = sadd.s32 %s254, %s255
        %s257 = smul.addr %s256, 4
        %s258 = scalar_lea.vmem %s1, %s257
        %p259 = scmp.lt.s32.totalorder %s20, %s19
        %s260 = scalar_select %p259, %s20, %s19
      $region32: #{llama_decoder_layer.8} parent=23 // pred_fallthru
        _
      // Predicated region
      $region33: #{llama_decoder_layer.8} parent=23 // pred_check
        %p261 = pneg %p116
      $region34: #{llama_decoder_layer.8} parent=23 // pred_check_branch
        %263 = sbr.rel (%p261) target = $region36
      $region35: #{llama_decoder_layer.8} parent=23 // pred_region
        %p264 = scmp.lt.s32.totalorder %s20, %s19
        %s265 = scalar_select %p264, %s20, %s19
        %p266 = scmp.lt.s32.totalorder %s265, 0
        %s267 = scalar_select %p266, %s265, 0
        %p268 = scmp.lt.s32.totalorder %s18, 3
        %s269 = scalar_select %p268, %s18, 3
        %s270 = smul.addr %s267, 4
        %s271 = sadd.s32 %s269, %s270
        %s272 = smul.addr %s271, 4
        %s273 = scalar_lea.vmem %s2, %s272
        %p274 = scmp.lt.s32.totalorder %s20, %s19
        %s275 = scalar_select %p274, %s20, %s19
      $region36: #{llama_decoder_layer.8} parent=23 // pred_fallthru
        _
    $region24: #{llama_decoder_layer.8} parent=5 // pred_fallthru
      _
    %p276 = scmp.le.s32.totalorder 1, %s11
    %p277 = scmp.lt.s32.totalorder %s11, 5
    %p278 = pnand %p276, %p277
    %p279 = pneg %p278
    // Predicated region
    $region37: #{llama_decoder_layer.8} parent=5 // pred_check
      _
    $region38: #{llama_decoder_layer.8} parent=5 // pred_check_branch
      %281 = sbr.rel (%p278) target = $region40
    $region39: #{llama_decoder_layer.8} parent=5 // pred_region
      %s282 = ssub.s32 %s11, 1
      %p283 = scmp.lt.s32.totalorder %s22, 0
      %s284 = scalar_select %p283, %s22, 0
      %p285 = scmp.lt.s32.totalorder %s21, 3
      %s286 = scalar_select %p285, %s21, 3
      %s287 = smul.addr %s284, 4
      %s288 = sadd.s32 %s286, %s287
      %s289 = smul.addr %s288, 4
      %s290 = scalar_lea.vmem %s0, %s289
      %p291 = pneg %p58
      %p292 = pneg %p55
      %p293 = scmp.lt.s32.totalorder %s23, %s22
      %s294 = scalar_select %p293, %s23, %s22
      %p295 = scmp.lt.s32.totalorder %s294, 0
      %s296 = scalar_select %p295, %s294, 0
      %p297 = scmp.lt.s32.totalorder %s21, 3
      %s298 = scalar_select %p297, %s21, 3
      %s299 = smul.addr %s296, 4
      %s300 = sadd.s32 %s298, %s299
      %s301 = smul.addr %s300, 4
      %s302 = scalar_lea.vmem %s1, %s301
      %p303 = pneg %p90
      %p304 = pneg %p87
      %p305 = scmp.lt.s32.totalorder %s23, %s22
      %s306 = scalar_select %p305, %s23, %s22
      %p307 = scmp.lt.s32.totalorder %s306, 0
      %s308 = scalar_select %p307, %s306, 0
      %p309 = scmp.lt.s32.totalorder %s21, 3
      %s310 = scalar_select %p309, %s21, 3
      %s311 = smul.addr %s308, 4
      %s312 = sadd.s32 %s310, %s311
      %s313 = smul.addr %s312, 4
      %s314 = scalar_lea.vmem %s2, %s313
      %p315 = pneg %p122
      %p316 = pneg %p119
      %p317 = scmp.lt.s32.totalorder %s22, 0
      %s318 = scalar_select %p317, %s22, 0
      %s319 = smul.addr %s318, 8
      %s320 = scalar_lea.vmem %s3, %s319
      %p321 = pneg %p148
      %p322 = pneg %p145
      %p323 = scmp.lt.s32.totalorder %s22, 0
      %s324 = scalar_select %p323, %s22, 0
      %s325 = smul.addr %s324, 8
      %s326 = scalar_lea.vmem %s4, %s325
      %p327 = pneg %p174
      %p328 = pneg %p171
      %p329 = pneg %p202
      %p330 = pneg %p199
      %p331 = scmp.lt.s32.totalorder %s22, 0
      %s332 = scalar_select %p331, %s22, 0
      %p333 = scmp.lt.s32.totalorder %s21, 3
      %s334 = scalar_select %p333, %s21, 3
      %s335 = smul.addr %s332, 4
      %s336 = sadd.s32 %s334, %s335
      %s337 = smul.addr %s336, 4
      %s338 = scalar_lea.vmem %s5, %s337
      %p339 = scmp.lt.s32.totalorder %s22, 0
      %s340 = scalar_select %p339, %s22, 0
      %p341 = scmp.lt.s32.totalorder %s21, 3
      %s342 = scalar_select %p341, %s21, 3
      %s343 = smul.addr %s340, 4
      %s344 = sadd.s32 %s342, %s343
      %s345 = smul.addr %s344, 4
      %s346 = scalar_lea.vmem %s0, %s345
      %p347 = scmp.lt.s32.totalorder %s23, %s22
      %s348 = scalar_select %p347, %s23, %s22
      %p349 = scmp.lt.s32.totalorder %s348, 0
      %s350 = scalar_select %p349, %s348, 0
      %p351 = scmp.lt.s32.totalorder %s21, 3
      %s352 = scalar_select %p351, %s21, 3
      %s353 = smul.addr %s350, 4
      %s354 = sadd.s32 %s352, %s353
      %s355 = smul.addr %s354, 4
      %s356 = scalar_lea.vmem %s1, %s355
      %p357 = scmp.lt.s32.totalorder %s23, %s22
      %s358 = scalar_select %p357, %s23, %s22
      %p359 = scmp.lt.s32.totalorder %s23, %s22
      %s360 = scalar_select %p359, %s23, %s22
      %p361 = scmp.lt.s32.totalorder %s360, 0
      %s362 = scalar_select %p361, %s360, 0
      %p363 = scmp.lt.s32.totalorder %s21, 3
      %s364 = scalar_select %p363, %s21, 3
      %s365 = smul.addr %s362, 4
      %s366 = sadd.s32 %s364, %s365
      %s367 = smul.addr %s366, 4
      %s368 = scalar_lea.vmem %s2, %s367
      %p369 = scmp.lt.s32.totalorder %s23, %s22
      %s370 = scalar_select %p369, %s23, %s22
      %p371 = scmp.lt.s32.totalorder %s22, 0
      %s372 = scalar_select %p371, %s22, 0
      %s373 = smul.addr %s372, 8
      %s374 = scalar_lea.vmem %s3, %s373
      %p375 = scmp.lt.s32.totalorder %s22, 0
      %s376 = scalar_select %p375, %s22, 0
      %s377 = smul.addr %s376, 8
      %s378 = scalar_lea.vmem %s4, %s377
      %p379 = scmp.lt.s32.totalorder %s22, 0
      %s380 = scalar_select %p379, %s22, 0
      %p381 = scmp.lt.s32.totalorder %s21, 3
      %s382 = scalar_select %p381, %s21, 3
      %s383 = smul.addr %s380, 4
      %s384 = sadd.s32 %s382, %s383
      %s385 = smul.addr %s384, 4
      %s386 = scalar_lea.vmem %s5, %s385
      %p388 = scmp.eq.s32.totalorder %s23, 0
      // Predicated region
      $region41: #{llama_decoder_layer.8} parent=39 // pred_check
        %p389 = pneg %p388
      $region42: #{llama_decoder_layer.8} parent=39 // pred_check_branch
        %391 = sbr.rel (%p389) target = $region44
      $region43: #{llama_decoder_layer.8} parent=39 // pred_region
        %vm392 = vcmask 7168
        %393 = vst.msk [vmem:[#allocation2] sm:$0xff] %vm392, -inf
        %394 = vst.msk [vmem:[#allocation3] sm:$0xff] %vm392, 0.0
        %395 = vst [vmem:[#allocation4] sm:$0xff] 0.0
        %v396 = vld [vmem:[%s346] sm:$0xf]
        %v397 = vunpack.c.l.bf16 %v396
        %v398 = vld [vmem:[%s374] sm:$0xff]
        %v399 = vmul.f32 %v397, %v398
        %400 = vrot.lane.b32.xlu0 %v397, 64
        %v401 = vpop.permute.xlu0 %400
        %v402 = vld [vmem:[%s378] sm:$0xff]
        %v403 = vmul.f32 %v401, %v402
        %v404 = vadd.f32 %v399, %v403
        %v405 = vmul.f32 %v404, 0.088388346
        %v406 = vpack.c.bf16 %v405, %v405
        %407 = vst [vmem:[#allocation5] sm:$0xf] %v406
      $region44: #{llama_decoder_layer.8} parent=39 // pred_fallthru
        _
      %p408 = scmp.le.s32.totalorder %s23, %s22
      // Predicated region
      $region45: #{llama_decoder_layer.8} parent=39 // pred_check
        %p409 = pneg %p408
      $region46: #{llama_decoder_layer.8} parent=39 // pred_check_branch
        %411 = sbr.rel (%p409) target = $region48
      $region47: #{llama_decoder_layer.8} parent=39 // pred_region
        %v412 = vld [vmem:[#allocation5] sm:$0xf]
        %v413 = vld [vmem:[%s356] sm:$0xf]
        %414 = vmatprep.subr.bf16.mxu0 0
        %415 = vmatpush1.bf16.xpose.msra.mxu0 0
        %416 = vmatprep.subr.bf16.mxu0 0
        %417 = vmatpush1.bf16.xpose.msra.mxu0 0
        %418 = vmatprep.subr.bf16.mxu0 0
        %419 = vmatpush1.bf16.xpose.msra.mxu0 0
        %420 = vmatprep.subr.bf16.mxu0 0
        %421 = vmatpush1.bf16.xpose.msra.mxu0 0
        %422 = vmatprep.subr.bf16.mxu0 0
        %423 = vmatpush1.bf16.xpose.msra.mxu0 0
        %424 = vmatprep.subr.bf16.mxu0 0
        %425 = vmatpush1.bf16.xpose.msra.mxu0 0
        %426 = vmatprep.subr.bf16.mxu0 0
        %427 = vmatpush1.bf16.xpose.msra.mxu0 0
        %428 = vmatprep.subr.bf16.mxu0 0
        %429 = vmatpush1.bf16.xpose.msra.mxu0 %v413
        %430 = vmatprep.subr.bf16.mxu0 0
        %431 = vmatpush2.bf16.xpose.msra.mxu0 0
        %432 = vmatprep.subr.bf16.mxu0 0
        %433 = vmatpush2.bf16.xpose.msra.mxu0 0
        %434 = vmatprep.subr.bf16.mxu0 0
        %435 = vmatpush2.bf16.xpose.msra.mxu0 0
        %436 = vmatprep.subr.bf16.mxu0 0
        %437 = vmatpush2.bf16.xpose.msra.mxu0 0
        %438 = vmatprep.subr.bf16.mxu0 0
        %439 = vmatpush2.bf16.xpose.msra.mxu0 0
        %440 = vmatprep.subr.bf16.mxu0 0
        %441 = vmatpush2.bf16.xpose.msra.mxu0 0
        %442 = vmatprep.subr.bf16.mxu0 0
        %443 = vmatpush2.bf16.xpose.msra.mxu0 0
        %444 = vmatprep.subr.bf16.mxu0 0
        %445 = vmatpush2.bf16.xpose.msra.mxu0 0
        %446 = vmatprep.mubr.bf16.mxu0 0
        %447 = vmatmul.mubr.bf16.gmra.mxu0 %v412
        %v448 = vpop.f32.mrf.mxu0
        %v449 = vadd.f32 0.0, %v448
        %v450 = vpop.f32.mrf.mxu0
        %v451 = vpop.f32.mrf.mxu0
        %v452 = vpop.f32.mrf.mxu0
        %453 = vdwg.mxu0
        %s454 = smul.u32 %s22, 8
        %v455 = vlaneseq
        %v456 = vshrl.u32 %v455, 7
        %v457 = vstv %s454
        %v458 = vadd.s32 %v457, %v456
        %s459 = smul.u32 %s23, 8
        %v460 = vlaneseq
        %v461 = vand.u32 %v460, 127
        %v462 = vstv %s459
        %v463 = vadd.s32 %v462, %v461
        %vm464 = vcmp.ge.s32.totalorder %v458, %v463
        %v465 = vsel %vm464, %v449, -1e+30
        %v466 = vld [vmem:[#allocation2] sm:$0xff]
        %vm467 = vcmask 64512
        %v468 = vsel %vm467, %v465, -inf
        %469 = vmax.xlane.f32.xlu0 %v468
        %v470 = vpop.xlane.xlu0 %469
        %v471 = vmax.f32 %v466, %v470
        %v472 = vsub.f32 %v466, %v471
        %v473 = vmul.f32 %v472, 1.442695
        %v474 = vpow.pop %v473
        %476 = vset.pattern.permute.xlu0 0
        %477 = vperm.xlu0 %476, %v471
        %v478 = vpop.permute.xlu0 %477
        %v480 = vsub.f32 %v465, %v478
        %v481 = vmul.f32 %v480, 1.442695
        %v482 = vpow.pop %v481
        %v483 = vld [vmem:[#allocation3] sm:$0xff]
        %v484 = vmul.f32 %v474, %v483
        %v485 = vsel %vm467, %v482, 0.0
        %486 = vadd.xlane.f32.xlu0 %v485
        %v487 = vpop.xlane.xlu0 %486
        %v488 = vadd.f32 %v484, %v487
        %vm489 = vcmask 7168
        %490 = vst.msk [vmem:[#allocation3] sm:$0xff] %vm489, %v488
        %v491 = vld [vmem:[#allocation4] sm:$0xff]
        %493 = vset.pattern.permute.xlu0 0
        %494 = vperm.xlu0 %493, %v474
        %v495 = vpop.permute.xlu0 %494
        %v497 = vmul.f32 %v495, %v491
        %v498 = vpack.c.bf16 %v482, %v482
        %v499 = vld [vmem:[%s368] sm:$0xf]
        %v501 = vsel %vm467, %v498, 0
        %vm503 = vcmask 1043456
        %v505 = vsel %vm503, %v499, 0
        %507 = vmatprep.subr.bf16.mxu0 0
        %508 = vmatpush1.bf16.msra.mxu0 0
        %509 = vmatprep.subr.bf16.mxu0 0
        %510 = vmatpush1.bf16.msra.mxu0 0
        %511 = vmatprep.subr.bf16.mxu0 0
        %512 = vmatpush1.bf16.msra.mxu0 0
        %513 = vmatprep.subr.bf16.mxu0 0
        %514 = vmatpush1.bf16.msra.mxu0 0
        %515 = vmatprep.subr.bf16.mxu0 0
        %516 = vmatpush1.bf16.msra.mxu0 0
        %517 = vmatprep.subr.bf16.mxu0 0
        %518 = vmatpush1.bf16.msra.mxu0 0
        %519 = vmatprep.subr.bf16.mxu0 0
        %520 = vmatpush1.bf16.msra.mxu0 0
        %521 = vmatprep.subr.bf16.mxu0 0
        %522 = vmatpush1.bf16.msra.mxu0 %v505
        %523 = vmatprep.subr.bf16.mxu0 0
        %524 = vmatpush2.bf16.msra.mxu0 0
        %525 = vmatprep.subr.bf16.mxu0 0
        %526 = vmatpush2.bf16.msra.mxu0 0
        %527 = vmatprep.subr.bf16.mxu0 0
        %528 = vmatpush2.bf16.msra.mxu0 0
        %529 = vmatprep.subr.bf16.mxu0 0
        %530 = vmatpush2.bf16.msra.mxu0 0
        %531 = vmatprep.subr.bf16.mxu0 0
        %532 = vmatpush2.bf16.msra.mxu0 0
        %533 = vmatprep.subr.bf16.mxu0 0
        %534 = vmatpush2.bf16.msra.mxu0 0
        %535 = vmatprep.subr.bf16.mxu0 0
        %536 = vmatpush2.bf16.msra.mxu0 0
        %537 = vmatprep.subr.bf16.mxu0 0
        %538 = vmatpush2.bf16.msra.mxu0 0
        %539 = vmatprep.mubr.bf16.mxu0 0
        %540 = vmatmul.mubr.bf16.gmra.mxu0 %v501
        %v541 = vpop.f32.mrf.mxu0
        %v542 = vadd.f32 0.0, %v541
        %v543 = vpop.f32.mrf.mxu0
        %v544 = vpop.f32.mrf.mxu0
        %v545 = vpop.f32.mrf.mxu0
        %546 = vdwg.mxu0
        %v547 = vadd.f32 %v497, %v542
        %548 = vst [vmem:[#allocation4] sm:$0xff] %v547
        %549 = vst.msk [vmem:[#allocation2] sm:$0xff] %vm489, %v471
      $region48: #{llama_decoder_layer.8} parent=39 // pred_fallthru
        _
      // Predicated region
      $region49: #{llama_decoder_layer.8} parent=39 // pred_check
        %p550 = pneg %p388
      $region50: #{llama_decoder_layer.8} parent=39 // pred_check_branch
        %552 = sbr.rel (%p550) target = $region52
      $region51: #{llama_decoder_layer.8} parent=39 // pred_region
        %v553 = vld [vmem:[#allocation4] sm:$0xff]
        %v554 = vld [vmem:[#allocation3] sm:$0xff]
        %v555 = vrcp.pop %v554
        %557 = vset.pattern.permute.xlu0 0
        %558 = vperm.xlu0 %557, %v555
        %v559 = vpop.permute.xlu0 %558
        %v561 = vmul.f32 %v553, %v559
        %v562 = vpack.c.bf16 %v561, %v561
        %563 = vst [vmem:[%s386] sm:$0xf] %v562
      $region52: #{llama_decoder_layer.8} parent=39 // pred_fallthru
        _
      %p564 = scmp.lt.s32.totalorder %s22, 0
      %s565 = scalar_select %p564, %s22, 0
      %p566 = scmp.lt.s32.totalorder %s21, 3
      %s567 = scalar_select %p566, %s21, 3
      %s568 = smul.addr %s565, 4
      %s569 = sadd.s32 %s567, %s568
      %s570 = smul.addr %s569, 4
      %s571 = scalar_lea.vmem %s5, %s570
      // Predicated region
      $region53: #{llama_decoder_layer.8} parent=39 // pred_check
        %p572 = pneg %p199
      $region54: #{llama_decoder_layer.8} parent=39 // pred_check_branch
        %574 = sbr.rel (%p572) target = $region56
      $region55: #{llama_decoder_layer.8} parent=39 // pred_region
        _
      $region56: #{llama_decoder_layer.8} parent=39 // pred_fallthru
        _
    $region40: #{llama_decoder_layer.8} parent=5 // pred_fallthru
      _
    %p575 = scmp.le.s32.totalorder 2, %s11
    // Predicated region
    $region57: #{llama_decoder_layer.8} parent=5 // pred_check
      %p576 = pneg %p575
    $region58: #{llama_decoder_layer.8} parent=5 // pred_check_branch
      %578 = sbr.rel (%p576) target = $region60
    $region59: #{llama_decoder_layer.8} parent=5 // pred_region
      %s579 = ssub.s32 %s11, 2
      // Predicated region
      $region61: #{llama_decoder_layer.8} parent=59 // pred_check
        %p580 = pneg %p205
      $region62: #{llama_decoder_layer.8} parent=59 // pred_check_branch
        %582 = sbr.rel (%p580) target = $region64
      $region63: #{llama_decoder_layer.8} parent=59 // pred_region
        %p583 = scmp.lt.s32.totalorder %s25, 0
        %s584 = scalar_select %p583, %s25, 0
        %p585 = scmp.lt.s32.totalorder %s24, 3
        %s586 = scalar_select %p585, %s24, 3
        %s587 = smul.addr %s584, 4
        %s588 = sadd.s32 %s586, %s587
        %s589 = smul.addr %s588, 4
        %s590 = scalar_lea.vmem %s5, %s589
      $region64: #{llama_decoder_layer.8} parent=59 // pred_fallthru
        _
    $region60: #{llama_decoder_layer.8} parent=5 // pred_fallthru
      _
  $region6: #{llama_decoder_layer.8} parent=0 // loop_footer
    %s15 = sadd.s32 1, %s11
  $region7: #{llama_decoder_layer.8} parent=0 // loop_footer_branch
    %10 = sbr.rel target = $region3
  $region8: #{llama_decoder_layer.8} parent=0 // loop_exit
    _

// kernel: llama_decoder_layer.6
$region0: #{llama_decoder_layer.6}
  #allocation0 [shape = 'u32[]', space=smem, size = 0x4, offset = 0x4, fixed_abs, tag = 'smem constant byte address 0x4 - core index']
  #allocation1 [shape = 'u32[144,128]{1,0:T(1,128)}', space=vmem, size = 0x12000, scoped, tag = 'internal scratch']
  #allocation2 [shape = 'bf16[8,512]{1,0:T(8,128)(2,1)}', space=vmem, size = 0x2000, scoped, tag = 'scratch operand']
  %s0 = inlined_call_operand.vmem [shape: f32[8,512], index: 0, kind: input, shape index: {}]
  %s1 = inlined_call_operand.hbm [shape: f32[1,512], index: 1, kind: input, shape index: {}]
  %s2 = inlined_call_operand.hbm [shape: s8[512,512], index: 2, kind: input, shape index: {}]
  %s3 = inlined_call_operand.hbm [shape: f32[1,512], index: 3, kind: input, shape index: {}]
  %s4 = inlined_call_operand.vmem [shape: bf16[8,512], index: 4, kind: output, shape index: {}]
  %s5 = sld [smem:[#allocation0]]
  $region42: #{llama_decoder_layer.6} parent=0
    _
  %s7 = ssub.s32 1, %s5
  %s8 = scalar_select 0, %s7, %s5
  $region1: #{llama_decoder_layer.6} parent=0
    #allocation3 [shape = 'u8[2048]{0}', space=vmem, size = 0x800, scoped, tag = 'input window, operand 1, single buffered']
    #allocation4 [shape = 's32[1]{0}', space=sflag, size = 0x4, scoped, tag = 'scoped memory for llama_decoder_layer.6']
    #allocation5 [shape = 'u8[262144]{0}', space=vmem, size = 0x40000, scoped, tag = 'input window, operand 2, single buffered']
    #allocation6 [shape = 's32[1]{0}', space=sflag, size = 0x4, scoped, tag = 'scoped memory for llama_decoder_layer.6']
    #allocation7 [shape = 'u8[2048]{0}', space=vmem, size = 0x800, scoped, tag = 'input window, operand 3, single buffered']
    %9 = vsyncpa [#allocation4], 0
    %10 = vsyncpa [#allocation6], 0
    // Predicated region
    $region2: #{llama_decoder_layer.6} parent=1 // pred_check
      _
    $region3: #{llama_decoder_layer.6} parent=1 // pred_check_branch
      %12 = sbr.rel (0) target = $region5
    $region4: #{llama_decoder_layer.6} parent=1 // pred_region
      _
    $region5: #{llama_decoder_layer.6} parent=1 // pred_fallthru
      _
    // Predicated region
    $region6: #{llama_decoder_layer.6} parent=1 // pred_check
      _
    $region7: #{llama_decoder_layer.6} parent=1 // pred_check_branch
      %14 = sbr.rel (0) target = $region9
    $region8: #{llama_decoder_layer.6} parent=1 // pred_region
      %s16 = ssub.s32 64, 64
      %17 = vsyncadd [#allocation4], %s16
      %s19 = sshll.u32 [#allocation3], 4
      %s20 = int_to_ptr.vmem [resolvable:$true] %s19
      %22 = dma.hbm_to_vmem [thread:$0]  %s1, 64, %s20, [#allocation4]
    $region9: #{llama_decoder_layer.6} parent=1 // pred_fallthru
      _
    // Predicated region
    $region10: #{llama_decoder_layer.6} parent=1 // pred_check
      _
    $region11: #{llama_decoder_layer.6} parent=1 // pred_check_branch
      %24 = sbr.rel (0) target = $region13
    $region12: #{llama_decoder_layer.6} parent=1 // pred_region
      %s26 = ssub.s32 8192, 8192
      %27 = vsyncadd [#allocation6], %s26
      %s28 = sshll.u32 [#allocation5], 4
      %s29 = int_to_ptr.vmem [resolvable:$true] %s28
      %34 = dma.hbm_to_vmem [thread:$0]  %s2, 8192, %s29, [#allocation6], 512, 512, 32
    $region13: #{llama_decoder_layer.6} parent=1 // pred_fallthru
      _
    // Predicated region
    $region14: #{llama_decoder_layer.6} parent=1 // pred_check
      _
    $region15: #{llama_decoder_layer.6} parent=1 // pred_check_branch
      %36 = sbr.rel (0) target = $region17
    $region16: #{llama_decoder_layer.6} parent=1 // pred_region
      %s38 = ssub.s32 64, 64
      %39 = vsyncadd [#allocation6], %s38
      %s41 = sshll.u32 [#allocation7], 4
      %s42 = int_to_ptr.vmem [resolvable:$true] %s41
      %44 = dma.hbm_to_vmem [thread:$0]  %s3, 64, %s42, [#allocation6]
    $region17: #{llama_decoder_layer.6} parent=1 // pred_fallthru
      _
    // Predicated region
    $region18: #{llama_decoder_layer.6} parent=1 // pred_check
      _
    $region19: #{llama_decoder_layer.6} parent=1 // pred_check_branch
      %46 = sbr.rel (0) target = $region21
    $region20: #{llama_decoder_layer.6} parent=1 // pred_region
      %47 = dma.done [#allocation4], 64
    $region21: #{llama_decoder_layer.6} parent=1 // pred_fallthru
      _
    // Predicated region
    $region22: #{llama_decoder_layer.6} parent=1 // pred_check
      _
    $region23: #{llama_decoder_layer.6} parent=1 // pred_check_branch
      %49 = sbr.rel (0) target = $region25
    $region24: #{llama_decoder_layer.6} parent=1 // pred_region
      %50 = dma.done [#allocation6], 8192
    $region25: #{llama_decoder_layer.6} parent=1 // pred_fallthru
      _
    // Predicated region
    $region26: #{llama_decoder_layer.6} parent=1 // pred_check
      _
    $region27: #{llama_decoder_layer.6} parent=1 // pred_check_branch
      %52 = sbr.rel (0) target = $region29
    $region28: #{llama_decoder_layer.6} parent=1 // pred_region
      %53 = dma.done [#allocation6], 64
    $region29: #{llama_decoder_layer.6} parent=1 // pred_fallthru
      _
    %p54 = scmp.eq.s32.totalorder 0, 0
    // Predicated region
    $region30: #{llama_decoder_layer.6} parent=1 // pred_check
      %p55 = pneg %p54
    $region31: #{llama_decoder_layer.6} parent=1 // pred_check_branch
      %57 = sbr.rel (%p55) target = $region33
    $region32: #{llama_decoder_layer.6} parent=1 // pred_region
      %v58 = vld [vmem:[%s0] sm:$0xff]
      %v59 = vld [vmem:[%s0 + $0x8] sm:$0xff]
      %v60 = vld [vmem:[%s0 + $0x10] sm:$0xff]
      %v61 = vld [vmem:[%s0 + $0x18] sm:$0xff]
      %v62 = vmul.f32 %v58, %v58
      %v63 = vmul.f32 %v59, %v59
      %v64 = vmul.f32 %v60, %v60
      %v65 = vmul.f32 %v61, %v61
      %v66 = vadd.f32 %v62, %v63
      %v67 = vadd.f32 %v66, %v64
      %v68 = vadd.f32 %v67, %v65
      %69 = vadd.xlane.f32.xlu0 %v68
      %v70 = vpop.xlane.xlu0 %69
      %v71 = vrcp.pop 512.0
      %v72 = vmul.f32 %v70, %v71
      %v73 = vadd.f32 %v72, 1e-06
      %v74 = vrsqrt.pop %v73
      %v75 = vmul.f32 %v58, %v74
      %v76 = vmul.f32 %v59, %v74
      %v77 = vmul.f32 %v60, %v74
      %v78 = vmul.f32 %v61, %v74
      %v79 = vld [vmem:[#allocation3] sm:$0xf]
      %v81 = vlaneseq
      %v82 = vshrl.u32 %v81, 7
      %v83 = vsub.s32 0, %v82
      %v84 = vrot.slane %v79, %v83
      %v85 = vlaneseq
      %v86 = vshrl.u32 %v85, 7
      %v87 = vsub.s32 1, %v86
      %v88 = vrot.slane %v79, %v87
      %v89 = vlaneseq
      %v90 = vshrl.u32 %v89, 7
      %v91 = vsub.s32 2, %v90
      %v92 = vrot.slane %v79, %v91
      %v93 = vlaneseq
      %v94 = vshrl.u32 %v93, 7
      %v95 = vsub.s32 3, %v94
      %v96 = vrot.slane %v79, %v95
      %v101 = vmul.f32 %v75, %v84
      %v102 = vmul.f32 %v76, %v88
      %v103 = vmul.f32 %v77, %v92
      %v104 = vmul.f32 %v78, %v96
      %v105 = vpack.c.bf16 %v101, %v101
      %v106 = vpack.c.bf16 %v102, %v102
      %v107 = vpack.c.bf16 %v103, %v103
      %v108 = vpack.c.bf16 %v104, %v104
      %v113 = vunpack.c.l.b16 %v105
      %v114 = vunpack.c.l.b16 %v106
      %v115 = vunpack.c.l.b16 %v107
      %v116 = vunpack.c.l.b16 %v108
      %v117 = vpack.c.b16 %v114, %v113
      %v118 = vpack.c.b16 %v116, %v115
      %121 = vst [vmem:[#allocation2] sm:$0xff] %v117
      %122 = vst [vmem:[#allocation2 + $0x8] sm:$0xff] %v118
    $region33: #{llama_decoder_layer.6} parent=1 // pred_fallthru
      _
    %v123 = vld [vmem:[#allocation2] sm:$0xff]
    %v124 = vld [vmem:[#allocation2 + $0x8] sm:$0xff]
    %v125 = vld [vmem:[#allocation5] sm:$0xff]
    %v126 = vld [vmem:[#allocation5 + $0x8] sm:$0xff]
    %v127 = vld [vmem:[#allocation5 + $0x10] sm:$0xff]
    %v128 = vld [vmem:[#allocation5 + $0x18] sm:$0xff]
    %v129 = vld [vmem:[#allocation5 + $0x20] sm:$0xff]
    %v130 = vld [vmem:[#allocation5 + $0x28] sm:$0xff]
    %v131 = vld [vmem:[#allocation5 + $0x30] sm:$0xff]
    %v132 = vld [vmem:[#allocation5 + $0x38] sm:$0xff]
    %v133 = vld [vmem:[#allocation5 + $0x40] sm:$0xff]
    %v134 = vld [vmem:[#allocation5 + $0x48] sm:$0xff]
    %v135 = vld [vmem:[#allocation5 + $0x50] sm:$0xff]
    %v136 = vld [vmem:[#allocation5 + $0x58] sm:$0xff]
    %v137 = vld [vmem:[#allocation5 + $0x60] sm:$0xff]
    %v138 = vld [vmem:[#allocation5 + $0x68] sm:$0xff]
    %v139 = vld [vmem:[#allocation5 + $0x70] sm:$0xff]
    %v140 = vld [vmem:[#allocation5 + $0x78] sm:$0xff]
    %v141 = vld [vmem:[#allocation5 + $0x80] sm:$0xff]
    %v142 = vld [vmem:[#allocation5 + $0x88] sm:$0xff]
    %v143 = vld [vmem:[#allocation5 + $0x90] sm:$0xff]
    %v144 = vld [vmem:[#allocation5 + $0x98] sm:$0xff]
    %v145 = vld [vmem:[#allocation5 + $0xa0] sm:$0xff]
    %v146 = vld [vmem:[#allocation5 + $0xa8] sm:$0xff]
    %v147 = vld [vmem:[#allocation5 + $0xb0] sm:$0xff]
    %v148 = vld [vmem:[#allocation5 + $0xb8] sm:$0xff]
    %v149 = vld [vmem:[#allocation5 + $0xc0] sm:$0xff]
    %v150 = vld [vmem:[#allocation5 + $0xc8] sm:$0xff]
    %v151 = vld [vmem:[#allocation5 + $0xd0] sm:$0xff]
    %v152 = vld [vmem:[#allocation5 + $0xd8] sm:$0xff]
    %v153 = vld [vmem:[#allocation5 + $0xe0] sm:$0xff]
    %v154 = vld [vmem:[#allocation5 + $0xe8] sm:$0xff]
    %v155 = vld [vmem:[#allocation5 + $0xf0] sm:$0xff]
    %v156 = vld [vmem:[#allocation5 + $0xf8] sm:$0xff]
    %v157 = vld [vmem:[#allocation5 + $0x100] sm:$0xff]
    %v158 = vld [vmem:[#allocation5 + $0x108] sm:$0xff]
    %v159 = vld [vmem:[#allocation5 + $0x110] sm:$0xff]
    %v160 = vld [vmem:[#allocation5 + $0x118] sm:$0xff]
    %v161 = vld [vmem:[#allocation5 + $0x120] sm:$0xff]
    %v162 = vld [vmem:[#allocation5 + $0x128] sm:$0xff]
    %v163 = vld [vmem:[#allocation5 + $0x130] sm:$0xff]
    %v164 = vld [vmem:[#allocation5 + $0x138] sm:$0xff]
    %v165 = vld [vmem:[#allocation5 + $0x140] sm:$0xff]
    %v166 = vld [vmem:[#allocation5 + $0x148] sm:$0xff]
    %v167 = vld [vmem:[#allocation5 + $0x150] sm:$0xff]
    %v168 = vld [vmem:[#allocation5 + $0x158] sm:$0xff]
    %v169 = vld [vmem:[#allocation5 + $0x160] sm:$0xff]
    %v170 = vld [vmem:[#allocation5 + $0x168] sm:$0xff]
    %v171 = vld [vmem:[#allocation5 + $0x170] sm:$0xff]
    %v172 = vld [vmem:[#allocation5 + $0x178] sm:$0xff]
    %v173 = vld [vmem:[#allocation5 + $0x180] sm:$0xff]
    %v174 = vld [vmem:[#allocation5 + $0x188] sm:$0xff]
    %v175 = vld [vmem:[#allocation5 + $0x190] sm:$0xff]
    %v176 = vld [vmem:[#allocation5 + $0x198] sm:$0xff]
    %v177 = vld [vmem:[#allocation5 + $0x1a0] sm:$0xff]
    %v178 = vld [vmem:[#allocation5 + $0x1a8] sm:$0xff]
    %v179 = vld [vmem:[#allocation5 + $0x1b0] sm:$0xff]
    %v180 = vld [vmem:[#allocation5 + $0x1b8] sm:$0xff]
    %v181 = vld [vmem:[#allocation5 + $0x1c0] sm:$0xff]
    %v182 = vld [vmem:[#allocation5 + $0x1c8] sm:$0xff]
    %v183 = vld [vmem:[#allocation5 + $0x1d0] sm:$0xff]
    %v184 = vld [vmem:[#allocation5 + $0x1d8] sm:$0xff]
    %v185 = vld [vmem:[#allocation5 + $0x1e0] sm:$0xff]
    %v186 = vld [vmem:[#allocation5 + $0x1e8] sm:$0xff]
    %v187 = vld [vmem:[#allocation5 + $0x1f0] sm:$0xff]
    %v188 = vld [vmem:[#allocation5 + $0x1f8] sm:$0xff]
    %v189 = vunpack.c.l.s8.bf16 %v125
    %v190 = vunpack.c.l.s8.bf16 %v126
    %v191 = vunpack.c.l.s8.bf16 %v127
    %v192 = vunpack.c.l.s8.bf16 %v128
    %v193 = vunpack.c.h.s8.bf16 %v125
    %v194 = vunpack.c.h.s8.bf16 %v126
    %v195 = vunpack.c.h.s8.bf16 %v127
    %v196 = vunpack.c.h.s8.bf16 %v128
    %v197 = vunpack.c.l.s8.bf16 %v129
    %v198 = vunpack.c.l.s8.bf16 %v130
    %v199 = vunpack.c.l.s8.bf16 %v131
    %v200 = vunpack.c.l.s8.bf16 %v132
    %v201 = vunpack.c.h.s8.bf16 %v129
    %v202 = vunpack.c.h.s8.bf16 %v130
    %v203 = vunpack.c.h.s8.bf16 %v131
    %v204 = vunpack.c.h.s8.bf16 %v132
    %v205 = vunpack.c.l.s8.bf16 %v133
    %v206 = vunpack.c.l.s8.bf16 %v134
    %v207 = vunpack.c.l.s8.bf16 %v135
    %v208 = vunpack.c.l.s8.bf16 %v136
    %v209 = vunpack.c.h.s8.bf16 %v133
    %v210 = vunpack.c.h.s8.bf16 %v134
    %v211 = vunpack.c.h.s8.bf16 %v135
    %v212 = vunpack.c.h.s8.bf16 %v136
    %v213 = vunpack.c.l.s8.bf16 %v137
    %v214 = vunpack.c.l.s8.bf16 %v138
    %v215 = vunpack.c.l.s8.bf16 %v139
    %v216 = vunpack.c.l.s8.bf16 %v140
    %v217 = vunpack.c.h.s8.bf16 %v137
    %v218 = vunpack.c.h.s8.bf16 %v138
    %v219 = vunpack.c.h.s8.bf16 %v139
    %v220 = vunpack.c.h.s8.bf16 %v140
    %v221 = vunpack.c.l.s8.bf16 %v141
    %v222 = vunpack.c.l.s8.bf16 %v142
    %v223 = vunpack.c.l.s8.bf16 %v143
    %v224 = vunpack.c.l.s8.bf16 %v144
    %v225 = vunpack.c.h.s8.bf16 %v141
    %v226 = vunpack.c.h.s8.bf16 %v142
    %v227 = vunpack.c.h.s8.bf16 %v143
    %v228 = vunpack.c.h.s8.bf16 %v144
    %v229 = vunpack.c.l.s8.bf16 %v145
    %v230 = vunpack.c.l.s8.bf16 %v146
    %v231 = vunpack.c.l.s8.bf16 %v147
    %v232 = vunpack.c.l.s8.bf16 %v148
    %v233 = vunpack.c.h.s8.bf16 %v145
    %v234 = vunpack.c.h.s8.bf16 %v146
    %v235 = vunpack.c.h.s8.bf16 %v147
    %v236 = vunpack.c.h.s8.bf16 %v148
    %v237 = vunpack.c.l.s8.bf16 %v149
    %v238 = vunpack.c.l.s8.bf16 %v150
    %v239 = vunpack.c.l.s8.bf16 %v151
    %v240 = vunpack.c.l.s8.bf16 %v152
    %v241 = vunpack.c.h.s8.bf16 %v149
    %v242 = vunpack.c.h.s8.bf16 %v150
    %v243 = vunpack.c.h.s8.bf16 %v151
    %v244 = vunpack.c.h.s8.bf16 %v152
    %v245 = vunpack.c.l.s8.bf16 %v153
    %v246 = vunpack.c.l.s8.bf16 %v154
    %v247 = vunpack.c.l.s8.bf16 %v155
    %v248 = vunpack.c.l.s8.bf16 %v156
    %v249 = vunpack.c.h.s8.bf16 %v153
    %v250 = vunpack.c.h.s8.bf16 %v154
    %v251 = vunpack.c.h.s8.bf16 %v155
    %v252 = vunpack.c.h.s8.bf16 %v156
    %v253 = vunpack.c.l.s8.bf16 %v157
    %v254 = vunpack.c.l.s8.bf16 %v158
    %v255 = vunpack.c.l.s8.bf16 %v159
    %v256 = vunpack.c.l.s8.bf16 %v160
    %v257 = vunpack.c.h.s8.bf16 %v157
    %v258 = vunpack.c.h.s8.bf16 %v158
    %v259 = vunpack.c.h.s8.bf16 %v159
    %v260 = vunpack.c.h.s8.bf16 %v160
    %v261 = vunpack.c.l.s8.bf16 %v161
    %v262 = vunpack.c.l.s8.bf16 %v162
    %v263 = vunpack.c.l.s8.bf16 %v163
    %v264 = vunpack.c.l.s8.bf16 %v164
    %v265 = vunpack.c.h.s8.bf16 %v161
    %v266 = vunpack.c.h.s8.bf16 %v162
    %v267 = vunpack.c.h.s8.bf16 %v163
    %v268 = vunpack.c.h.s8.bf16 %v164
    %v269 = vunpack.c.l.s8.bf16 %v165
    %v270 = vunpack.c.l.s8.bf16 %v166
    %v271 = vunpack.c.l.s8.bf16 %v167
    %v272 = vunpack.c.l.s8.bf16 %v168
    %v273 = vunpack.c.h.s8.bf16 %v165
    %v274 = vunpack.c.h.s8.bf16 %v166
    %v275 = vunpack.c.h.s8.bf16 %v167
    %v276 = vunpack.c.h.s8.bf16 %v168
    %v277 = vunpack.c.l.s8.bf16 %v169
    %v278 = vunpack.c.l.s8.bf16 %v170
    %v279 = vunpack.c.l.s8.bf16 %v171
    %v280 = vunpack.c.l.s8.bf16 %v172
    %v281 = vunpack.c.h.s8.bf16 %v169
    %v282 = vunpack.c.h.s8.bf16 %v170
    %v283 = vunpack.c.h.s8.bf16 %v171
    %v284 = vunpack.c.h.s8.bf16 %v172
    %v285 = vunpack.c.l.s8.bf16 %v173
    %v286 = vunpack.c.l.s8.bf16 %v174
    %v287 = vunpack.c.l.s8.bf16 %v175
    %v288 = vunpack.c.l.s8.bf16 %v176
    %v289 = vunpack.c.h.s8.bf16 %v173
    %v290 = vunpack.c.h.s8.bf16 %v174
    %v291 = vunpack.c.h.s8.bf16 %v175
    %v292 = vunpack.c.h.s8.bf16 %v176
    %v293 = vunpack.c.l.s8.bf16 %v177
    %v294 = vunpack.c.l.s8.bf16 %v178
    %v295 = vunpack.c.l.s8.bf16 %v179
    %v296 = vunpack.c.l.s8.bf16 %v180
    %v297 = vunpack.c.h.s8.bf16 %v177
    %v298 = vunpack.c.h.s8.bf16 %v178
    %v299 = vunpack.c.h.s8.bf16 %v179
    %v300 = vunpack.c.h.s8.bf16 %v180
    %v301 = vunpack.c.l.s8.bf16 %v181
    %v302 = vunpack.c.l.s8.bf16 %v182
    %v303 = vunpack.c.l.s8.bf16 %v183
    %v304 = vunpack.c.l.s8.bf16 %v184
    %v305 = vunpack.c.h.s8.bf16 %v181
    %v306 = vunpack.c.h.s8.bf16 %v182
    %v307 = vunpack.c.h.s8.bf16 %v183
    %v308 = vunpack.c.h.s8.bf16 %v184
    %v309 = vunpack.c.l.s8.bf16 %v185
    %v310 = vunpack.c.l.s8.bf16 %v186
    %v311 = vunpack.c.l.s8.bf16 %v187
    %v312 = vunpack.c.l.s8.bf16 %v188
    %v313 = vunpack.c.h.s8.bf16 %v185
    %v314 = vunpack.c.h.s8.bf16 %v186
    %v315 = vunpack.c.h.s8.bf16 %v187
    %v316 = vunpack.c.h.s8.bf16 %v188
    %v319 = vunpack.c.l.b16 %v123
    %v320 = vunpack.c.h.b16 %v123
    %v321 = vunpack.c.l.b16 %v124
    %v322 = vunpack.c.h.b16 %v124
    %v323 = vpack.c.b16 %v319, %v319
    %v324 = vpack.c.b16 %v320, %v320
    %v325 = vpack.c.b16 %v321, %v321
    %v326 = vpack.c.b16 %v322, %v322
    %331 = vmatprep.subr.bf16.mxu0 %v218
    %332 = vmatpush1.bf16.msra.mxu0 %v217
    %333 = vmatprep.subr.bf16.mxu0 %v214
    %334 = vmatpush1.bf16.msra.mxu0 %v213
    %335 = vmatprep.subr.bf16.mxu0 %v210
    %336 = vmatpush1.bf16.msra.mxu0 %v209
    %337 = vmatprep.subr.bf16.mxu0 %v206
    %338 = vmatpush1.bf16.msra.mxu0 %v205
    %339 = vmatprep.subr.bf16.mxu0 %v202
    %340 = vmatpush1.bf16.msra.mxu0 %v201
    %341 = vmatprep.subr.bf16.mxu0 %v198
    %342 = vmatpush1.bf16.msra.mxu0 %v197
    %343 = vmatprep.subr.bf16.mxu0 %v194
    %344 = vmatpush1.bf16.msra.mxu0 %v193
    %345 = vmatprep.subr.bf16.mxu0 %v190
    %346 = vmatpush1.bf16.msra.mxu0 %v189
    %347 = vmatprep.subr.bf16.mxu0 %v250
    %348 = vmatpush2.bf16.msra.mxu0 %v249
    %349 = vmatprep.subr.bf16.mxu0 %v246
    %350 = vmatpush2.bf16.msra.mxu0 %v245
    %351 = vmatprep.subr.bf16.mxu0 %v242
    %352 = vmatpush2.bf16.msra.mxu0 %v241
    %353 = vmatprep.subr.bf16.mxu0 %v238
    %354 = vmatpush2.bf16.msra.mxu0 %v237
    %355 = vmatprep.subr.bf16.mxu0 %v234
    %356 = vmatpush2.bf16.msra.mxu0 %v233
    %357 = vmatprep.subr.bf16.mxu0 %v230
    %358 = vmatpush2.bf16.msra.mxu0 %v229
    %359 = vmatprep.subr.bf16.mxu0 %v226
    %360 = vmatpush2.bf16.msra.mxu0 %v225
    %361 = vmatprep.subr.bf16.mxu0 %v222
    %362 = vmatpush2.bf16.msra.mxu0 %v221
    %363 = vmatprep.mubr.bf16.mxu0 %v324
    %364 = vmatmul.mubr.bf16.gmra.mxu0 %v323
    %v365 = vpop.f32.mrf.mxu0
    %v366 = vadd.f32 0.0, %v365
    %v367 = vpop.f32.mrf.mxu0
    %v368 = vadd.f32 0.0, %v367
    %v369 = vpop.f32.mrf.mxu0
    %v370 = vpop.f32.mrf.mxu0
    %371 = vdwg.mxu0
    %372 = vmatprep.subr.bf16.mxu0 %v282
    %373 = vmatpush1.bf16.msra.mxu0 %v281
    %374 = vmatprep.subr.bf16.mxu0 %v278
    %375 = vmatpush1.bf16.msra.mxu0 %v277
    %376 = vmatprep.subr.bf16.mxu0 %v274
    %377 = vmatpush1.bf16.msra.mxu0 %v273
    %378 = vmatprep.subr.bf16.mxu0 %v270
    %379 = vmatpush1.bf16.msra.mxu0 %v269
    %380 = vmatprep.subr.bf16.mxu0 %v266
    %381 = vmatpush1.bf16.msra.mxu0 %v265
    %382 = vmatprep.subr.bf16.mxu0 %v262
    %383 = vmatpush1.bf16.msra.mxu0 %v261
    %384 = vmatprep.subr.bf16.mxu0 %v258
    %385 = vmatpush1.bf16.msra.mxu0 %v257
    %386 = vmatprep.subr.bf16.mxu0 %v254
    %387 = vmatpush1.bf16.msra.mxu0 %v253
    %388 = vmatprep.subr.bf16.mxu0 %v314
    %389 = vmatpush2.bf16.msra.mxu0 %v313
    %390 = vmatprep.subr.bf16.mxu0 %v310
    %391 = vmatpush2.bf16.msra.mxu0 %v309
    %392 = vmatprep.subr.bf16.mxu0 %v306
    %393 = vmatpush2.bf16.msra.mxu0 %v305
    %394 = vmatprep.subr.bf16.mxu0 %v302
    %395 = vmatpush2.bf16.msra.mxu0 %v301
    %396 = vmatprep.subr.bf16.mxu0 %v298
    %397 = vmatpush2.bf16.msra.mxu0 %v297
    %398 = vmatprep.subr.bf16.mxu0 %v294
    %399 = vmatpush2.bf16.msra.mxu0 %v293
    %400 = vmatprep.subr.bf16.mxu0 %v290
    %401 = vmatpush2.bf16.msra.mxu0 %v289
    %402 = vmatprep.subr.bf16.mxu0 %v286
    %403 = vmatpush2.bf16.msra.mxu0 %v285
    %404 = vmatprep.mubr.bf16.mxu0 %v326
    %405 = vmatmul.mubr.bf16.gmra.mxu0 %v325
    %v406 = vpop.f32.mrf.mxu0
    %v407 = vadd.f32 %v366, %v406
    %v408 = vpop.f32.mrf.mxu0
    %v409 = vadd.f32 %v368, %v408
    %v410 = vpop.f32.mrf.mxu0
    %v411 = vpop.f32.mrf.mxu0
    %412 = vdwg.mxu0
    %413 = vmatprep.subr.bf16.mxu0 %v220
    %414 = vmatpush1.bf16.msra.mxu0 %v219
    %415 = vmatprep.subr.bf16.mxu0 %v216
    %416 = vmatpush1.bf16.msra.mxu0 %v215
    %417 = vmatprep.subr.bf16.mxu0 %v212
    %418 = vmatpush1.bf16.msra.mxu0 %v211
    %419 = vmatprep.subr.bf16.mxu0 %v208
    %420 = vmatpush1.bf16.msra.mxu0 %v207
    %421 = vmatprep.subr.bf16.mxu0 %v204
    %422 = vmatpush1.bf16.msra.mxu0 %v203
    %423 = vmatprep.subr.bf16.mxu0 %v200
    %424 = vmatpush1.bf16.msra.mxu0 %v199
    %425 = vmatprep.subr.bf16.mxu0 %v196
    %426 = vmatpush1.bf16.msra.mxu0 %v195
    %427 = vmatprep.subr.bf16.mxu0 %v192
    %428 = vmatpush1.bf16.msra.mxu0 %v191
    %429 = vmatprep.subr.bf16.mxu0 %v252
    %430 = vmatpush2.bf16.msra.mxu0 %v251
    %431 = vmatprep.subr.bf16.mxu0 %v248
    %432 = vmatpush2.bf16.msra.mxu0 %v247
    %433 = vmatprep.subr.bf16.mxu0 %v244
    %434 = vmatpush2.bf16.msra.mxu0 %v243
    %435 = vmatprep.subr.bf16.mxu0 %v240
    %436 = vmatpush2.bf16.msra.mxu0 %v239
    %437 = vmatprep.subr.bf16.mxu0 %v236
    %438 = vmatpush2.bf16.msra.mxu0 %v235
    %439 = vmatprep.subr.bf16.mxu0 %v232
    %440 = vmatpush2.bf16.msra.mxu0 %v231
    %441 = vmatprep.subr.bf16.mxu0 %v228
    %442 = vmatpush2.bf16.msra.mxu0 %v227
    %443 = vmatprep.subr.bf16.mxu0 %v224
    %444 = vmatpush2.bf16.msra.mxu0 %v223
    %445 = vmatprep.mubr.bf16.mxu0 %v324
    %446 = vmatmul.mubr.bf16.gmra.mxu0 %v323
    %v447 = vpop.f32.mrf.mxu0
    %v448 = vadd.f32 0.0, %v447
    %v449 = vpop.f32.mrf.mxu0
    %v450 = vadd.f32 0.0, %v449
    %v451 = vpop.f32.mrf.mxu0
    %v452 = vpop.f32.mrf.mxu0
    %453 = vdwg.mxu0
    %454 = vmatprep.subr.bf16.mxu0 %v284
    %455 = vmatpush1.bf16.msra.mxu0 %v283
    %456 = vmatprep.subr.bf16.mxu0 %v280
    %457 = vmatpush1.bf16.msra.mxu0 %v279
    %458 = vmatprep.subr.bf16.mxu0 %v276
    %459 = vmatpush1.bf16.msra.mxu0 %v275
    %460 = vmatprep.subr.bf16.mxu0 %v272
    %461 = vmatpush1.bf16.msra.mxu0 %v271
    %462 = vmatprep.subr.bf16.mxu0 %v268
    %463 = vmatpush1.bf16.msra.mxu0 %v267
    %464 = vmatprep.subr.bf16.mxu0 %v264
    %465 = vmatpush1.bf16.msra.mxu0 %v263
    %466 = vmatprep.subr.bf16.mxu0 %v260
    %467 = vmatpush1.bf16.msra.mxu0 %v259
    %468 = vmatprep.subr.bf16.mxu0 %v256
    %469 = vmatpush1.bf16.msra.mxu0 %v255
    %470 = vmatprep.subr.bf16.mxu0 %v316
    %471 = vmatpush2.bf16.msra.mxu0 %v315
    %472 = vmatprep.subr.bf16.mxu0 %v312
    %473 = vmatpush2.bf16.msra.mxu0 %v311
    %474 = vmatprep.subr.bf16.mxu0 %v308
    %475 = vmatpush2.bf16.msra.mxu0 %v307
    %476 = vmatprep.subr.bf16.mxu0 %v304
    %477 = vmatpush2.bf16.msra.mxu0 %v303
    %478 = vmatprep.subr.bf16.mxu0 %v300
    %479 = vmatpush2.bf16.msra.mxu0 %v299
    %480 = vmatprep.subr.bf16.mxu0 %v296
    %481 = vmatpush2.bf16.msra.mxu0 %v295
    %482 = vmatprep.subr.bf16.mxu0 %v292
    %483 = vmatpush2.bf16.msra.mxu0 %v291
    %484 = vmatprep.subr.bf16.mxu0 %v288
    %485 = vmatpush2.bf16.msra.mxu0 %v287
    %486 = vmatprep.mubr.bf16.mxu0 %v326
    %487 = vmatmul.mubr.bf16.gmra.mxu0 %v325
    %v488 = vpop.f32.mrf.mxu0
    %v489 = vadd.f32 %v448, %v488
    %v490 = vpop.f32.mrf.mxu0
    %v491 = vadd.f32 %v450, %v490
    %v492 = vpop.f32.mrf.mxu0
    %v493 = vpop.f32.mrf.mxu0
    %494 = vdwg.mxu0
    %v495 = vld [vmem:[#allocation7] sm:$0xf]
    %v497 = vlaneseq
    %v498 = vshrl.u32 %v497, 7
    %v499 = vsub.s32 0, %v498
    %v500 = vrot.slane %v495, %v499
    %v501 = vlaneseq
    %v502 = vshrl.u32 %v501, 7
    %v503 = vsub.s32 1, %v502
    %v504 = vrot.slane %v495, %v503
    %v505 = vlaneseq
    %v506 = vshrl.u32 %v505, 7
    %v507 = vsub.s32 2, %v506
    %v508 = vrot.slane %v495, %v507
    %v509 = vlaneseq
    %v510 = vshrl.u32 %v509, 7
    %v511 = vsub.s32 3, %v510
    %v512 = vrot.slane %v495, %v511
    %v517 = vmul.f32 %v407, %v500
    %v518 = vmul.f32 %v409, %v504
    %v519 = vmul.f32 %v489, %v508
    %v520 = vmul.f32 %v491, %v512
    %v521 = vpack.c.bf16 %v517, %v517
    %v522 = vpack.c.bf16 %v518, %v518
    %v523 = vpack.c.bf16 %v519, %v519
    %v524 = vpack.c.bf16 %v520, %v520
    %v529 = vunpack.c.l.b16 %v521
    %v530 = vunpack.c.l.b16 %v522
    %v531 = vunpack.c.l.b16 %v523
    %v532 = vunpack.c.l.b16 %v524
    %v533 = vpack.c.b16 %v530, %v529
    %v534 = vpack.c.b16 %v532, %v531
    %537 = vst [vmem:[%s4] sm:$0xff] %v533
    %538 = vst [vmem:[%s4 + $0x8] sm:$0xff] %v534
    // Predicated region
    $region34: #{llama_decoder_layer.6} parent=1 // pred_check
      _
    $region35: #{llama_decoder_layer.6} parent=1 // pred_check_branch
      %540 = sbr.rel (0) target = $region37
    $region36: #{llama_decoder_layer.6} parent=1 // pred_region
      _
    $region37: #{llama_decoder_layer.6} parent=1 // pred_fallthru
      _
    // Predicated region
    $region38: #{llama_decoder_layer.6} parent=1 // pred_check
      _
    $region39: #{llama_decoder_layer.6} parent=1 // pred_check_branch
      %542 = sbr.rel (0) target = $region41
    $region40: #{llama_decoder_layer.6} parent=1 // pred_region
      _
    $region41: #{llama_decoder_layer.6} parent=1 // pred_fallthru
      _
    %543 = vsyncpa [#allocation4], 1
    %544 = vsyncpa [#allocation6], 1

// kernel: llama_decoder_layer.9
$region0: #{llama_decoder_layer.9}
  #allocation0 [shape = 'u32[]', space=smem, size = 0x4, offset = 0x4, fixed_abs, tag = 'smem constant byte address 0x4 - core index']
  #allocation1 [shape = 'u32[144,128]{1,0:T(1,128)}', space=vmem, size = 0x12000, scoped, tag = 'internal scratch']
  #allocation2 [shape = 'f32[8,512]{1,0:T(8,128)}', space=vmem, size = 0x4000, scoped, tag = 'scratch operand']
  %s0 = inlined_call_operand.vmem [shape: bf16[8,512], index: 0, kind: input, shape index: {}]
  %s1 = inlined_call_operand.hbm [shape: s8[512,512], index: 1, kind: input, shape index: {}]
  %s2 = inlined_call_operand.hbm [shape: f32[1,512], index: 2, kind: input, shape index: {}]
  %s3 = inlined_call_operand.vmem [shape: f32[8,512], index: 3, kind: input, shape index: {}]
  %s4 = inlined_call_operand.vmem [shape: f32[8,512], index: 4, kind: output, shape index: {}]
  %s5 = sld [smem:[#allocation0]]
  $region42: #{llama_decoder_layer.9} parent=0
    _
  %s7 = ssub.s32 1, %s5
  %s8 = scalar_select 0, %s7, %s5
  $region1: #{llama_decoder_layer.9} parent=0
    #allocation3 [shape = 'u8[262144]{0}', space=vmem, size = 0x40000, scoped, tag = 'input window, operand 1, single buffered']
    #allocation4 [shape = 's32[1]{0}', space=sflag, size = 0x4, scoped, tag = 'scoped memory for llama_decoder_layer.9']
    #allocation5 [shape = 'u8[2048]{0}', space=vmem, size = 0x800, scoped, tag = 'input window, operand 2, single buffered']
    #allocation6 [shape = 's32[1]{0}', space=sflag, size = 0x4, scoped, tag = 'scoped memory for llama_decoder_layer.9']
    %9 = vsyncpa [#allocation4], 0
    %10 = vsyncpa [#allocation6], 0
    // Predicated region
    $region2: #{llama_decoder_layer.9} parent=1 // pred_check
      _
    $region3: #{llama_decoder_layer.9} parent=1 // pred_check_branch
      %12 = sbr.rel (0) target = $region5
    $region4: #{llama_decoder_layer.9} parent=1 // pred_region
      _
    $region5: #{llama_decoder_layer.9} parent=1 // pred_fallthru
      _
    // Predicated region
    $region6: #{llama_decoder_layer.9} parent=1 // pred_check
      _
    $region7: #{llama_decoder_layer.9} parent=1 // pred_check_branch
      %14 = sbr.rel (0) target = $region9
    $region8: #{llama_decoder_layer.9} parent=1 // pred_region
      %s16 = ssub.s32 8192, 8192
      %17 = vsyncadd [#allocation4], %s16
      %s18 = sshll.u32 [#allocation3], 4
      %s19 = int_to_ptr.vmem [resolvable:$true] %s18
      %24 = dma.hbm_to_vmem [thread:$0]  %s1, 8192, %s19, [#allocation4], 512, 512, 32
    $region9: #{llama_decoder_layer.9} parent=1 // pred_fallthru
      _
    // Predicated region
    $region10: #{llama_decoder_layer.9} parent=1 // pred_check
      _
    $region11: #{llama_decoder_layer.9} parent=1 // pred_check_branch
      %26 = sbr.rel (0) target = $region13
    $region12: #{llama_decoder_layer.9} parent=1 // pred_region
      %s28 = ssub.s32 64, 64
      %29 = vsyncadd [#allocation6], %s28
      %s31 = sshll.u32 [#allocation5], 4
      %s32 = int_to_ptr.vmem [resolvable:$true] %s31
      %34 = dma.hbm_to_vmem [thread:$0]  %s2, 64, %s32, [#allocation6]
    $region13: #{llama_decoder_layer.9} parent=1 // pred_fallthru
      _
    // Predicated region
    $region14: #{llama_decoder_layer.9} parent=1 // pred_check
      _
    $region15: #{llama_decoder_layer.9} parent=1 // pred_check_branch
      %36 = sbr.rel (0) target = $region17
    $region16: #{llama_decoder_layer.9} parent=1 // pred_region
      _
    $region17: #{llama_decoder_layer.9} parent=1 // pred_fallthru
      _
    // Predicated region
    $region18: #{llama_decoder_layer.9} parent=1 // pred_check
      _
    $region19: #{llama_decoder_layer.9} parent=1 // pred_check_branch
      %38 = sbr.rel (0) target = $region21
    $region20: #{llama_decoder_layer.9} parent=1 // pred_region
      %39 = dma.done [#allocation4], 8192
    $region21: #{llama_decoder_layer.9} parent=1 // pred_fallthru
      _
    // Predicated region
    $region22: #{llama_decoder_layer.9} parent=1 // pred_check
      _
    $region23: #{llama_decoder_layer.9} parent=1 // pred_check_branch
      %41 = sbr.rel (0) target = $region25
    $region24: #{llama_decoder_layer.9} parent=1 // pred_region
      %42 = dma.done [#allocation6], 64
    $region25: #{llama_decoder_layer.9} parent=1 // pred_fallthru
      _
    %p43 = scmp.eq.s32.totalorder 0, 0
    // Predicated region
    $region26: #{llama_decoder_layer.9} parent=1 // pred_check
      %p44 = pneg %p43
    $region27: #{llama_decoder_layer.9} parent=1 // pred_check_branch
      %46 = sbr.rel (%p44) target = $region29
    $region28: #{llama_decoder_layer.9} parent=1 // pred_region
      %47 = vst [vmem:[#allocation2] sm:$0xff] 0.0
      %48 = vst [vmem:[#allocation2 + $0x8] sm:$0xff] 0.0
      %49 = vst [vmem:[#allocation2 + $0x10] sm:$0xff] 0.0
      %50 = vst [vmem:[#allocation2 + $0x18] sm:$0xff] 0.0
    $region29: #{llama_decoder_layer.9} parent=1 // pred_fallthru
      _
    %v51 = vld [vmem:[#allocation2] sm:$0xff]
    %v52 = vld [vmem:[#allocation2 + $0x8] sm:$0xff]
    %v53 = vld [vmem:[#allocation2 + $0x10] sm:$0xff]
    %v54 = vld [vmem:[#allocation2 + $0x18] sm:$0xff]
    %v55 = vld [vmem:[%s0] sm:$0xff]
    %v56 = vld [vmem:[%s0 + $0x8] sm:$0xff]
    %v57 = vld [vmem:[#allocation3] sm:$0xff]
    %v58 = vld [vmem:[#allocation3 + $0x8] sm:$0xff]
    %v59 = vld [vmem:[#allocation3 + $0x10] sm:$0xff]
    %v60 = vld [vmem:[#allocation3 + $0x18] sm:$0xff]
    %v61 = vld [vmem:[#allocation3 + $0x20] sm:$0xff]
    %v62 = vld [vmem:[#allocation3 + $0x28] sm:$0xff]
    %v63 = vld [vmem:[#allocation3 + $0x30] sm:$0xff]
    %v64 = vld [vmem:[#allocation3 + $0x38] sm:$0xff]
    %v65 = vld [vmem:[#allocation3 + $0x40] sm:$0xff]
    %v66 = vld [vmem:[#allocation3 + $0x48] sm:$0xff]
    %v67 = vld [vmem:[#allocation3 + $0x50] sm:$0xff]
    %v68 = vld [vmem:[#allocation3 + $0x58] sm:$0xff]
    %v69 = vld [vmem:[#allocation3 + $0x60] sm:$0xff]
    %v70 = vld [vmem:[#allocation3 + $0x68] sm:$0xff]
    %v71 = vld [vmem:[#allocation3 + $0x70] sm:$0xff]
    %v72 = vld [vmem:[#allocation3 + $0x78] sm:$0xff]
    %v73 = vld [vmem:[#allocation3 + $0x80] sm:$0xff]
    %v74 = vld [vmem:[#allocation3 + $0x88] sm:$0xff]
    %v75 = vld [vmem:[#allocation3 + $0x90] sm:$0xff]
    %v76 = vld [vmem:[#allocation3 + $0x98] sm:$0xff]
    %v77 = vld [vmem:[#allocation3 + $0xa0] sm:$0xff]
    %v78 = vld [vmem:[#allocation3 + $0xa8] sm:$0xff]
    %v79 = vld [vmem:[#allocation3 + $0xb0] sm:$0xff]
    %v80 = vld [vmem:[#allocation3 + $0xb8] sm:$0xff]
    %v81 = vld [vmem:[#allocation3 + $0xc0] sm:$0xff]
    %v82 = vld [vmem:[#allocation3 + $0xc8] sm:$0xff]
    %v83 = vld [vmem:[#allocation3 + $0xd0] sm:$0xff]
    %v84 = vld [vmem:[#allocation3 + $0xd8] sm:$0xff]
    %v85 = vld [vmem:[#allocation3 + $0xe0] sm:$0xff]
    %v86 = vld [vmem:[#allocation3 + $0xe8] sm:$0xff]
    %v87 = vld [vmem:[#allocation3 + $0xf0] sm:$0xff]
    %v88 = vld [vmem:[#allocation3 + $0xf8] sm:$0xff]
    %v89 = vld [vmem:[#allocation3 + $0x100] sm:$0xff]
    %v90 = vld [vmem:[#allocation3 + $0x108] sm:$0xff]
    %v91 = vld [vmem:[#allocation3 + $0x110] sm:$0xff]
    %v92 = vld [vmem:[#allocation3 + $0x118] sm:$0xff]
    %v93 = vld [vmem:[#allocation3 + $0x120] sm:$0xff]
    %v94 = vld [vmem:[#allocation3 + $0x128] sm:$0xff]
    %v95 = vld [vmem:[#allocation3 + $0x130] sm:$0xff]
    %v96 = vld [vmem:[#allocation3 + $0x138] sm:$0xff]
    %v97 = vld [vmem:[#allocation3 + $0x140] sm:$0xff]
    %v98 = vld [vmem:[#allocation3 + $0x148] sm:$0xff]
    %v99 = vld [vmem:[#allocation3 + $0x150] sm:$0xff]
    %v100 = vld [vmem:[#allocation3 + $0x158] sm:$0xff]
    %v101 = vld [vmem:[#allocation3 + $0x160] sm:$0xff]
    %v102 = vld [vmem:[#allocation3 + $0x168] sm:$0xff]
    %v103 = vld [vmem:[#allocation3 + $0x170] sm:$0xff]
    %v104 = vld [vmem:[#allocation3 + $0x178] sm:$0xff]
    %v105 = vld [vmem:[#allocation3 + $0x180] sm:$0xff]
    %v106 = vld [vmem:[#allocation3 + $0x188] sm:$0xff]
    %v107 = vld [vmem:[#allocation3 + $0x190] sm:$0xff]
    %v108 = vld [vmem:[#allocation3 + $0x198] sm:$0xff]
    %v109 = vld [vmem:[#allocation3 + $0x1a0] sm:$0xff]
    %v110 = vld [vmem:[#allocation3 + $0x1a8] sm:$0xff]
    %v111 = vld [vmem:[#allocation3 + $0x1b0] sm:$0xff]
    %v112 = vld [vmem:[#allocation3 + $0x1b8] sm:$0xff]
    %v113 = vld [vmem:[#allocation3 + $0x1c0] sm:$0xff]
    %v114 = vld [vmem:[#allocation3 + $0x1c8] sm:$0xff]
    %v115 = vld [vmem:[#allocation3 + $0x1d0] sm:$0xff]
    %v116 = vld [vmem:[#allocation3 + $0x1d8] sm:$0xff]
    %v117 = vld [vmem:[#allocation3 + $0x1e0] sm:$0xff]
    %v118 = vld [vmem:[#allocation3 + $0x1e8] sm:$0xff]
    %v119 = vld [vmem:[#allocation3 + $0x1f0] sm:$0xff]
    %v120 = vld [vmem:[#allocation3 + $0x1f8] sm:$0xff]
    %v121 = vunpack.c.l.s8.bf16 %v57
    %v122 = vunpack.c.l.s8.bf16 %v58
    %v123 = vunpack.c.l.s8.bf16 %v59
    %v124 = vunpack.c.l.s8.bf16 %v60
    %v125 = vunpack.c.h.s8.bf16 %v57
    %v126 = vunpack.c.h.s8.bf16 %v58
    %v127 = vunpack.c.h.s8.bf16 %v59
    %v128 = vunpack.c.h.s8.bf16 %v60
    %v129 = vunpack.c.l.s8.bf16 %v61
    %v130 = vunpack.c.l.s8.bf16 %v62
    %v131 = vunpack.c.l.s8.bf16 %v63
    %v132 = vunpack.c.l.s8.bf16 %v64
    %v133 = vunpack.c.h.s8.bf16 %v61
    %v134 = vunpack.c.h.s8.bf16 %v62
    %v135 = vunpack.c.h.s8.bf16 %v63
    %v136 = vunpack.c.h.s8.bf16 %v64
    %v137 = vunpack.c.l.s8.bf16 %v65
    %v138 = vunpack.c.l.s8.bf16 %v66
    %v139 = vunpack.c.l.s8.bf16 %v67
    %v140 = vunpack.c.l.s8.bf16 %v68
    %v141 = vunpack.c.h.s8.bf16 %v65
    %v142 = vunpack.c.h.s8.bf16 %v66
    %v143 = vunpack.c.h.s8.bf16 %v67
    %v144 = vunpack.c.h.s8.bf16 %v68
    %v145 = vunpack.c.l.s8.bf16 %v69
    %v146 = vunpack.c.l.s8.bf16 %v70
    %v147 = vunpack.c.l.s8.bf16 %v71
    %v148 = vunpack.c.l.s8.bf16 %v72
    %v149 = vunpack.c.h.s8.bf16 %v69
    %v150 = vunpack.c.h.s8.bf16 %v70
    %v151 = vunpack.c.h.s8.bf16 %v71
    %v152 = vunpack.c.h.s8.bf16 %v72
    %v153 = vunpack.c.l.s8.bf16 %v73
    %v154 = vunpack.c.l.s8.bf16 %v74
    %v155 = vunpack.c.l.s8.bf16 %v75
    %v156 = vunpack.c.l.s8.bf16 %v76
    %v157 = vunpack.c.h.s8.bf16 %v73
    %v158 = vunpack.c.h.s8.bf16 %v74
    %v159 = vunpack.c.h.s8.bf16 %v75
    %v160 = vunpack.c.h.s8.bf16 %v76
    %v161 = vunpack.c.l.s8.bf16 %v77
    %v162 = vunpack.c.l.s8.bf16 %v78
    %v163 = vunpack.c.l.s8.bf16 %v79
    %v164 = vunpack.c.l.s8.bf16 %v80
    %v165 = vunpack.c.h.s8.bf16 %v77
    %v166 = vunpack.c.h.s8.bf16 %v78
    %v167 = vunpack.c.h.s8.bf16 %v79
    %v168 = vunpack.c.h.s8.bf16 %v80
    %v169 = vunpack.c.l.s8.bf16 %v81
    %v170 = vunpack.c.l.s8.bf16 %v82
    %v171 = vunpack.c.l.s8.bf16 %v83
    %v172 = vunpack.c.l.s8.bf16 %v84
    %v173 = vunpack.c.h.s8.bf16 %v81
    %v174 = vunpack.c.h.s8.bf16 %v82
    %v175 = vunpack.c.h.s8.bf16 %v83
    %v176 = vunpack.c.h.s8.bf16 %v84
    %v177 = vunpack.c.l.s8.bf16 %v85
    %v178 = vunpack.c.l.s8.bf16 %v86
    %v179 = vunpack.c.l.s8.bf16 %v87
    %v180 = vunpack.c.l.s8.bf16 %v88
    %v181 = vunpack.c.h.s8.bf16 %v85
    %v182 = vunpack.c.h.s8.bf16 %v86
    %v183 = vunpack.c.h.s8.bf16 %v87
    %v184 = vunpack.c.h.s8.bf16 %v88
    %v185 = vunpack.c.l.s8.bf16 %v89
    %v186 = vunpack.c.l.s8.bf16 %v90
    %v187 = vunpack.c.l.s8.bf16 %v91
    %v188 = vunpack.c.l.s8.bf16 %v92
    %v189 = vunpack.c.h.s8.bf16 %v89
    %v190 = vunpack.c.h.s8.bf16 %v90
    %v191 = vunpack.c.h.s8.bf16 %v91
    %v192 = vunpack.c.h.s8.bf16 %v92
    %v193 = vunpack.c.l.s8.bf16 %v93
    %v194 = vunpack.c.l.s8.bf16 %v94
    %v195 = vunpack.c.l.s8.bf16 %v95
    %v196 = vunpack.c.l.s8.bf16 %v96
    %v197 = vunpack.c.h.s8.bf16 %v93
    %v198 = vunpack.c.h.s8.bf16 %v94
    %v199 = vunpack.c.h.s8.bf16 %v95
    %v200 = vunpack.c.h.s8.bf16 %v96
    %v201 = vunpack.c.l.s8.bf16 %v97
    %v202 = vunpack.c.l.s8.bf16 %v98
    %v203 = vunpack.c.l.s8.bf16 %v99
    %v204 = vunpack.c.l.s8.bf16 %v100
    %v205 = vunpack.c.h.s8.bf16 %v97
    %v206 = vunpack.c.h.s8.bf16 %v98
    %v207 = vunpack.c.h.s8.bf16 %v99
    %v208 = vunpack.c.h.s8.bf16 %v100
    %v209 = vunpack.c.l.s8.bf16 %v101
    %v210 = vunpack.c.l.s8.bf16 %v102
    %v211 = vunpack.c.l.s8.bf16 %v103
    %v212 = vunpack.c.l.s8.bf16 %v104
    %v213 = vunpack.c.h.s8.bf16 %v101
    %v214 = vunpack.c.h.s8.bf16 %v102
    %v215 = vunpack.c.h.s8.bf16 %v103
    %v216 = vunpack.c.h.s8.bf16 %v104
    %v217 = vunpack.c.l.s8.bf16 %v105
    %v218 = vunpack.c.l.s8.bf16 %v106
    %v219 = vunpack.c.l.s8.bf16 %v107
    %v220 = vunpack.c.l.s8.bf16 %v108
    %v221 = vunpack.c.h.s8.bf16 %v105
    %v222 = vunpack.c.h.s8.bf16 %v106
    %v223 = vunpack.c.h.s8.bf16 %v107
    %v224 = vunpack.c.h.s8.bf16 %v108
    %v225 = vunpack.c.l.s8.bf16 %v109
    %v226 = vunpack.c.l.s8.bf16 %v110
    %v227 = vunpack.c.l.s8.bf16 %v111
    %v228 = vunpack.c.l.s8.bf16 %v112
    %v229 = vunpack.c.h.s8.bf16 %v109
    %v230 = vunpack.c.h.s8.bf16 %v110
    %v231 = vunpack.c.h.s8.bf16 %v111
    %v232 = vunpack.c.h.s8.bf16 %v112
    %v233 = vunpack.c.l.s8.bf16 %v113
    %v234 = vunpack.c.l.s8.bf16 %v114
    %v235 = vunpack.c.l.s8.bf16 %v115
    %v236 = vunpack.c.l.s8.bf16 %v116
    %v237 = vunpack.c.h.s8.bf16 %v113
    %v238 = vunpack.c.h.s8.bf16 %v114
    %v239 = vunpack.c.h.s8.bf16 %v115
    %v240 = vunpack.c.h.s8.bf16 %v116
    %v241 = vunpack.c.l.s8.bf16 %v117
    %v242 = vunpack.c.l.s8.bf16 %v118
    %v243 = vunpack.c.l.s8.bf16 %v119
    %v244 = vunpack.c.l.s8.bf16 %v120
    %v245 = vunpack.c.h.s8.bf16 %v117
    %v246 = vunpack.c.h.s8.bf16 %v118
    %v247 = vunpack.c.h.s8.bf16 %v119
    %v248 = vunpack.c.h.s8.bf16 %v120
    %v251 = vunpack.c.l.b16 %v55
    %v252 = vunpack.c.h.b16 %v55
    %v253 = vunpack.c.l.b16 %v56
    %v254 = vunpack.c.h.b16 %v56
    %v255 = vpack.c.b16 %v251, %v251
    %v256 = vpack.c.b16 %v252, %v252
    %v257 = vpack.c.b16 %v253, %v253
    %v258 = vpack.c.b16 %v254, %v254
    %263 = vmatprep.subr.bf16.mxu0 %v150
    %264 = vmatpush1.bf16.msra.mxu0 %v149
    %265 = vmatprep.subr.bf16.mxu0 %v146
    %266 = vmatpush1.bf16.msra.mxu0 %v145
    %267 = vmatprep.subr.bf16.mxu0 %v142
    %268 = vmatpush1.bf16.msra.mxu0 %v141
    %269 = vmatprep.subr.bf16.mxu0 %v138
    %270 = vmatpush1.bf16.msra.mxu0 %v137
    %271 = vmatprep.subr.bf16.mxu0 %v134
    %272 = vmatpush1.bf16.msra.mxu0 %v133
    %273 = vmatprep.subr.bf16.mxu0 %v130
    %274 = vmatpush1.bf16.msra.mxu0 %v129
    %275 = vmatprep.subr.bf16.mxu0 %v126
    %276 = vmatpush1.bf16.msra.mxu0 %v125
    %277 = vmatprep.subr.bf16.mxu0 %v122
    %278 = vmatpush1.bf16.msra.mxu0 %v121
    %279 = vmatprep.subr.bf16.mxu0 %v182
    %280 = vmatpush2.bf16.msra.mxu0 %v181
    %281 = vmatprep.subr.bf16.mxu0 %v178
    %282 = vmatpush2.bf16.msra.mxu0 %v177
    %283 = vmatprep.subr.bf16.mxu0 %v174
    %284 = vmatpush2.bf16.msra.mxu0 %v173
    %285 = vmatprep.subr.bf16.mxu0 %v170
    %286 = vmatpush2.bf16.msra.mxu0 %v169
    %287 = vmatprep.subr.bf16.mxu0 %v166
    %288 = vmatpush2.bf16.msra.mxu0 %v165
    %289 = vmatprep.subr.bf16.mxu0 %v162
    %290 = vmatpush2.bf16.msra.mxu0 %v161
    %291 = vmatprep.subr.bf16.mxu0 %v158
    %292 = vmatpush2.bf16.msra.mxu0 %v157
    %293 = vmatprep.subr.bf16.mxu0 %v154
    %294 = vmatpush2.bf16.msra.mxu0 %v153
    %295 = vmatprep.mubr.bf16.mxu0 %v256
    %296 = vmatmul.mubr.bf16.gmra.mxu0 %v255
    %v297 = vpop.f32.mrf.mxu0
    %v298 = vadd.f32 0.0, %v297
    %v299 = vpop.f32.mrf.mxu0
    %v300 = vadd.f32 0.0, %v299
    %v301 = vpop.f32.mrf.mxu0
    %v302 = vpop.f32.mrf.mxu0
    %303 = vdwg.mxu0
    %304 = vmatprep.subr.bf16.mxu0 %v214
    %305 = vmatpush1.bf16.msra.mxu0 %v213
    %306 = vmatprep.subr.bf16.mxu0 %v210
    %307 = vmatpush1.bf16.msra.mxu0 %v209
    %308 = vmatprep.subr.bf16.mxu0 %v206
    %309 = vmatpush1.bf16.msra.mxu0 %v205
    %310 = vmatprep.subr.bf16.mxu0 %v202
    %311 = vmatpush1.bf16.msra.mxu0 %v201
    %312 = vmatprep.subr.bf16.mxu0 %v198
    %313 = vmatpush1.bf16.msra.mxu0 %v197
    %314 = vmatprep.subr.bf16.mxu0 %v194
    %315 = vmatpush1.bf16.msra.mxu0 %v193
    %316 = vmatprep.subr.bf16.mxu0 %v190
    %317 = vmatpush1.bf16.msra.mxu0 %v189
    %318 = vmatprep.subr.bf16.mxu0 %v186
    %319 = vmatpush1.bf16.msra.mxu0 %v185
    %320 = vmatprep.subr.bf16.mxu0 %v246
    %321 = vmatpush2.bf16.msra.mxu0 %v245
    %322 = vmatprep.subr.bf16.mxu0 %v242
    %323 = vmatpush2.bf16.msra.mxu0 %v241
    %324 = vmatprep.subr.bf16.mxu0 %v238
    %325 = vmatpush2.bf16.msra.mxu0 %v237
    %326 = vmatprep.subr.bf16.mxu0 %v234
    %327 = vmatpush2.bf16.msra.mxu0 %v233
    %328 = vmatprep.subr.bf16.mxu0 %v230
    %329 = vmatpush2.bf16.msra.mxu0 %v229
    %330 = vmatprep.subr.bf16.mxu0 %v226
    %331 = vmatpush2.bf16.msra.mxu0 %v225
    %332 = vmatprep.subr.bf16.mxu0 %v222
    %333 = vmatpush2.bf16.msra.mxu0 %v221
    %334 = vmatprep.subr.bf16.mxu0 %v218
    %335 = vmatpush2.bf16.msra.mxu0 %v217
    %336 = vmatprep.mubr.bf16.mxu0 %v258
    %337 = vmatmul.mubr.bf16.gmra.mxu0 %v257
    %v338 = vpop.f32.mrf.mxu0
    %v339 = vadd.f32 %v298, %v338
    %v340 = vpop.f32.mrf.mxu0
    %v341 = vadd.f32 %v300, %v340
    %v342 = vpop.f32.mrf.mxu0
    %v343 = vpop.f32.mrf.mxu0
    %344 = vdwg.mxu0
    %345 = vmatprep.subr.bf16.mxu0 %v152
    %346 = vmatpush1.bf16.msra.mxu0 %v151
    %347 = vmatprep.subr.bf16.mxu0 %v148
    %348 = vmatpush1.bf16.msra.mxu0 %v147
    %349 = vmatprep.subr.bf16.mxu0 %v144
    %350 = vmatpush1.bf16.msra.mxu0 %v143
    %351 = vmatprep.subr.bf16.mxu0 %v140
    %352 = vmatpush1.bf16.msra.mxu0 %v139
    %353 = vmatprep.subr.bf16.mxu0 %v136
    %354 = vmatpush1.bf16.msra.mxu0 %v135
    %355 = vmatprep.subr.bf16.mxu0 %v132
    %356 = vmatpush1.bf16.msra.mxu0 %v131
    %357 = vmatprep.subr.bf16.mxu0 %v128
    %358 = vmatpush1.bf16.msra.mxu0 %v127
    %359 = vmatprep.subr.bf16.mxu0 %v124
    %360 = vmatpush1.bf16.msra.mxu0 %v123
    %361 = vmatprep.subr.bf16.mxu0 %v184
    %362 = vmatpush2.bf16.msra.mxu0 %v183
    %363 = vmatprep.subr.bf16.mxu0 %v180
    %364 = vmatpush2.bf16.msra.mxu0 %v179
    %365 = vmatprep.subr.bf16.mxu0 %v176
    %366 = vmatpush2.bf16.msra.mxu0 %v175
    %367 = vmatprep.subr.bf16.mxu0 %v172
    %368 = vmatpush2.bf16.msra.mxu0 %v171
    %369 = vmatprep.subr.bf16.mxu0 %v168
    %370 = vmatpush2.bf16.msra.mxu0 %v167
    %371 = vmatprep.subr.bf16.mxu0 %v164
    %372 = vmatpush2.bf16.msra.mxu0 %v163
    %373 = vmatprep.subr.bf16.mxu0 %v160
    %374 = vmatpush2.bf16.msra.mxu0 %v159
    %375 = vmatprep.subr.bf16.mxu0 %v156
    %376 = vmatpush2.bf16.msra.mxu0 %v155
    %377 = vmatprep.mubr.bf16.mxu0 %v256
    %378 = vmatmul.mubr.bf16.gmra.mxu0 %v255
    %v379 = vpop.f32.mrf.mxu0
    %v380 = vadd.f32 0.0, %v379
    %v381 = vpop.f32.mrf.mxu0
    %v382 = vadd.f32 0.0, %v381
    %v383 = vpop.f32.mrf.mxu0
    %v384 = vpop.f32.mrf.mxu0
    %385 = vdwg.mxu0
    %386 = vmatprep.subr.bf16.mxu0 %v216
    %387 = vmatpush1.bf16.msra.mxu0 %v215
    %388 = vmatprep.subr.bf16.mxu0 %v212
    %389 = vmatpush1.bf16.msra.mxu0 %v211
    %390 = vmatprep.subr.bf16.mxu0 %v208
    %391 = vmatpush1.bf16.msra.mxu0 %v207
    %392 = vmatprep.subr.bf16.mxu0 %v204
    %393 = vmatpush1.bf16.msra.mxu0 %v203
    %394 = vmatprep.subr.bf16.mxu0 %v200
    %395 = vmatpush1.bf16.msra.mxu0 %v199
    %396 = vmatprep.subr.bf16.mxu0 %v196
    %397 = vmatpush1.bf16.msra.mxu0 %v195
    %398 = vmatprep.subr.bf16.mxu0 %v192
    %399 = vmatpush1.bf16.msra.mxu0 %v191
    %400 = vmatprep.subr.bf16.mxu0 %v188
    %401 = vmatpush1.bf16.msra.mxu0 %v187
    %402 = vmatprep.subr.bf16.mxu0 %v248
    %403 = vmatpush2.bf16.msra.mxu0 %v247
    %404 = vmatprep.subr.bf16.mxu0 %v244
    %405 = vmatpush2.bf16.msra.mxu0 %v243
    %406 = vmatprep.subr.bf16.mxu0 %v240
    %407 = vmatpush2.bf16.msra.mxu0 %v239
    %408 = vmatprep.subr.bf16.mxu0 %v236
    %409 = vmatpush2.bf16.msra.mxu0 %v235
    %410 = vmatprep.subr.bf16.mxu0 %v232
    %411 = vmatpush2.bf16.msra.mxu0 %v231
    %412 = vmatprep.subr.bf16.mxu0 %v228
    %413 = vmatpush2.bf16.msra.mxu0 %v227
    %414 = vmatprep.subr.bf16.mxu0 %v224
    %415 = vmatpush2.bf16.msra.mxu0 %v223
    %416 = vmatprep.subr.bf16.mxu0 %v220
    %417 = vmatpush2.bf16.msra.mxu0 %v219
    %418 = vmatprep.mubr.bf16.mxu0 %v258
    %419 = vmatmul.mubr.bf16.gmra.mxu0 %v257
    %v420 = vpop.f32.mrf.mxu0
    %v421 = vadd.f32 %v380, %v420
    %v422 = vpop.f32.mrf.mxu0
    %v423 = vadd.f32 %v382, %v422
    %v424 = vpop.f32.mrf.mxu0
    %v425 = vpop.f32.mrf.mxu0
    %426 = vdwg.mxu0
    %v427 = vadd.f32 %v51, %v339
    %v428 = vadd.f32 %v52, %v341
    %v429 = vadd.f32 %v53, %v421
    %v430 = vadd.f32 %v54, %v423
    %431 = vst [vmem:[#allocation2] sm:$0xff] %v427
    %432 = vst [vmem:[#allocation2 + $0x8] sm:$0xff] %v428
    %433 = vst [vmem:[#allocation2 + $0x10] sm:$0xff] %v429
    %434 = vst [vmem:[#allocation2 + $0x18] sm:$0xff] %v430
    // Predicated region
    $region30: #{llama_decoder_layer.9} parent=1 // pred_check
      %p435 = pneg %p43
    $region31: #{llama_decoder_layer.9} parent=1 // pred_check_branch
      %437 = sbr.rel (%p435) target = $region33
    $region32: #{llama_decoder_layer.9} parent=1 // pred_region
      %v438 = vld [vmem:[#allocation2] sm:$0xff]
      %v439 = vld [vmem:[#allocation2 + $0x8] sm:$0xff]
      %v440 = vld [vmem:[#allocation2 + $0x10] sm:$0xff]
      %v441 = vld [vmem:[#allocation2 + $0x18] sm:$0xff]
      %v442 = vld [vmem:[#allocation5] sm:$0xf]
      %v444 = vlaneseq
      %v445 = vshrl.u32 %v444, 7
      %v446 = vsub.s32 0, %v445
      %v447 = vrot.slane %v442, %v446
      %v448 = vlaneseq
      %v449 = vshrl.u32 %v448, 7
      %v450 = vsub.s32 1, %v449
      %v451 = vrot.slane %v442, %v450
      %v452 = vlaneseq
      %v453 = vshrl.u32 %v452, 7
      %v454 = vsub.s32 2, %v453
      %v455 = vrot.slane %v442, %v454
      %v456 = vlaneseq
      %v457 = vshrl.u32 %v456, 7
      %v458 = vsub.s32 3, %v457
      %v459 = vrot.slane %v442, %v458
      %v464 = vmul.f32 %v438, %v447
      %v465 = vmul.f32 %v439, %v451
      %v466 = vmul.f32 %v440, %v455
      %v467 = vmul.f32 %v441, %v459
      %v468 = vld [vmem:[%s3] sm:$0xff]
      %v469 = vld [vmem:[%s3 + $0x8] sm:$0xff]
      %v470 = vld [vmem:[%s3 + $0x10] sm:$0xff]
      %v471 = vld [vmem:[%s3 + $0x18] sm:$0xff]
      %v472 = vadd.f32 %v464, %v468
      %v473 = vadd.f32 %v465, %v469
      %v474 = vadd.f32 %v466, %v470
      %v475 = vadd.f32 %v467, %v471
      %476 = vst [vmem:[%s4] sm:$0xff] %v472
      %477 = vst [vmem:[%s4 + $0x8] sm:$0xff] %v473
      %478 = vst [vmem:[%s4 + $0x10] sm:$0xff] %v474
      %479 = vst [vmem:[%s4 + $0x18] sm:$0xff] %v475
    $region33: #{llama_decoder_layer.9} parent=1 // pred_fallthru
      _
    // Predicated region
    $region34: #{llama_decoder_layer.9} parent=1 // pred_check
      _
    $region35: #{llama_decoder_layer.9} parent=1 // pred_check_branch
      %481 = sbr.rel (0) target = $region37
    $region36: #{llama_decoder_layer.9} parent=1 // pred_region
      _
    $region37: #{llama_decoder_layer.9} parent=1 // pred_fallthru
      _
    // Predicated region
    $region38: #{llama_decoder_layer.9} parent=1 // pred_check
      _
    $region39: #{llama_decoder_layer.9} parent=1 // pred_check_branch
      %483 = sbr.rel (0) target = $region41
    $region40: #{llama_decoder_layer.9} parent=1 // pred_region
      _
    $region41: #{llama_decoder_layer.9} parent=1 // pred_fallthru
      _
    %484 = vsyncpa [#allocation4], 1
    %485 = vsyncpa [#allocation6], 1

// kernel: llama_decoder_layer.11
$region0: #{llama_decoder_layer.11}
  #allocation0 [shape = 'u32[]', space=smem, size = 0x4, offset = 0x4, fixed_abs, tag = 'smem constant byte address 0x4 - core index']
  #allocation1 [shape = 'u32[144,128]{1,0:T(1,128)}', space=vmem, size = 0x12000, scoped, tag = 'internal scratch']
  #allocation2 [shape = 'f32[8,512]{1,0:T(8,128)}', space=vmem, size = 0x4000, scoped, tag = 'scratch operand']
  %s0 = inlined_call_operand.vmem [shape: bf16[8,1024], index: 0, kind: input, shape index: {}]
  %s1 = inlined_call_operand.vmem [shape: s8[1024,512], index: 1, kind: input, shape index: {}]
  %s2 = inlined_call_operand.vmem [shape: f32[1,512], index: 2, kind: input, shape index: {}]
  %s3 = inlined_call_operand.vmem [shape: f32[8,512], index: 3, kind: input, shape index: {}]
  %s4 = inlined_call_operand.hbm [shape: f32[8,512], index: 4, kind: output, shape index: {}]
  %s5 = sld [smem:[#allocation0]]
  $region34: #{llama_decoder_layer.11} parent=0
    _
  %s7 = ssub.s32 1, %s5
  %s8 = scalar_select 0, %s7, %s5
  $region1: #{llama_decoder_layer.11} parent=0
    #allocation3 [shape = 'u8[16384]{0}', space=vmem, size = 0x4000, scoped, tag = 'output window, operand 0, single buffered']
    #allocation4 [shape = 's32[1]{0}', space=sflag, size = 0x4, scoped, tag = 'scoped memory for llama_decoder_layer.11']
    %9 = vsyncpa [#allocation4], 0
    // Predicated region
    $region2: #{llama_decoder_layer.11} parent=1 // pred_check
      _
    $region3: #{llama_decoder_layer.11} parent=1 // pred_check_branch
      %11 = sbr.rel (0) target = $region5
    $region4: #{llama_decoder_layer.11} parent=1 // pred_region
      _
    $region5: #{llama_decoder_layer.11} parent=1 // pred_fallthru
      _
    // Predicated region
    $region6: #{llama_decoder_layer.11} parent=1 // pred_check
      _
    $region7: #{llama_decoder_layer.11} parent=1 // pred_check_branch
      %13 = sbr.rel (0) target = $region9
    $region8: #{llama_decoder_layer.11} parent=1 // pred_region
      _
    $region9: #{llama_decoder_layer.11} parent=1 // pred_fallthru
      _
    // Predicated region
    $region10: #{llama_decoder_layer.11} parent=1 // pred_check
      _
    $region11: #{llama_decoder_layer.11} parent=1 // pred_check_branch
      %15 = sbr.rel (0) target = $region13
    $region12: #{llama_decoder_layer.11} parent=1 // pred_region
      _
    $region13: #{llama_decoder_layer.11} parent=1 // pred_fallthru
      _
    // Predicated region
    $region14: #{llama_decoder_layer.11} parent=1 // pred_check
      _
    $region15: #{llama_decoder_layer.11} parent=1 // pred_check_branch
      %17 = sbr.rel (0) target = $region17
    $region16: #{llama_decoder_layer.11} parent=1 // pred_region
      _
    $region17: #{llama_decoder_layer.11} parent=1 // pred_fallthru
      _
    %p18 = scmp.eq.s32.totalorder 0, 0
    // Predicated region
    $region18: #{llama_decoder_layer.11} parent=1 // pred_check
      %p19 = pneg %p18
    $region19: #{llama_decoder_layer.11} parent=1 // pred_check_branch
      %21 = sbr.rel (%p19) target = $region21
    $region20: #{llama_decoder_layer.11} parent=1 // pred_region
      %22 = vst [vmem:[#allocation2] sm:$0xff] 0.0
      %23 = vst [vmem:[#allocation2 + $0x8] sm:$0xff] 0.0
      %24 = vst [vmem:[#allocation2 + $0x10] sm:$0xff] 0.0
      %25 = vst [vmem:[#allocation2 + $0x18] sm:$0xff] 0.0
    $region21: #{llama_decoder_layer.11} parent=1 // pred_fallthru
      _
    %v26 = vld [vmem:[#allocation2] sm:$0xff]
    %v27 = vld [vmem:[#allocation2 + $0x8] sm:$0xff]
    %v28 = vld [vmem:[#allocation2 + $0x10] sm:$0xff]
    %v29 = vld [vmem:[#allocation2 + $0x18] sm:$0xff]
    %v30 = vld [vmem:[%s0] sm:$0xff]
    %v31 = vld [vmem:[%s0 + $0x8] sm:$0xff]
    %v32 = vld [vmem:[%s0 + $0x10] sm:$0xff]
    %v33 = vld [vmem:[%s0 + $0x18] sm:$0xff]
    %v34 = vld [vmem:[%s1] sm:$0xff]
    %v35 = vld [vmem:[%s1 + $0x8] sm:$0xff]
    %v36 = vld [vmem:[%s1 + $0x10] sm:$0xff]
    %v37 = vld [vmem:[%s1 + $0x18] sm:$0xff]
    %v38 = vld [vmem:[%s1 + $0x20] sm:$0xff]
    %v39 = vld [vmem:[%s1 + $0x28] sm:$0xff]
    %v40 = vld [vmem:[%s1 + $0x30] sm:$0xff]
    %v41 = vld [vmem:[%s1 + $0x38] sm:$0xff]
    %v42 = vld [vmem:[%s1 + $0x40] sm:$0xff]
    %v43 = vld [vmem:[%s1 + $0x48] sm:$0xff]
    %v44 = vld [vmem:[%s1 + $0x50] sm:$0xff]
    %v45 = vld [vmem:[%s1 + $0x58] sm:$0xff]
    %v46 = vld [vmem:[%s1 + $0x60] sm:$0xff]
    %v47 = vld [vmem:[%s1 + $0x68] sm:$0xff]
    %v48 = vld [vmem:[%s1 + $0x70] sm:$0xff]
    %v49 = vld [vmem:[%s1 + $0x78] sm:$0xff]
    %v50 = vld [vmem:[%s1 + $0x80] sm:$0xff]
    %v51 = vld [vmem:[%s1 + $0x88] sm:$0xff]
    %v52 = vld [vmem:[%s1 + $0x90] sm:$0xff]
    %v53 = vld [vmem:[%s1 + $0x98] sm:$0xff]
    %v54 = vld [vmem:[%s1 + $0xa0] sm:$0xff]
    %v55 = vld [vmem:[%s1 + $0xa8] sm:$0xff]
    %v56 = vld [vmem:[%s1 + $0xb0] sm:$0xff]
    %v57 = vld [vmem:[%s1 + $0xb8] sm:$0xff]
    %v58 = vld [vmem:[%s1 + $0xc0] sm:$0xff]
    %v59 = vld [vmem:[%s1 + $0xc8] sm:$0xff]
    %v60 = vld [vmem:[%s1 + $0xd0] sm:$0xff]
    %v61 = vld [vmem:[%s1 + $0xd8] sm:$0xff]
    %v62 = vld [vmem:[%s1 + $0xe0] sm:$0xff]
    %v63 = vld [vmem:[%s1 + $0xe8] sm:$0xff]
    %v64 = vld [vmem:[%s1 + $0xf0] sm:$0xff]
    %v65 = vld [vmem:[%s1 + $0xf8] sm:$0xff]
    %v66 = vld [vmem:[%s1 + $0x100] sm:$0xff]
    %v67 = vld [vmem:[%s1 + $0x108] sm:$0xff]
    %v68 = vld [vmem:[%s1 + $0x110] sm:$0xff]
    %v69 = vld [vmem:[%s1 + $0x118] sm:$0xff]
    %v70 = vld [vmem:[%s1 + $0x120] sm:$0xff]
    %v71 = vld [vmem:[%s1 + $0x128] sm:$0xff]
    %v72 = vld [vmem:[%s1 + $0x130] sm:$0xff]
    %v73 = vld [vmem:[%s1 + $0x138] sm:$0xff]
    %v74 = vld [vmem:[%s1 + $0x140] sm:$0xff]
    %v75 = vld [vmem:[%s1 + $0x148] sm:$0xff]
    %v76 = vld [vmem:[%s1 + $0x150] sm:$0xff]
    %v77 = vld [vmem:[%s1 + $0x158] sm:$0xff]
    %v78 = vld [vmem:[%s1 + $0x160] sm:$0xff]
    %v79 = vld [vmem:[%s1 + $0x168] sm:$0xff]
    %v80 = vld [vmem:[%s1 + $0x170] sm:$0xff]
    %v81 = vld [vmem:[%s1 + $0x178] sm:$0xff]
    %v82 = vld [vmem:[%s1 + $0x180] sm:$0xff]
    %v83 = vld [vmem:[%s1 + $0x188] sm:$0xff]
    %v84 = vld [vmem:[%s1 + $0x190] sm:$0xff]
    %v85 = vld [vmem:[%s1 + $0x198] sm:$0xff]
    %v86 = vld [vmem:[%s1 + $0x1a0] sm:$0xff]
    %v87 = vld [vmem:[%s1 + $0x1a8] sm:$0xff]
    %v88 = vld [vmem:[%s1 + $0x1b0] sm:$0xff]
    %v89 = vld [vmem:[%s1 + $0x1b8] sm:$0xff]
    %v90 = vld [vmem:[%s1 + $0x1c0] sm:$0xff]
    %v91 = vld [vmem:[%s1 + $0x1c8] sm:$0xff]
    %v92 = vld [vmem:[%s1 + $0x1d0] sm:$0xff]
    %v93 = vld [vmem:[%s1 + $0x1d8] sm:$0xff]
    %v94 = vld [vmem:[%s1 + $0x1e0] sm:$0xff]
    %v95 = vld [vmem:[%s1 + $0x1e8] sm:$0xff]
    %v96 = vld [vmem:[%s1 + $0x1f0] sm:$0xff]
    %v97 = vld [vmem:[%s1 + $0x1f8] sm:$0xff]
    %v98 = vld [vmem:[%s1 + $0x200] sm:$0xff]
    %v99 = vld [vmem:[%s1 + $0x208] sm:$0xff]
    %v100 = vld [vmem:[%s1 + $0x210] sm:$0xff]
    %v101 = vld [vmem:[%s1 + $0x218] sm:$0xff]
    %v102 = vld [vmem:[%s1 + $0x220] sm:$0xff]
    %v103 = vld [vmem:[%s1 + $0x228] sm:$0xff]
    %v104 = vld [vmem:[%s1 + $0x230] sm:$0xff]
    %v105 = vld [vmem:[%s1 + $0x238] sm:$0xff]
    %v106 = vld [vmem:[%s1 + $0x240] sm:$0xff]
    %v107 = vld [vmem:[%s1 + $0x248] sm:$0xff]
    %v108 = vld [vmem:[%s1 + $0x250] sm:$0xff]
    %v109 = vld [vmem:[%s1 + $0x258] sm:$0xff]
    %v110 = vld [vmem:[%s1 + $0x260] sm:$0xff]
    %v111 = vld [vmem:[%s1 + $0x268] sm:$0xff]
    %v112 = vld [vmem:[%s1 + $0x270] sm:$0xff]
    %v113 = vld [vmem:[%s1 + $0x278] sm:$0xff]
    %v114 = vld [vmem:[%s1 + $0x280] sm:$0xff]
    %v115 = vld [vmem:[%s1 + $0x288] sm:$0xff]
    %v116 = vld [vmem:[%s1 + $0x290] sm:$0xff]
    %v117 = vld [vmem:[%s1 + $0x298] sm:$0xff]
    %v118 = vld [vmem:[%s1 + $0x2a0] sm:$0xff]
    %v119 = vld [vmem:[%s1 + $0x2a8] sm:$0xff]
    %v120 = vld [vmem:[%s1 + $0x2b0] sm:$0xff]
    %v121 = vld [vmem:[%s1 + $0x2b8] sm:$0xff]
    %v122 = vld [vmem:[%s1 + $0x2c0] sm:$0xff]
    %v123 = vld [vmem:[%s1 + $0x2c8] sm:$0xff]
    %v124 = vld [vmem:[%s1 + $0x2d0] sm:$0xff]
    %v125 = vld [vmem:[%s1 + $0x2d8] sm:$0xff]
    %v126 = vld [vmem:[%s1 + $0x2e0] sm:$0xff]
    %v127 = vld [vmem:[%s1 + $0x2e8] sm:$0xff]
    %v128 = vld [vmem:[%s1 + $0x2f0] sm:$0xff]
    %v129 = vld [vmem:[%s1 + $0x2f8] sm:$0xff]
    %v130 = vld [vmem:[%s1 + $0x300] sm:$0xff]
    %v131 = vld [vmem:[%s1 + $0x308] sm:$0xff]
    %v132 = vld [vmem:[%s1 + $0x310] sm:$0xff]
    %v133 = vld [vmem:[%s1 + $0x318] sm:$0xff]
    %v134 = vld [vmem:[%s1 + $0x320] sm:$0xff]
    %v135 = vld [vmem:[%s1 + $0x328] sm:$0xff]
    %v136 = vld [vmem:[%s1 + $0x330] sm:$0xff]
    %v137 = vld [vmem:[%s1 + $0x338] sm:$0xff]
    %v138 = vld [vmem:[%s1 + $0x340] sm:$0xff]
    %v139 = vld [vmem:[%s1 + $0x348] sm:$0xff]
    %v140 = vld [vmem:[%s1 + $0x350] sm:$0xff]
    %v141 = vld [vmem:[%s1 + $0x358] sm:$0xff]
    %v142 = vld [vmem:[%s1 + $0x360] sm:$0xff]
    %v143 = vld [vmem:[%s1 + $0x368] sm:$0xff]
    %v144 = vld [vmem:[%s1 + $0x370] sm:$0xff]
    %v145 = vld [vmem:[%s1 + $0x378] sm:$0xff]
    %v146 = vld [vmem:[%s1 + $0x380] sm:$0xff]
    %v147 = vld [vmem:[%s1 + $0x388] sm:$0xff]
    %v148 = vld [vmem:[%s1 + $0x390] sm:$0xff]
    %v149 = vld [vmem:[%s1 + $0x398] sm:$0xff]
    %v150 = vld [vmem:[%s1 + $0x3a0] sm:$0xff]
    %v151 = vld [vmem:[%s1 + $0x3a8] sm:$0xff]
    %v152 = vld [vmem:[%s1 + $0x3b0] sm:$0xff]
    %v153 = vld [vmem:[%s1 + $0x3b8] sm:$0xff]
    %v154 = vld [vmem:[%s1 + $0x3c0] sm:$0xff]
    %v155 = vld [vmem:[%s1 + $0x3c8] sm:$0xff]
    %v156 = vld [vmem:[%s1 + $0x3d0] sm:$0xff]
    %v157 = vld [vmem:[%s1 + $0x3d8] sm:$0xff]
    %v158 = vld [vmem:[%s1 + $0x3e0] sm:$0xff]
    %v159 = vld [vmem:[%s1 + $0x3e8] sm:$0xff]
    %v160 = vld [vmem:[%s1 + $0x3f0] sm:$0xff]
    %v161 = vld [vmem:[%s1 + $0x3f8] sm:$0xff]
    %v162 = vunpack.c.l.s8.bf16 %v34
    %v163 = vunpack.c.l.s8.bf16 %v35
    %v164 = vunpack.c.l.s8.bf16 %v36
    %v165 = vunpack.c.l.s8.bf16 %v37
    %v166 = vunpack.c.h.s8.bf16 %v34
    %v167 = vunpack.c.h.s8.bf16 %v35
    %v168 = vunpack.c.h.s8.bf16 %v36
    %v169 = vunpack.c.h.s8.bf16 %v37
    %v170 = vunpack.c.l.s8.bf16 %v38
    %v171 = vunpack.c.l.s8.bf16 %v39
    %v172 = vunpack.c.l.s8.bf16 %v40
    %v173 = vunpack.c.l.s8.bf16 %v41
    %v174 = vunpack.c.h.s8.bf16 %v38
    %v175 = vunpack.c.h.s8.bf16 %v39
    %v176 = vunpack.c.h.s8.bf16 %v40
    %v177 = vunpack.c.h.s8.bf16 %v41
    %v178 = vunpack.c.l.s8.bf16 %v42
    %v179 = vunpack.c.l.s8.bf16 %v43
    %v180 = vunpack.c.l.s8.bf16 %v44
    %v181 = vunpack.c.l.s8.bf16 %v45
    %v182 = vunpack.c.h.s8.bf16 %v42
    %v183 = vunpack.c.h.s8.bf16 %v43
    %v184 = vunpack.c.h.s8.bf16 %v44
    %v185 = vunpack.c.h.s8.bf16 %v45
    %v186 = vunpack.c.l.s8.bf16 %v46
    %v187 = vunpack.c.l.s8.bf16 %v47
    %v188 = vunpack.c.l.s8.bf16 %v48
    %v189 = vunpack.c.l.s8.bf16 %v49
    %v190 = vunpack.c.h.s8.bf16 %v46
    %v191 = vunpack.c.h.s8.bf16 %v47
    %v192 = vunpack.c.h.s8.bf16 %v48
    %v193 = vunpack.c.h.s8.bf16 %v49
    %v194 = vunpack.c.l.s8.bf16 %v50
    %v195 = vunpack.c.l.s8.bf16 %v51
    %v196 = vunpack.c.l.s8.bf16 %v52
    %v197 = vunpack.c.l.s8.bf16 %v53
    %v198 = vunpack.c.h.s8.bf16 %v50
    %v199 = vunpack.c.h.s8.bf16 %v51
    %v200 = vunpack.c.h.s8.bf16 %v52
    %v201 = vunpack.c.h.s8.bf16 %v53
    %v202 = vunpack.c.l.s8.bf16 %v54
    %v203 = vunpack.c.l.s8.bf16 %v55
    %v204 = vunpack.c.l.s8.bf16 %v56
    %v205 = vunpack.c.l.s8.bf16 %v57
    %v206 = vunpack.c.h.s8.bf16 %v54
    %v207 = vunpack.c.h.s8.bf16 %v55
    %v208 = vunpack.c.h.s8.bf16 %v56
    %v209 = vunpack.c.h.s8.bf16 %v57
    %v210 = vunpack.c.l.s8.bf16 %v58
    %v211 = vunpack.c.l.s8.bf16 %v59
    %v212 = vunpack.c.l.s8.bf16 %v60
    %v213 = vunpack.c.l.s8.bf16 %v61
    %v214 = vunpack.c.h.s8.bf16 %v58
    %v215 = vunpack.c.h.s8.bf16 %v59
    %v216 = vunpack.c.h.s8.bf16 %v60
    %v217 = vunpack.c.h.s8.bf16 %v61
    %v218 = vunpack.c.l.s8.bf16 %v62
    %v219 = vunpack.c.l.s8.bf16 %v63
    %v220 = vunpack.c.l.s8.bf16 %v64
    %v221 = vunpack.c.l.s8.bf16 %v65
    %v222 = vunpack.c.h.s8.bf16 %v62
    %v223 = vunpack.c.h.s8.bf16 %v63
    %v224 = vunpack.c.h.s8.bf16 %v64
    %v225 = vunpack.c.h.s8.bf16 %v65
    %v226 = vunpack.c.l.s8.bf16 %v66
    %v227 = vunpack.c.l.s8.bf16 %v67
    %v228 = vunpack.c.l.s8.bf16 %v68
    %v229 = vunpack.c.l.s8.bf16 %v69
    %v230 = vunpack.c.h.s8.bf16 %v66
    %v231 = vunpack.c.h.s8.bf16 %v67
    %v232 = vunpack.c.h.s8.bf16 %v68
    %v233 = vunpack.c.h.s8.bf16 %v69
    %v234 = vunpack.c.l.s8.bf16 %v70
    %v235 = vunpack.c.l.s8.bf16 %v71
    %v236 = vunpack.c.l.s8.bf16 %v72
    %v237 = vunpack.c.l.s8.bf16 %v73
    %v238 = vunpack.c.h.s8.bf16 %v70
    %v239 = vunpack.c.h.s8.bf16 %v71
    %v240 = vunpack.c.h.s8.bf16 %v72
    %v241 = vunpack.c.h.s8.bf16 %v73
    %v242 = vunpack.c.l.s8.bf16 %v74
    %v243 = vunpack.c.l.s8.bf16 %v75
    %v244 = vunpack.c.l.s8.bf16 %v76
    %v245 = vunpack.c.l.s8.bf16 %v77
    %v246 = vunpack.c.h.s8.bf16 %v74
    %v247 = vunpack.c.h.s8.bf16 %v75
    %v248 = vunpack.c.h.s8.bf16 %v76
    %v249 = vunpack.c.h.s8.bf16 %v77
    %v250 = vunpack.c.l.s8.bf16 %v78
    %v251 = vunpack.c.l.s8.bf16 %v79
    %v252 = vunpack.c.l.s8.bf16 %v80
    %v253 = vunpack.c.l.s8.bf16 %v81
    %v254 = vunpack.c.h.s8.bf16 %v78
    %v255 = vunpack.c.h.s8.bf16 %v79
    %v256 = vunpack.c.h.s8.bf16 %v80
    %v257 = vunpack.c.h.s8.bf16 %v81
    %v258 = vunpack.c.l.s8.bf16 %v82
    %v259 = vunpack.c.l.s8.bf16 %v83
    %v260 = vunpack.c.l.s8.bf16 %v84
    %v261 = vunpack.c.l.s8.bf16 %v85
    %v262 = vunpack.c.h.s8.bf16 %v82
    %v263 = vunpack.c.h.s8.bf16 %v83
    %v264 = vunpack.c.h.s8.bf16 %v84
    %v265 = vunpack.c.h.s8.bf16 %v85
    %v266 = vunpack.c.l.s8.bf16 %v86
    %v267 = vunpack.c.l.s8.bf16 %v87
    %v268 = vunpack.c.l.s8.bf16 %v88
    %v269 = vunpack.c.l.s8.bf16 %v89
    %v270 = vunpack.c.h.s8.bf16 %v86
    %v271 = vunpack.c.h.s8.bf16 %v87
    %v272 = vunpack.c.h.s8.bf16 %v88
    %v273 = vunpack.c.h.s8.bf16 %v89
    %v274 = vunpack.c.l.s8.bf16 %v90
    %v275 = vunpack.c.l.s8.bf16 %v91
    %v276 = vunpack.c.l.s8.bf16 %v92
    %v277 = vunpack.c.l.s8.bf16 %v93
    %v278 = vunpack.c.h.s8.bf16 %v90
    %v279 = vunpack.c.h.s8.bf16 %v91
    %v280 = vunpack.c.h.s8.bf16 %v92
    %v281 = vunpack.c.h.s8.bf16 %v93
    %v282 = vunpack.c.l.s8.bf16 %v94
    %v283 = vunpack.c.l.s8.bf16 %v95
    %v284 = vunpack.c.l.s8.bf16 %v96
    %v285 = vunpack.c.l.s8.bf16 %v97
    %v286 = vunpack.c.h.s8.bf16 %v94
    %v287 = vunpack.c.h.s8.bf16 %v95
    %v288 = vunpack.c.h.s8.bf16 %v96
    %v289 = vunpack.c.h.s8.bf16 %v97
    %v290 = vunpack.c.l.s8.bf16 %v98
    %v291 = vunpack.c.l.s8.bf16 %v99
    %v292 = vunpack.c.l.s8.bf16 %v100
    %v293 = vunpack.c.l.s8.bf16 %v101
    %v294 = vunpack.c.h.s8.bf16 %v98
    %v295 = vunpack.c.h.s8.bf16 %v99
    %v296 = vunpack.c.h.s8.bf16 %v100
    %v297 = vunpack.c.h.s8.bf16 %v101
    %v298 = vunpack.c.l.s8.bf16 %v102
    %v299 = vunpack.c.l.s8.bf16 %v103
    %v300 = vunpack.c.l.s8.bf16 %v104
    %v301 = vunpack.c.l.s8.bf16 %v105
    %v302 = vunpack.c.h.s8.bf16 %v102
    %v303 = vunpack.c.h.s8.bf16 %v103
    %v304 = vunpack.c.h.s8.bf16 %v104
    %v305 = vunpack.c.h.s8.bf16 %v105
    %v306 = vunpack.c.l.s8.bf16 %v106
    %v307 = vunpack.c.l.s8.bf16 %v107
    %v308 = vunpack.c.l.s8.bf16 %v108
    %v309 = vunpack.c.l.s8.bf16 %v109
    %v310 = vunpack.c.h.s8.bf16 %v106
    %v311 = vunpack.c.h.s8.bf16 %v107
    %v312 = vunpack.c.h.s8.bf16 %v108
    %v313 = vunpack.c.h.s8.bf16 %v109
    %v314 = vunpack.c.l.s8.bf16 %v110
    %v315 = vunpack.c.l.s8.bf16 %v111
    %v316 = vunpack.c.l.s8.bf16 %v112
    %v317 = vunpack.c.l.s8.bf16 %v113
    %v318 = vunpack.c.h.s8.bf16 %v110
    %v319 = vunpack.c.h.s8.bf16 %v111
    %v320 = vunpack.c.h.s8.bf16 %v112
    %v321 = vunpack.c.h.s8.bf16 %v113
    %v322 = vunpack.c.l.s8.bf16 %v114
    %v323 = vunpack.c.l.s8.bf16 %v115
    %v324 = vunpack.c.l.s8.bf16 %v116
    %v325 = vunpack.c.l.s8.bf16 %v117
    %v326 = vunpack.c.h.s8.bf16 %v114
    %v327 = vunpack.c.h.s8.bf16 %v115
    %v328 = vunpack.c.h.s8.bf16 %v116
    %v329 = vunpack.c.h.s8.bf16 %v117
    %v330 = vunpack.c.l.s8.bf16 %v118
    %v331 = vunpack.c.l.s8.bf16 %v119
    %v332 = vunpack.c.l.s8.bf16 %v120
    %v333 = vunpack.c.l.s8.bf16 %v121
    %v334 = vunpack.c.h.s8.bf16 %v118
    %v335 = vunpack.c.h.s8.bf16 %v119
    %v336 = vunpack.c.h.s8.bf16 %v120
    %v337 = vunpack.c.h.s8.bf16 %v121
    %v338 = vunpack.c.l.s8.bf16 %v122
    %v339 = vunpack.c.l.s8.bf16 %v123
    %v340 = vunpack.c.l.s8.bf16 %v124
    %v341 = vunpack.c.l.s8.bf16 %v125
    %v342 = vunpack.c.h.s8.bf16 %v122
    %v343 = vunpack.c.h.s8.bf16 %v123
    %v344 = vunpack.c.h.s8.bf16 %v124
    %v345 = vunpack.c.h.s8.bf16 %v125
    %v346 = vunpack.c.l.s8.bf16 %v126
    %v347 = vunpack.c.l.s8.bf16 %v127
    %v348 = vunpack.c.l.s8.bf16 %v128
    %v349 = vunpack.c.l.s8.bf16 %v129
    %v350 = vunpack.c.h.s8.bf16 %v126
    %v351 = vunpack.c.h.s8.bf16 %v127
    %v352 = vunpack.c.h.s8.bf16 %v128
    %v353 = vunpack.c.h.s8.bf16 %v129
    %v354 = vunpack.c.l.s8.bf16 %v130
    %v355 = vunpack.c.l.s8.bf16 %v131
    %v356 = vunpack.c.l.s8.bf16 %v132
    %v357 = vunpack.c.l.s8.bf16 %v133
    %v358 = vunpack.c.h.s8.bf16 %v130
    %v359 = vunpack.c.h.s8.bf16 %v131
    %v360 = vunpack.c.h.s8.bf16 %v132
    %v361 = vunpack.c.h.s8.bf16 %v133
    %v362 = vunpack.c.l.s8.bf16 %v134
    %v363 = vunpack.c.l.s8.bf16 %v135
    %v364 = vunpack.c.l.s8.bf16 %v136
    %v365 = vunpack.c.l.s8.bf16 %v137
    %v366 = vunpack.c.h.s8.bf16 %v134
    %v367 = vunpack.c.h.s8.bf16 %v135
    %v368 = vunpack.c.h.s8.bf16 %v136
    %v369 = vunpack.c.h.s8.bf16 %v137
    %v370 = vunpack.c.l.s8.bf16 %v138
    %v371 = vunpack.c.l.s8.bf16 %v139
    %v372 = vunpack.c.l.s8.bf16 %v140
    %v373 = vunpack.c.l.s8.bf16 %v141
    %v374 = vunpack.c.h.s8.bf16 %v138
    %v375 = vunpack.c.h.s8.bf16 %v139
    %v376 = vunpack.c.h.s8.bf16 %v140
    %v377 = vunpack.c.h.s8.bf16 %v141
    %v378 = vunpack.c.l.s8.bf16 %v142
    %v379 = vunpack.c.l.s8.bf16 %v143
    %v380 = vunpack.c.l.s8.bf16 %v144
    %v381 = vunpack.c.l.s8.bf16 %v145
    %v382 = vunpack.c.h.s8.bf16 %v142
    %v383 = vunpack.c.h.s8.bf16 %v143
    %v384 = vunpack.c.h.s8.bf16 %v144
    %v385 = vunpack.c.h.s8.bf16 %v145
    %v386 = vunpack.c.l.s8.bf16 %v146
    %v387 = vunpack.c.l.s8.bf16 %v147
    %v388 = vunpack.c.l.s8.bf16 %v148
    %v389 = vunpack.c.l.s8.bf16 %v149
    %v390 = vunpack.c.h.s8.bf16 %v146
    %v391 = vunpack.c.h.s8.bf16 %v147
    %v392 = vunpack.c.h.s8.bf16 %v148
    %v393 = vunpack.c.h.s8.bf16 %v149
    %v394 = vunpack.c.l.s8.bf16 %v150
    %v395 = vunpack.c.l.s8.bf16 %v151
    %v396 = vunpack.c.l.s8.bf16 %v152
    %v397 = vunpack.c.l.s8.bf16 %v153
    %v398 = vunpack.c.h.s8.bf16 %v150
    %v399 = vunpack.c.h.s8.bf16 %v151
    %v400 = vunpack.c.h.s8.bf16 %v152
    %v401 = vunpack.c.h.s8.bf16 %v153
    %v402 = vunpack.c.l.s8.bf16 %v154
    %v403 = vunpack.c.l.s8.bf16 %v155
    %v404 = vunpack.c.l.s8.bf16 %v156
    %v405 = vunpack.c.l.s8.bf16 %v157
    %v406 = vunpack.c.h.s8.bf16 %v154
    %v407 = vunpack.c.h.s8.bf16 %v155
    %v408 = vunpack.c.h.s8.bf16 %v156
    %v409 = vunpack.c.h.s8.bf16 %v157
    %v410 = vunpack.c.l.s8.bf16 %v158
    %v411 = vunpack.c.l.s8.bf16 %v159
    %v412 = vunpack.c.l.s8.bf16 %v160
    %v413 = vunpack.c.l.s8.bf16 %v161
    %v414 = vunpack.c.h.s8.bf16 %v158
    %v415 = vunpack.c.h.s8.bf16 %v159
    %v416 = vunpack.c.h.s8.bf16 %v160
    %v417 = vunpack.c.h.s8.bf16 %v161
    %v422 = vunpack.c.l.b16 %v30
    %v423 = vunpack.c.h.b16 %v30
    %v424 = vunpack.c.l.b16 %v31
    %v425 = vunpack.c.h.b16 %v31
    %v426 = vunpack.c.l.b16 %v32
    %v427 = vunpack.c.h.b16 %v32
    %v428 = vunpack.c.l.b16 %v33
    %v429 = vunpack.c.h.b16 %v33
    %v430 = vpack.c.b16 %v422, %v422
    %v431 = vpack.c.b16 %v423, %v423
    %v432 = vpack.c.b16 %v424, %v424
    %v433 = vpack.c.b16 %v425, %v425
    %v434 = vpack.c.b16 %v426, %v426
    %v435 = vpack.c.b16 %v427, %v427
    %v436 = vpack.c.b16 %v428, %v428
    %v437 = vpack.c.b16 %v429, %v429
    %446 = vmatprep.subr.bf16.mxu0 %v191
    %447 = vmatpush1.bf16.msra.mxu0 %v190
    %448 = vmatprep.subr.bf16.mxu0 %v187
    %449 = vmatpush1.bf16.msra.mxu0 %v186
    %450 = vmatprep.subr.bf16.mxu0 %v183
    %451 = vmatpush1.bf16.msra.mxu0 %v182
    %452 = vmatprep.subr.bf16.mxu0 %v179
    %453 = vmatpush1.bf16.msra.mxu0 %v178
    %454 = vmatprep.subr.bf16.mxu0 %v175
    %455 = vmatpush1.bf16.msra.mxu0 %v174
    %456 = vmatprep.subr.bf16.mxu0 %v171
    %457 = vmatpush1.bf16.msra.mxu0 %v170
    %458 = vmatprep.subr.bf16.mxu0 %v167
    %459 = vmatpush1.bf16.msra.mxu0 %v166
    %460 = vmatprep.subr.bf16.mxu0 %v163
    %461 = vmatpush1.bf16.msra.mxu0 %v162
    %462 = vmatprep.subr.bf16.mxu0 %v223
    %463 = vmatpush2.bf16.msra.mxu0 %v222
    %464 = vmatprep.subr.bf16.mxu0 %v219
    %465 = vmatpush2.bf16.msra.mxu0 %v218
    %466 = vmatprep.subr.bf16.mxu0 %v215
    %467 = vmatpush2.bf16.msra.mxu0 %v214
    %468 = vmatprep.subr.bf16.mxu0 %v211
    %469 = vmatpush2.bf16.msra.mxu0 %v210
    %470 = vmatprep.subr.bf16.mxu0 %v207
    %471 = vmatpush2.bf16.msra.mxu0 %v206
    %472 = vmatprep.subr.bf16.mxu0 %v203
    %473 = vmatpush2.bf16.msra.mxu0 %v202
    %474 = vmatprep.subr.bf16.mxu0 %v199
    %475 = vmatpush2.bf16.msra.mxu0 %v198
    %476 = vmatprep.subr.bf16.mxu0 %v195
    %477 = vmatpush2.bf16.msra.mxu0 %v194
    %478 = vmatprep.mubr.bf16.mxu0 %v431
    %479 = vmatmul.mubr.bf16.gmra.mxu0 %v430
    %v480 = vpop.f32.mrf.mxu0
    %v481 = vadd.f32 0.0, %v480
    %v482 = vpop.f32.mrf.mxu0
    %v483 = vadd.f32 0.0, %v482
    %v484 = vpop.f32.mrf.mxu0
    %v485 = vpop.f32.mrf.mxu0
    %486 = vdwg.mxu0
    %487 = vmatprep.subr.bf16.mxu0 %v255
    %488 = vmatpush1.bf16.msra.mxu0 %v254
    %489 = vmatprep.subr.bf16.mxu0 %v251
    %490 = vmatpush1.bf16.msra.mxu0 %v250
    %491 = vmatprep.subr.bf16.mxu0 %v247
    %492 = vmatpush1.bf16.msra.mxu0 %v246
    %493 = vmatprep.subr.bf16.mxu0 %v243
    %494 = vmatpush1.bf16.msra.mxu0 %v242
    %495 = vmatprep.subr.bf16.mxu0 %v239
    %496 = vmatpush1.bf16.msra.mxu0 %v238
    %497 = vmatprep.subr.bf16.mxu0 %v235
    %498 = vmatpush1.bf16.msra.mxu0 %v234
    %499 = vmatprep.subr.bf16.mxu0 %v231
    %500 = vmatpush1.bf16.msra.mxu0 %v230
    %501 = vmatprep.subr.bf16.mxu0 %v227
    %502 = vmatpush1.bf16.msra.mxu0 %v226
    %503 = vmatprep.subr.bf16.mxu0 %v287
    %504 = vmatpush2.bf16.msra.mxu0 %v286
    %505 = vmatprep.subr.bf16.mxu0 %v283
    %506 = vmatpush2.bf16.msra.mxu0 %v282
    %507 = vmatprep.subr.bf16.mxu0 %v279
    %508 = vmatpush2.bf16.msra.mxu0 %v278
    %509 = vmatprep.subr.bf16.mxu0 %v275
    %510 = vmatpush2.bf16.msra.mxu0 %v274
    %511 = vmatprep.subr.bf16.mxu0 %v271
    %512 = vmatpush2.bf16.msra.mxu0 %v270
    %513 = vmatprep.subr.bf16.mxu0 %v267
    %514 = vmatpush2.bf16.msra.mxu0 %v266
    %515 = vmatprep.subr.bf16.mxu0 %v263
    %516 = vmatpush2.bf16.msra.mxu0 %v262
    %517 = vmatprep.subr.bf16.mxu0 %v259
    %518 = vmatpush2.bf16.msra.mxu0 %v258
    %519 = vmatprep.mubr.bf16.mxu0 %v433
    %520 = vmatmul.mubr.bf16.gmra.mxu0 %v432
    %v521 = vpop.f32.mrf.mxu0
    %v522 = vadd.f32 %v481, %v521
    %v523 = vpop.f32.mrf.mxu0
    %v524 = vadd.f32 %v483, %v523
    %v525 = vpop.f32.mrf.mxu0
    %v526 = vpop.f32.mrf.mxu0
    %527 = vdwg.mxu0
    %528 = vmatprep.subr.bf16.mxu0 %v319
    %529 = vmatpush1.bf16.msra.mxu0 %v318
    %530 = vmatprep.subr.bf16.mxu0 %v315
    %531 = vmatpush1.bf16.msra.mxu0 %v314
    %532 = vmatprep.subr.bf16.mxu0 %v311
    %533 = vmatpush1.bf16.msra.mxu0 %v310
    %534 = vmatprep.subr.bf16.mxu0 %v307
    %535 = vmatpush1.bf16.msra.mxu0 %v306
    %536 = vmatprep.subr.bf16.mxu0 %v303
    %537 = vmatpush1.bf16.msra.mxu0 %v302
    %538 = vmatprep.subr.bf16.mxu0 %v299
    %539 = vmatpush1.bf16.msra.mxu0 %v298
    %540 = vmatprep.subr.bf16.mxu0 %v295
    %541 = vmatpush1.bf16.msra.mxu0 %v294
    %542 = vmatprep.subr.bf16.mxu0 %v291
    %543 = vmatpush1.bf16.msra.mxu0 %v290
    %544 = vmatprep.subr.bf16.mxu0 %v351
    %545 = vmatpush2.bf16.msra.mxu0 %v350
    %546 = vmatprep.subr.bf16.mxu0 %v347
    %547 = vmatpush2.bf16.msra.mxu0 %v346
    %548 = vmatprep.subr.bf16.mxu0 %v343
    %549 = vmatpush2.bf16.msra.mxu0 %v342
    %550 = vmatprep.subr.bf16.mxu0 %v339
    %551 = vmatpush2.bf16.msra.mxu0 %v338
    %552 = vmatprep.subr.bf16.mxu0 %v335
    %553 = vmatpush2.bf16.msra.mxu0 %v334
    %554 = vmatprep.subr.bf16.mxu0 %v331
    %555 = vmatpush2.bf16.msra.mxu0 %v330
    %556 = vmatprep.subr.bf16.mxu0 %v327
    %557 = vmatpush2.bf16.msra.mxu0 %v326
    %558 = vmatprep.subr.bf16.mxu0 %v323
    %559 = vmatpush2.bf16.msra.mxu0 %v322
    %560 = vmatprep.mubr.bf16.mxu0 %v435
    %561 = vmatmul.mubr.bf16.gmra.mxu0 %v434
    %v562 = vpop.f32.mrf.mxu0
    %v563 = vadd.f32 %v522, %v562
    %v564 = vpop.f32.mrf.mxu0
    %v565 = vadd.f32 %v524, %v564
    %v566 = vpop.f32.mrf.mxu0
    %v567 = vpop.f32.mrf.mxu0
    %568 = vdwg.mxu0
    %569 = vmatprep.subr.bf16.mxu0 %v383
    %570 = vmatpush1.bf16.msra.mxu0 %v382
    %571 = vmatprep.subr.bf16.mxu0 %v379
    %572 = vmatpush1.bf16.msra.mxu0 %v378
    %573 = vmatprep.subr.bf16.mxu0 %v375
    %574 = vmatpush1.bf16.msra.mxu0 %v374
    %575 = vmatprep.subr.bf16.mxu0 %v371
    %576 = vmatpush1.bf16.msra.mxu0 %v370
    %577 = vmatprep.subr.bf16.mxu0 %v367
    %578 = vmatpush1.bf16.msra.mxu0 %v366
    %579 = vmatprep.subr.bf16.mxu0 %v363
    %580 = vmatpush1.bf16.msra.mxu0 %v362
    %581 = vmatprep.subr.bf16.mxu0 %v359
    %582 = vmatpush1.bf16.msra.mxu0 %v358
    %583 = vmatprep.subr.bf16.mxu0 %v355
    %584 = vmatpush1.bf16.msra.mxu0 %v354
    %585 = vmatprep.subr.bf16.mxu0 %v415
    %586 = vmatpush2.bf16.msra.mxu0 %v414
    %587 = vmatprep.subr.bf16.mxu0 %v411
    %588 = vmatpush2.bf16.msra.mxu0 %v410
    %589 = vmatprep.subr.bf16.mxu0 %v407
    %590 = vmatpush2.bf16.msra.mxu0 %v406
    %591 = vmatprep.subr.bf16.mxu0 %v403
    %592 = vmatpush2.bf16.msra.mxu0 %v402
    %593 = vmatprep.subr.bf16.mxu0 %v399
    %594 = vmatpush2.bf16.msra.mxu0 %v398
    %595 = vmatprep.subr.bf16.mxu0 %v395
    %596 = vmatpush2.bf16.msra.mxu0 %v394
    %597 = vmatprep.subr.bf16.mxu0 %v391
    %598 = vmatpush2.bf16.msra.mxu0 %v390
    %599 = vmatprep.subr.bf16.mxu0 %v387
    %600 = vmatpush2.bf16.msra.mxu0 %v386
    %601 = vmatprep.mubr.bf16.mxu0 %v437
    %602 = vmatmul.mubr.bf16.gmra.mxu0 %v436
    %v603 = vpop.f32.mrf.mxu0
    %v604 = vadd.f32 %v563, %v603
    %v605 = vpop.f32.mrf.mxu0
    %v606 = vadd.f32 %v565, %v605
    %v607 = vpop.f32.mrf.mxu0
    %v608 = vpop.f32.mrf.mxu0
    %609 = vdwg.mxu0
    %610 = vmatprep.subr.bf16.mxu0 %v193
    %611 = vmatpush1.bf16.msra.mxu0 %v192
    %612 = vmatprep.subr.bf16.mxu0 %v189
    %613 = vmatpush1.bf16.msra.mxu0 %v188
    %614 = vmatprep.subr.bf16.mxu0 %v185
    %615 = vmatpush1.bf16.msra.mxu0 %v184
    %616 = vmatprep.subr.bf16.mxu0 %v181
    %617 = vmatpush1.bf16.msra.mxu0 %v180
    %618 = vmatprep.subr.bf16.mxu0 %v177
    %619 = vmatpush1.bf16.msra.mxu0 %v176
    %620 = vmatprep.subr.bf16.mxu0 %v173
    %621 = vmatpush1.bf16.msra.mxu0 %v172
    %622 = vmatprep.subr.bf16.mxu0 %v169
    %623 = vmatpush1.bf16.msra.mxu0 %v168
    %624 = vmatprep.subr.bf16.mxu0 %v165
    %625 = vmatpush1.bf16.msra.mxu0 %v164
    %626 = vmatprep.subr.bf16.mxu0 %v225
    %627 = vmatpush2.bf16.msra.mxu0 %v224
    %628 = vmatprep.subr.bf16.mxu0 %v221
    %629 = vmatpush2.bf16.msra.mxu0 %v220
    %630 = vmatprep.subr.bf16.mxu0 %v217
    %631 = vmatpush2.bf16.msra.mxu0 %v216
    %632 = vmatprep.subr.bf16.mxu0 %v213
    %633 = vmatpush2.bf16.msra.mxu0 %v212
    %634 = vmatprep.subr.bf16.mxu0 %v209
    %635 = vmatpush2.bf16.msra.mxu0 %v208
    %636 = vmatprep.subr.bf16.mxu0 %v205
    %637 = vmatpush2.bf16.msra.mxu0 %v204
    %638 = vmatprep.subr.bf16.mxu0 %v201
    %639 = vmatpush2.bf16.msra.mxu0 %v200
    %640 = vmatprep.subr.bf16.mxu0 %v197
    %641 = vmatpush2.bf16.msra.mxu0 %v196
    %642 = vmatprep.mubr.bf16.mxu0 %v431
    %643 = vmatmul.mubr.bf16.gmra.mxu0 %v430
    %v644 = vpop.f32.mrf.mxu0
    %v645 = vadd.f32 0.0, %v644
    %v646 = vpop.f32.mrf.mxu0
    %v647 = vadd.f32 0.0, %v646
    %v648 = vpop.f32.mrf.mxu0
    %v649 = vpop.f32.mrf.mxu0
    %650 = vdwg.mxu0
    %651 = vmatprep.subr.bf16.mxu0 %v257
    %652 = vmatpush1.bf16.msra.mxu0 %v256
    %653 = vmatprep.subr.bf16.mxu0 %v253
    %654 = vmatpush1.bf16.msra.mxu0 %v252
    %655 = vmatprep.subr.bf16.mxu0 %v249
    %656 = vmatpush1.bf16.msra.mxu0 %v248
    %657 = vmatprep.subr.bf16.mxu0 %v245
    %658 = vmatpush1.bf16.msra.mxu0 %v244
    %659 = vmatprep.subr.bf16.mxu0 %v241
    %660 = vmatpush1.bf16.msra.mxu0 %v240
    %661 = vmatprep.subr.bf16.mxu0 %v237
    %662 = vmatpush1.bf16.msra.mxu0 %v236
    %663 = vmatprep.subr.bf16.mxu0 %v233
    %664 = vmatpush1.bf16.msra.mxu0 %v232
    %665 = vmatprep.subr.bf16.mxu0 %v229
    %666 = vmatpush1.bf16.msra.mxu0 %v228
    %667 = vmatprep.subr.bf16.mxu0 %v289
    %668 = vmatpush2.bf16.msra.mxu0 %v288
    %669 = vmatprep.subr.bf16.mxu0 %v285
    %670 = vmatpush2.bf16.msra.mxu0 %v284
    %671 = vmatprep.subr.bf16.mxu0 %v281
    %672 = vmatpush2.bf16.msra.mxu0 %v280
    %673 = vmatprep.subr.bf16.mxu0 %v277
    %674 = vmatpush2.bf16.msra.mxu0 %v276
    %675 = vmatprep.subr.bf16.mxu0 %v273
    %676 = vmatpush2.bf16.msra.mxu0 %v272
    %677 = vmatprep.subr.bf16.mxu0 %v269
    %678 = vmatpush2.bf16.msra.mxu0 %v268
    %679 = vmatprep.subr.bf16.mxu0 %v265
    %680 = vmatpush2.bf16.msra.mxu0 %v264
    %681 = vmatprep.subr.bf16.mxu0 %v261
    %682 = vmatpush2.bf16.msra.mxu0 %v260
    %683 = vmatprep.mubr.bf16.mxu0 %v433
    %684 = vmatmul.mubr.bf16.gmra.mxu0 %v432
    %v685 = vpop.f32.mrf.mxu0
    %v686 = vadd.f32 %v645, %v685
    %v687 = vpop.f32.mrf.mxu0
    %v688 = vadd.f32 %v647, %v687
    %v689 = vpop.f32.mrf.mxu0
    %v690 = vpop.f32.mrf.mxu0
    %691 = vdwg.mxu0
    %692 = vmatprep.subr.bf16.mxu0 %v321
    %693 = vmatpush1.bf16.msra.mxu0 %v320
    %694 = vmatprep.subr.bf16.mxu0 %v317
    %695 = vmatpush1.bf16.msra.mxu0 %v316
    %696 = vmatprep.subr.bf16.mxu0 %v313
    %697 = vmatpush1.bf16.msra.mxu0 %v312
    %698 = vmatprep.subr.bf16.mxu0 %v309
    %699 = vmatpush1.bf16.msra.mxu0 %v308
    %700 = vmatprep.subr.bf16.mxu0 %v305
    %701 = vmatpush1.bf16.msra.mxu0 %v304
    %702 = vmatprep.subr.bf16.mxu0 %v301
    %703 = vmatpush1.bf16.msra.mxu0 %v300
    %704 = vmatprep.subr.bf16.mxu0 %v297
    %705 = vmatpush1.bf16.msra.mxu0 %v296
    %706 = vmatprep.subr.bf16.mxu0 %v293
    %707 = vmatpush1.bf16.msra.mxu0 %v292
    %708 = vmatprep.subr.bf16.mxu0 %v353
    %709 = vmatpush2.bf16.msra.mxu0 %v352
    %710 = vmatprep.subr.bf16.mxu0 %v349
    %711 = vmatpush2.bf16.msra.mxu0 %v348
    %712 = vmatprep.subr.bf16.mxu0 %v345
    %713 = vmatpush2.bf16.msra.mxu0 %v344
    %714 = vmatprep.subr.bf16.mxu0 %v341
    %715 = vmatpush2.bf16.msra.mxu0 %v340
    %716 = vmatprep.subr.bf16.mxu0 %v337
    %717 = vmatpush2.bf16.msra.mxu0 %v336
    %718 = vmatprep.subr.bf16.mxu0 %v333
    %719 = vmatpush2.bf16.msra.mxu0 %v332
    %720 = vmatprep.subr.bf16.mxu0 %v329
    %721 = vmatpush2.bf16.msra.mxu0 %v328
    %722 = vmatprep.subr.bf16.mxu0 %v325
    %723 = vmatpush2.bf16.msra.mxu0 %v324
    %724 = vmatprep.mubr.bf16.mxu0 %v435
    %725 = vmatmul.mubr.bf16.gmra.mxu0 %v434
    %v726 = vpop.f32.mrf.mxu0
    %v727 = vadd.f32 %v686, %v726
    %v728 = vpop.f32.mrf.mxu0
    %v729 = vadd.f32 %v688, %v728
    %v730 = vpop.f32.mrf.mxu0
    %v731 = vpop.f32.mrf.mxu0
    %732 = vdwg.mxu0
    %733 = vmatprep.subr.bf16.mxu0 %v385
    %734 = vmatpush1.bf16.msra.mxu0 %v384
    %735 = vmatprep.subr.bf16.mxu0 %v381
    %736 = vmatpush1.bf16.msra.mxu0 %v380
    %737 = vmatprep.subr.bf16.mxu0 %v377
    %738 = vmatpush1.bf16.msra.mxu0 %v376
    %739 = vmatprep.subr.bf16.mxu0 %v373
    %740 = vmatpush1.bf16.msra.mxu0 %v372
    %741 = vmatprep.subr.bf16.mxu0 %v369
    %742 = vmatpush1.bf16.msra.mxu0 %v368
    %743 = vmatprep.subr.bf16.mxu0 %v365
    %744 = vmatpush1.bf16.msra.mxu0 %v364
    %745 = vmatprep.subr.bf16.mxu0 %v361
    %746 = vmatpush1.bf16.msra.mxu0 %v360
    %747 = vmatprep.subr.bf16.mxu0 %v357
    %748 = vmatpush1.bf16.msra.mxu0 %v356
    %749 = vmatprep.subr.bf16.mxu0 %v417
    %750 = vmatpush2.bf16.msra.mxu0 %v416
    %751 = vmatprep.subr.bf16.mxu0 %v413
    %752 = vmatpush2.bf16.msra.mxu0 %v412
    %753 = vmatprep.subr.bf16.mxu0 %v409
    %754 = vmatpush2.bf16.msra.mxu0 %v408
    %755 = vmatprep.subr.bf16.mxu0 %v405
    %756 = vmatpush2.bf16.msra.mxu0 %v404
    %757 = vmatprep.subr.bf16.mxu0 %v401
    %758 = vmatpush2.bf16.msra.mxu0 %v400
    %759 = vmatprep.subr.bf16.mxu0 %v397
    %760 = vmatpush2.bf16.msra.mxu0 %v396
    %761 = vmatprep.subr.bf16.mxu0 %v393
    %762 = vmatpush2.bf16.msra.mxu0 %v392
    %763 = vmatprep.subr.bf16.mxu0 %v389
    %764 = vmatpush2.bf16.msra.mxu0 %v388
    %765 = vmatprep.mubr.bf16.mxu0 %v437
    %766 = vmatmul.mubr.bf16.gmra.mxu0 %v436
    %v767 = vpop.f32.mrf.mxu0
    %v768 = vadd.f32 %v727, %v767
    %v769 = vpop.f32.mrf.mxu0
    %v770 = vadd.f32 %v729, %v769
    %v771 = vpop.f32.mrf.mxu0
    %v772 = vpop.f32.mrf.mxu0
    %773 = vdwg.mxu0
    %v774 = vadd.f32 %v26, %v604
    %v775 = vadd.f32 %v27, %v606
    %v776 = vadd.f32 %v28, %v768
    %v777 = vadd.f32 %v29, %v770
    %778 = vst [vmem:[#allocation2] sm:$0xff] %v774
    %779 = vst [vmem:[#allocation2 + $0x8] sm:$0xff] %v775
    %780 = vst [vmem:[#allocation2 + $0x10] sm:$0xff] %v776
    %781 = vst [vmem:[#allocation2 + $0x18] sm:$0xff] %v777
    // Predicated region
    $region22: #{llama_decoder_layer.11} parent=1 // pred_check
      %p782 = pneg %p18
    $region23: #{llama_decoder_layer.11} parent=1 // pred_check_branch
      %784 = sbr.rel (%p782) target = $region25
    $region24: #{llama_decoder_layer.11} parent=1 // pred_region
      %v785 = vld [vmem:[#allocation2] sm:$0xff]
      %v786 = vld [vmem:[#allocation2 + $0x8] sm:$0xff]
      %v787 = vld [vmem:[#allocation2 + $0x10] sm:$0xff]
      %v788 = vld [vmem:[#allocation2 + $0x18] sm:$0xff]
      %v789 = vld [vmem:[%s2] sm:$0xf]
      %v791 = vlaneseq
      %v792 = vshrl.u32 %v791, 7
      %v793 = vsub.s32 0, %v792
      %v794 = vrot.slane %v789, %v793
      %v795 = vlaneseq
      %v796 = vshrl.u32 %v795, 7
      %v797 = vsub.s32 1, %v796
      %v798 = vrot.slane %v789, %v797
      %v799 = vlaneseq
      %v800 = vshrl.u32 %v799, 7
      %v801 = vsub.s32 2, %v800
      %v802 = vrot.slane %v789, %v801
      %v803 = vlaneseq
      %v804 = vshrl.u32 %v803, 7
      %v805 = vsub.s32 3, %v804
      %v806 = vrot.slane %v789, %v805
      %v811 = vmul.f32 %v785, %v794
      %v812 = vmul.f32 %v786, %v798
      %v813 = vmul.f32 %v787, %v802
      %v814 = vmul.f32 %v788, %v806
      %v815 = vld [vmem:[%s3] sm:$0xff]
      %v816 = vld [vmem:[%s3 + $0x8] sm:$0xff]
      %v817 = vld [vmem:[%s3 + $0x10] sm:$0xff]
      %v818 = vld [vmem:[%s3 + $0x18] sm:$0xff]
      %v819 = vadd.f32 %v811, %v815
      %v820 = vadd.f32 %v812, %v816
      %v821 = vadd.f32 %v813, %v817
      %v822 = vadd.f32 %v814, %v818
      %823 = vst [vmem:[#allocation3] sm:$0xff] %v819
      %824 = vst [vmem:[#allocation3 + $0x8] sm:$0xff] %v820
      %825 = vst [vmem:[#allocation3 + $0x10] sm:$0xff] %v821
      %826 = vst [vmem:[#allocation3 + $0x18] sm:$0xff] %v822
    $region25: #{llama_decoder_layer.11} parent=1 // pred_fallthru
      _
    // Predicated region
    $region26: #{llama_decoder_layer.11} parent=1 // pred_check
      _
    $region27: #{llama_decoder_layer.11} parent=1 // pred_check_branch
      %828 = sbr.rel (0) target = $region29
    $region28: #{llama_decoder_layer.11} parent=1 // pred_region
      %s830 = ssub.s32 512, 512
      %831 = vsyncadd [#allocation4], %s830
      %s833 = sshll.u32 [#allocation3], 4
      %s834 = int_to_ptr.vmem [resolvable:$true] %s833
      %836 = dma.vmem_to_hbm [thread:$0]  %s834, 512, %s4, [#allocation4]
    $region29: #{llama_decoder_layer.11} parent=1 // pred_fallthru
      _
    // Predicated region
    $region30: #{llama_decoder_layer.11} parent=1 // pred_check
      _
    $region31: #{llama_decoder_layer.11} parent=1 // pred_check_branch
      %838 = sbr.rel (0) target = $region33
    $region32: #{llama_decoder_layer.11} parent=1 // pred_region
      %839 = dma.done [#allocation4], 512
    $region33: #{llama_decoder_layer.11} parent=1 // pred_fallthru
      _
    %840 = vsyncpa [#allocation4], 1

// kernel: llama_decoder_layer.10
$region0: #{llama_decoder_layer.10}
  #allocation0 [shape = 'u32[]', space=smem, size = 0x4, offset = 0x4, fixed_abs, tag = 'smem constant byte address 0x4 - core index']
  #allocation1 [shape = 'u32[144,128]{1,0:T(1,128)}', space=vmem, size = 0x12000, scoped, tag = 'internal scratch']
  #allocation2 [shape = 'bf16[8,512]{1,0:T(8,128)(2,1)}', space=vmem, size = 0x2000, scoped, tag = 'scratch operand']
  %s0 = inlined_call_operand.vmem [shape: f32[8,512], index: 0, kind: input, shape index: {}]
  %s1 = inlined_call_operand.vmem [shape: f32[1,512], index: 1, kind: input, shape index: {}]
  %s2 = inlined_call_operand.vmem [shape: s8[512,1024], index: 2, kind: input, shape index: {}]
  %s3 = inlined_call_operand.vmem [shape: f32[1,1024], index: 3, kind: input, shape index: {}]
  %s4 = inlined_call_operand.hbm [shape: s8[512,1024], index: 4, kind: input, shape index: {}]
  %s5 = inlined_call_operand.vmem [shape: f32[1,1024], index: 5, kind: input, shape index: {}]
  %s6 = inlined_call_operand.vmem [shape: bf16[8,1024], index: 6, kind: output, shape index: {}]
  %s7 = sld [smem:[#allocation0]]
  $region88: #{llama_decoder_layer.10} parent=0
    _
  %s9 = ssub.s32 1, %s7
  %s10 = scalar_select 0, %s9, %s7
  $region1: #{llama_decoder_layer.10} parent=0
    #allocation3 [shape = 'u8[524288]{0}', space=vmem, size = 0x80000, scoped, tag = 'input window, operand 2']
    #allocation4 [shape = 'u8[524288]{0}', space=vmem, size = 0x80000, scoped, tag = 'input window, operand 4']
    #allocation5 [shape = 's32[2]{0}', space=sflag, size = 0x8, scoped, tag = 'scoped memory for llama_decoder_layer.10']
    %11 = vsyncpa [#allocation5], 0
    %s12 = scalar_lea.sflag [#allocation5], 1
    %13 = vsyncpa %s12, 0
    loop: start=0, step=1, limit=4
    $region2: #{llama_decoder_layer.10} parent=1 // loop_pre_header
      _
    $region3: #{llama_decoder_layer.10} parent=1 // loop_header
      %s15 = sphi 0, %s19
      %p16 = scmp.ge.s32.totalorder %s15, 4
      %s22 = sphi 0, %s34
      %s23 = sphi 0, %s30
      %s24 = sphi 0, %s22
      %s25 = sphi 0, %s23
      %s26 = sphi 0, %s24
      %s27 = sphi 0, %s25
      %s37 = sphi 0, %s39
      %s40 = sphi 0, %s37
      %s41 = sphi 0, %s40
      %s57 = sphi 0, %s41
      %s61 = sphi 0, %s61
      %s63 = sphi 0, %s61
      %s64 = sphi 0, %s63
      %s78 = sphi 0, %s64
      %s84 = sphi 0, %s86
      %s87 = sphi 0, %s84
      %s88 = sphi 0, %s87
      %s104 = sphi 0, %s88
      %s110 = sphi 0, %s112
      %s113 = sphi 0, %s110
      %s114 = sphi 0, %s113
      %s130 = sphi 0, %s114
      %s136 = sphi 0, %s138
      %s139 = sphi 0, %s136
      %s140 = sphi 0, %s139
      %s156 = sphi 0, %s140
      %s162 = sphi 0, %s164
      %s165 = sphi 0, %s162
      %s166 = sphi 0, %s165
      %s182 = sphi 0, %s166
      %s190 = sphi 0, %s192
      %s193 = sphi 0, %s190
      %s194 = sphi 0, %s193
      %s210 = sphi 0, %s194
    $region4: #{llama_decoder_layer.10} parent=1 // loop_header_branch
      %18 = sbr.rel (%p16) target = $region8
    $region5: #{llama_decoder_layer.10} parent=1 // loop_body
      %s20 = ssub.s32 %s15, 1
      %s21 = ssub.s32 %s15, 2
      %s28 = sadd.s32 1, %s23
      %p29 = scmp.ge.s32.totalorder %s28, 2
      %s30 = scalar_select %p29, 0, %s28
      %s31 = sadd.s32 1, %s22
      %s32 = scalar_select %p29, %s31, %s22
      %p33 = scmp.ge.s32.totalorder %s32, 1
      %s34 = scalar_select %p33, 0, %s32
      %s35 = ssub.s32 %s22, %s34
      %p36 = scmp.eq.s32.totalorder %s35, 0
      %s38 = sadd.s32 %s37, 1
      %s39 = scalar_select %p36, %s37, %s38
      %p42 = pneg %p36
      %p43 = scmp.eq.s32.totalorder %s15, 1
      %p44 = por %p42, %p43
      %p45 = scmp.ne.s32.totalorder %s37, %s40
      %p46 = scmp.eq.s32.totalorder %s15, 0
      %p47 = por %p45, %p46
      %p48 = scmp.ne.s32.totalorder %s37, %s40
      %p49 = scmp.eq.s32.totalorder %s20, 1
      %p50 = por %p48, %p49
      %p51 = scmp.ne.s32.totalorder %s40, %s41
      %p52 = scmp.eq.s32.totalorder %s20, 0
      %p53 = por %p51, %p52
      %p54 = scmp.ne.s32.totalorder %s40, %s41
      %p55 = scmp.eq.s32.totalorder %s21, 1
      %p56 = por %p54, %p55
      %p58 = scmp.ne.s32.totalorder %s41, %s57
      %p59 = scmp.eq.s32.totalorder %s21, 0
      %p60 = por %p58, %p59
      %s62 = sadd.s32 %s61, 1
      %p65 = scmp.eq.s32.totalorder %s15, 1
      %p66 = scmp.ne.s32.totalorder %s61, %s63
      %p67 = scmp.eq.s32.totalorder %s15, 0
      %p68 = por %p66, %p67
      %p69 = scmp.ne.s32.totalorder %s61, %s63
      %p70 = scmp.eq.s32.totalorder %s20, 1
      %p71 = por %p69, %p70
      %p72 = scmp.ne.s32.totalorder %s63, %s64
      %p73 = scmp.eq.s32.totalorder %s20, 0
      %p74 = por %p72, %p73
      %p75 = scmp.ne.s32.totalorder %s63, %s64
      %p76 = scmp.eq.s32.totalorder %s21, 1
      %p77 = por %p75, %p76
      %p79 = scmp.ne.s32.totalorder %s64, %s78
      %p80 = scmp.eq.s32.totalorder %s21, 0
      %p81 = por %p79, %p80
      %s82 = ssub.s32 %s23, %s30
      %p83 = scmp.eq.s32.totalorder %s82, 0
      %s85 = sadd.s32 %s84, 1
      %s86 = scalar_select %p83, %s84, %s85
      %p89 = pneg %p83
      %p90 = scmp.eq.s32.totalorder %s15, 1
      %p91 = por %p89, %p90
      %p92 = scmp.ne.s32.totalorder %s84, %s87
      %p93 = scmp.eq.s32.totalorder %s15, 0
      %p94 = por %p92, %p93
      %p95 = scmp.ne.s32.totalorder %s84, %s87
      %p96 = scmp.eq.s32.totalorder %s20, 1
      %p97 = por %p95, %p96
      %p98 = scmp.ne.s32.totalorder %s87, %s88
      %p99 = scmp.eq.s32.totalorder %s20, 0
      %p100 = por %p98, %p99
      %p101 = scmp.ne.s32.totalorder %s87, %s88
      %p102 = scmp.eq.s32.totalorder %s21, 1
      %p103 = por %p101, %p102
      %p105 = scmp.ne.s32.totalorder %s88, %s104
      %p106 = scmp.eq.s32.totalorder %s21, 0
      %p107 = por %p105, %p106
      %s108 = ssub.s32 %s23, %s30
      %p109 = scmp.eq.s32.totalorder %s108, 0
      %s111 = sadd.s32 %s110, 1
      %s112 = scalar_select %p109, %s110, %s111
      %p115 = pneg %p109
      %p116 = scmp.eq.s32.totalorder %s15, 1
      %p117 = por %p115, %p116
      %p118 = scmp.ne.s32.totalorder %s110, %s113
      %p119 = scmp.eq.s32.totalorder %s15, 0
      %p120 = por %p118, %p119
      %p121 = scmp.ne.s32.totalorder %s110, %s113
      %p122 = scmp.eq.s32.totalorder %s20, 1
      %p123 = por %p121, %p122
      %p124 = scmp.ne.s32.totalorder %s113, %s114
      %p125 = scmp.eq.s32.totalorder %s20, 0
      %p126 = por %p124, %p125
      %p127 = scmp.ne.s32.totalorder %s113, %s114
      %p128 = scmp.eq.s32.totalorder %s21, 1
      %p129 = por %p127, %p128
      %p131 = scmp.ne.s32.totalorder %s114, %s130
      %p132 = scmp.eq.s32.totalorder %s21, 0
      %p133 = por %p131, %p132
      %s134 = ssub.s32 %s23, %s30
      %p135 = scmp.eq.s32.totalorder %s134, 0
      %s137 = sadd.s32 %s136, 1
      %s138 = scalar_select %p135, %s136, %s137
      %p141 = pneg %p135
      %p142 = scmp.eq.s32.totalorder %s15, 1
      %p143 = por %p141, %p142
      %p144 = scmp.ne.s32.totalorder %s136, %s139
      %p145 = scmp.eq.s32.totalorder %s15, 0
      %p146 = por %p144, %p145
      %p147 = scmp.ne.s32.totalorder %s136, %s139
      %p148 = scmp.eq.s32.totalorder %s20, 1
      %p149 = por %p147, %p148
      %p150 = scmp.ne.s32.totalorder %s139, %s140
      %p151 = scmp.eq.s32.totalorder %s20, 0
      %p152 = por %p150, %p151
      %p153 = scmp.ne.s32.totalorder %s139, %s140
      %p154 = scmp.eq.s32.totalorder %s21, 1
      %p155 = por %p153, %p154
      %p157 = scmp.ne.s32.totalorder %s140, %s156
      %p158 = scmp.eq.s32.totalorder %s21, 0
      %p159 = por %p157, %p158
      %s160 = ssub.s32 %s23, %s30
      %p161 = scmp.eq.s32.totalorder %s160, 0
      %s163 = sadd.s32 %s162, 1
      %s164 = scalar_select %p161, %s162, %s163
      %p167 = pneg %p161
      %p168 = scmp.eq.s32.totalorder %s15, 1
      %p169 = por %p167, %p168
      %p170 = scmp.ne.s32.totalorder %s162, %s165
      %p171 = scmp.eq.s32.totalorder %s15, 0
      %p172 = por %p170, %p171
      %p173 = scmp.ne.s32.totalorder %s162, %s165
      %p174 = scmp.eq.s32.totalorder %s20, 1
      %p175 = por %p173, %p174
      %p176 = scmp.ne.s32.totalorder %s165, %s166
      %p177 = scmp.eq.s32.totalorder %s20, 0
      %p178 = por %p176, %p177
      %p179 = scmp.ne.s32.totalorder %s165, %s166
      %p180 = scmp.eq.s32.totalorder %s21, 1
      %p181 = por %p179, %p180
      %p183 = scmp.ne.s32.totalorder %s166, %s182
      %p184 = scmp.eq.s32.totalorder %s21, 0
      %p185 = por %p183, %p184
      %s186 = ssub.s32 %s22, %s34
      %s187 = ssub.s32 %s23, %s30
      %s188 = sor.u32 %s186, %s187
      %p189 = scmp.eq.s32.totalorder %s188, 0
      %s191 = sadd.s32 %s190, 1
      %s192 = scalar_select %p189, %s190, %s191
      %p195 = pneg %p189
      %p196 = scmp.eq.s32.totalorder %s15, 1
      %p197 = por %p195, %p196
      %p198 = scmp.ne.s32.totalorder %s190, %s193
      %p199 = scmp.eq.s32.totalorder %s15, 0
      %p200 = por %p198, %p199
      %p201 = scmp.ne.s32.totalorder %s190, %s193
      %p202 = scmp.eq.s32.totalorder %s20, 1
      %p203 = por %p201, %p202
      %p204 = scmp.ne.s32.totalorder %s193, %s194
      %p205 = scmp.eq.s32.totalorder %s20, 0
      %p206 = por %p204, %p205
      %p207 = scmp.ne.s32.totalorder %s193, %s194
      %p208 = scmp.eq.s32.totalorder %s21, 1
      %p209 = por %p207, %p208
      %p211 = scmp.ne.s32.totalorder %s194, %s210
      %p212 = scmp.eq.s32.totalorder %s21, 0
      %p213 = por %p211, %p212
      %p214 = scmp.le.s32.totalorder 1, %s15
      %p215 = scmp.lt.s32.totalorder %s15, 3
      %p216 = pnand %p214, %p215
      %p217 = pneg %p216
      // Predicated region
      $region9: #{llama_decoder_layer.10} parent=5 // pred_check
        _
      $region10: #{llama_decoder_layer.10} parent=5 // pred_check_branch
        %219 = sbr.rel (%p216) target = $region12
      $region11: #{llama_decoder_layer.10} parent=5 // pred_region
        %s220 = ssub.s32 %s15, 1
        // Predicated region
        $region13: #{llama_decoder_layer.10} parent=11 // pred_check
          %p221 = pneg %p53
        $region14: #{llama_decoder_layer.10} parent=11 // pred_check_branch
          %223 = sbr.rel (%p221) target = $region16
        $region15: #{llama_decoder_layer.10} parent=11 // pred_region
          %p224 = scmp.lt.s32.totalorder %s24, 0
          %s225 = scalar_select %p224, %s24, 0
          %s226 = smul.addr %s225, 4
          %s227 = smul.addr %s226, 8
          %s228 = scalar_lea.vmem %s0, %s227
        $region16: #{llama_decoder_layer.10} parent=11 // pred_fallthru
          _
        // Predicated region
        $region17: #{llama_decoder_layer.10} parent=11 // pred_check
          %p229 = pneg %p74
        $region18: #{llama_decoder_layer.10} parent=11 // pred_check_branch
          %231 = sbr.rel (%p229) target = $region20
        $region19: #{llama_decoder_layer.10} parent=11 // pred_region
          _
        $region20: #{llama_decoder_layer.10} parent=11 // pred_fallthru
          _
      $region12: #{llama_decoder_layer.10} parent=5 // pred_fallthru
        _
      %p232 = scmp.lt.s32.totalorder %s15, 2
      // Predicated region
      $region21: #{llama_decoder_layer.10} parent=5 // pred_check
        %p233 = pneg %p232
      $region22: #{llama_decoder_layer.10} parent=5 // pred_check_branch
        %235 = sbr.rel (%p233) target = $region24
      $region23: #{llama_decoder_layer.10} parent=5 // pred_region
        // Predicated region
        $region25: #{llama_decoder_layer.10} parent=23 // pred_check
          %p236 = pneg %p94
        $region26: #{llama_decoder_layer.10} parent=23 // pred_check_branch
          %238 = sbr.rel (%p236) target = $region28
        $region27: #{llama_decoder_layer.10} parent=23 // pred_region
          %s239 = sand.u32 %s84, 1
          %s240 = sand.u32 %s84, 1
          %s241 = smul.addr %s240, 512
          %s242 = scalar_lea.vmem [#allocation3], %s241
          %s243 = smul.u32 4, %s23
          %s244 = smul.addr %s243, 8
          %s245 = scalar_lea.vmem %s2, %s244
          // Predicated region
          $region29: #{llama_decoder_layer.10} parent=27 // pred_check
            _
          $region30: #{llama_decoder_layer.10} parent=27 // pred_check_branch
            %247 = sbr.rel (0) target = $region32
          $region31: #{llama_decoder_layer.10} parent=27 // pred_region
            // Predicated region
            $region33: #{llama_decoder_layer.10} parent=31 // pred_check
              _
            $region34: #{llama_decoder_layer.10} parent=31 // pred_check_branch
              %249 = sbr.rel (0) target = $region36
            $region35: #{llama_decoder_layer.10} parent=31 // pred_region
              loop: start=0, step=1, limit=1
              $region37: #{llama_decoder_layer.10} parent=35 // loop_pre_header
                _
              $region38: #{llama_decoder_layer.10} parent=35 // loop_header
                %s251 = sphi 0, %s255
                %p252 = scmp.ge.s32.totalorder %s251, 1
                %s256 = sphi %s245, %s245
                %s257 = sphi %s242, %s242
              $region39: #{llama_decoder_layer.10} parent=35 // loop_header_branch
                %254 = sbr.rel (%p252) target = $region43
              $region40: #{llama_decoder_layer.10} parent=35 // loop_body
                %v258 = vld [vmem:[%s256] sm:$0xff]
                %259 = vst [vmem:[%s257] sm:$0xff] %v258
                %v260 = vld [vmem:[%s256 + $0x8] sm:$0xff]
                %261 = vst [vmem:[%s257 + $0x8] sm:$0xff] %v260
                %v262 = vld [vmem:[%s256 + $0x10] sm:$0xff]
                %263 = vst [vmem:[%s257 + $0x10] sm:$0xff] %v262
                %v264 = vld [vmem:[%s256 + $0x18] sm:$0xff]
                %265 = vst [vmem:[%s257 + $0x18] sm:$0xff] %v264
                %v266 = vld [vmem:[%s256 + $0x40] sm:$0xff]
                %267 = vst [vmem:[%s257 + $0x20] sm:$0xff] %v266
                %v268 = vld [vmem:[%s256 + $0x48] sm:$0xff]
                %269 = vst [vmem:[%s257 + $0x28] sm:$0xff] %v268
                %v270 = vld [vmem:[%s256 + $0x50] sm:$0xff]
                %271 = vst [vmem:[%s257 + $0x30] sm:$0xff] %v270
                %v272 = vld [vmem:[%s256 + $0x58] sm:$0xff]
                %273 = vst [vmem:[%s257 + $0x38] sm:$0xff] %v272
                %v274 = vld [vmem:[%s256 + $0x80] sm:$0xff]
                %275 = vst [vmem:[%s257 + $0x40] sm:$0xff] %v274
                %v276 = vld [vmem:[%s256 + $0x88] sm:$0xff]
                %277 = vst [vmem:[%s257 + $0x48] sm:$0xff] %v276
                %v278 = vld [vmem:[%s256 + $0x90] sm:$0xff]
                %279 = vst [vmem:[%s257 + $0x50] sm:$0xff] %v278
                %v280 = vld [vmem:[%s256 + $0x98] sm:$0xff]
                %281 = vst [vmem:[%s257 + $0x58] sm:$0xff] %v280
                %v282 = vld [vmem:[%s256 + $0xc0] sm:$0xff]
                %283 = vst [vmem:[%s257 + $0x60] sm:$0xff] %v282
                %v284 = vld [vmem:[%s256 + $0xc8] sm:$0xff]
                %285 = vst [vmem:[%s257 + $0x68] sm:$0xff] %v284
                %v286 = vld [vmem:[%s256 + $0xd0] sm:$0xff]
                %287 = vst [vmem:[%s257 + $0x70] sm:$0xff] %v286
                %v288 = vld [vmem:[%s256 + $0xd8] sm:$0xff]
                %289 = vst [vmem:[%s257 + $0x78] sm:$0xff] %v288
                %v290 = vld [vmem:[%s256 + $0x100] sm:$0xff]
                %291 = vst [vmem:[%s257 + $0x80] sm:$0xff] %v290
                %v292 = vld [vmem:[%s256 + $0x108] sm:$0xff]
                %293 = vst [vmem:[%s257 + $0x88] sm:$0xff] %v292
                %v294 = vld [vmem:[%s256 + $0x110] sm:$0xff]
                %295 = vst [vmem:[%s257 + $0x90] sm:$0xff] %v294
                %v296 = vld [vmem:[%s256 + $0x118] sm:$0xff]
                %297 = vst [vmem:[%s257 + $0x98] sm:$0xff] %v296
                %v298 = vld [vmem:[%s256 + $0x140] sm:$0xff]
                %299 = vst [vmem:[%s257 + $0xa0] sm:$0xff] %v298
                %v300 = vld [vmem:[%s256 + $0x148] sm:$0xff]
                %301 = vst [vmem:[%s257 + $0xa8] sm:$0xff] %v300
                %v302 = vld [vmem:[%s256 + $0x150] sm:$0xff]
                %303 = vst [vmem:[%s257 + $0xb0] sm:$0xff] %v302
                %v304 = vld [vmem:[%s256 + $0x158] sm:$0xff]
                %305 = vst [vmem:[%s257 + $0xb8] sm:$0xff] %v304
                %v306 = vld [vmem:[%s256 + $0x180] sm:$0xff]
                %307 = vst [vmem:[%s257 + $0xc0] sm:$0xff] %v306
                %v308 = vld [vmem:[%s256 + $0x188] sm:$0xff]
                %309 = vst [vmem:[%s257 + $0xc8] sm:$0xff] %v308
                %v310 = vld [vmem:[%s256 + $0x190] sm:$0xff]
                %311 = vst [vmem:[%s257 + $0xd0] sm:$0xff] %v310
                %v312 = vld [vmem:[%s256 + $0x198] sm:$0xff]
                %313 = vst [vmem:[%s257 + $0xd8] sm:$0xff] %v312
                %v314 = vld [vmem:[%s256 + $0x1c0] sm:$0xff]
                %315 = vst [vmem:[%s257 + $0xe0] sm:$0xff] %v314
                %v316 = vld [vmem:[%s256 + $0x1c8] sm:$0xff]
                %317 = vst [vmem:[%s257 + $0xe8] sm:$0xff] %v316
                %v318 = vld [vmem:[%s256 + $0x1d0] sm:$0xff]
                %319 = vst [vmem:[%s257 + $0xf0] sm:$0xff] %v318
                %v320 = vld [vmem:[%s256 + $0x1d8] sm:$0xff]
                %321 = vst [vmem:[%s257 + $0xf8] sm:$0xff] %v320
                %v322 = vld [vmem:[%s256 + $0x200] sm:$0xff]
                %323 = vst [vmem:[%s257 + $0x100] sm:$0xff] %v322
                %v324 = vld [vmem:[%s256 + $0x208] sm:$0xff]
                %325 = vst [vmem:[%s257 + $0x108] sm:$0xff] %v324
                %v326 = vld [vmem:[%s256 + $0x210] sm:$0xff]
                %327 = vst [vmem:[%s257 + $0x110] sm:$0xff] %v326
                %v328 = vld [vmem:[%s256 + $0x218] sm:$0xff]
                %329 = vst [vmem:[%s257 + $0x118] sm:$0xff] %v328
                %v330 = vld [vmem:[%s256 + $0x240] sm:$0xff]
                %331 = vst [vmem:[%s257 + $0x120] sm:$0xff] %v330
                %v332 = vld [vmem:[%s256 + $0x248] sm:$0xff]
                %333 = vst [vmem:[%s257 + $0x128] sm:$0xff] %v332
                %v334 = vld [vmem:[%s256 + $0x250] sm:$0xff]
                %335 = vst [vmem:[%s257 + $0x130] sm:$0xff] %v334
                %v336 = vld [vmem:[%s256 + $0x258] sm:$0xff]
                %337 = vst [vmem:[%s257 + $0x138] sm:$0xff] %v336
                %v338 = vld [vmem:[%s256 + $0x280] sm:$0xff]
                %339 = vst [vmem:[%s257 + $0x140] sm:$0xff] %v338
                %v340 = vld [vmem:[%s256 + $0x288] sm:$0xff]
                %341 = vst [vmem:[%s257 + $0x148] sm:$0xff] %v340
                %v342 = vld [vmem:[%s256 + $0x290] sm:$0xff]
                %343 = vst [vmem:[%s257 + $0x150] sm:$0xff] %v342
                %v344 = vld [vmem:[%s256 + $0x298] sm:$0xff]
                %345 = vst [vmem:[%s257 + $0x158] sm:$0xff] %v344
                %v346 = vld [vmem:[%s256 + $0x2c0] sm:$0xff]
                %347 = vst [vmem:[%s257 + $0x160] sm:$0xff] %v346
                %v348 = vld [vmem:[%s256 + $0x2c8] sm:$0xff]
                %349 = vst [vmem:[%s257 + $0x168] sm:$0xff] %v348
                %v350 = vld [vmem:[%s256 + $0x2d0] sm:$0xff]
                %351 = vst [vmem:[%s257 + $0x170] sm:$0xff] %v350
                %v352 = vld [vmem:[%s256 + $0x2d8] sm:$0xff]
                %353 = vst [vmem:[%s257 + $0x178] sm:$0xff] %v352
                %v354 = vld [vmem:[%s256 + $0x300] sm:$0xff]
                %355 = vst [vmem:[%s257 + $0x180] sm:$0xff] %v354
                %v356 = vld [vmem:[%s256 + $0x308] sm:$0xff]
                %357 = vst [vmem:[%s257 + $0x188] sm:$0xff] %v356
                %v358 = vld [vmem:[%s256 + $0x310] sm:$0xff]
                %359 = vst [vmem:[%s257 + $0x190] sm:$0xff] %v358
                %v360 = vld [vmem:[%s256 + $0x318] sm:$0xff]
                %361 = vst [vmem:[%s257 + $0x198] sm:$0xff] %v360
                %v362 = vld [vmem:[%s256 + $0x340] sm:$0xff]
                %363 = vst [vmem:[%s257 + $0x1a0] sm:$0xff] %v362
                %v364 = vld [vmem:[%s256 + $0x348] sm:$0xff]
                %365 = vst [vmem:[%s257 + $0x1a8] sm:$0xff] %v364
                %v366 = vld [vmem:[%s256 + $0x350] sm:$0xff]
                %367 = vst [vmem:[%s257 + $0x1b0] sm:$0xff] %v366
                %v368 = vld [vmem:[%s256 + $0x358] sm:$0xff]
                %369 = vst [vmem:[%s257 + $0x1b8] sm:$0xff] %v368
                %v370 = vld [vmem:[%s256 + $0x380] sm:$0xff]
                %371 = vst [vmem:[%s257 + $0x1c0] sm:$0xff] %v370
                %v372 = vld [vmem:[%s256 + $0x388] sm:$0xff]
                %373 = vst [vmem:[%s257 + $0x1c8] sm:$0xff] %v372
                %v374 = vld [vmem:[%s256 + $0x390] sm:$0xff]
                %375 = vst [vmem:[%s257 + $0x1d0] sm:$0xff] %v374
                %v376 = vld [vmem:[%s256 + $0x398] sm:$0xff]
                %377 = vst [vmem:[%s257 + $0x1d8] sm:$0xff] %v376
                %v378 = vld [vmem:[%s256 + $0x3c0] sm:$0xff]
                %379 = vst [vmem:[%s257 + $0x1e0] sm:$0xff] %v378
                %v380 = vld [vmem:[%s256 + $0x3c8] sm:$0xff]
                %381 = vst [vmem:[%s257 + $0x1e8] sm:$0xff] %v380
                %v382 = vld [vmem:[%s256 + $0x3d0] sm:$0xff]
                %383 = vst [vmem:[%s257 + $0x1f0] sm:$0xff] %v382
                %v384 = vld [vmem:[%s256 + $0x3d8] sm:$0xff]
                %385 = vst [vmem:[%s257 + $0x1f8] sm:$0xff] %v384
              $region41: #{llama_decoder_layer.10} parent=35 // loop_footer
                %s255 = sadd.s32 1, %s251
              $region42: #{llama_decoder_layer.10} parent=35 // loop_footer_branch
                %250 = sbr.rel target = $region38
              $region43: #{llama_decoder_layer.10} parent=35 // loop_exit
                _
            $region36: #{llama_decoder_layer.10} parent=31 // pred_fallthru
              _
            // Predicated region
            $region44: #{llama_decoder_layer.10} parent=31 // pred_check
              _
            $region45: #{llama_decoder_layer.10} parent=31 // pred_check_branch
              %387 = sbr.rel target = $region47
            $region46: #{llama_decoder_layer.10} parent=31 // pred_region
              _
            $region47: #{llama_decoder_layer.10} parent=31 // pred_fallthru
              _
          $region32: #{llama_decoder_layer.10} parent=27 // pred_fallthru
            _
          %388 = vnop
        $region28: #{llama_decoder_layer.10} parent=23 // pred_fallthru
          _
        // Predicated region
        $region48: #{llama_decoder_layer.10} parent=23 // pred_check
          %p389 = pneg %p120
        $region49: #{llama_decoder_layer.10} parent=23 // pred_check_branch
          %391 = sbr.rel (%p389) target = $region51
        $region50: #{llama_decoder_layer.10} parent=23 // pred_region
          %s392 = smul.u32 4, %s23
          %p393 = scmp.lt.s32.totalorder %s392, 7
          %s394 = scalar_select %p393, %s392, 7
          %s395 = scalar_lea.vmem %s3, %s394
          %s396 = smul.u32 4, %s23
        $region51: #{llama_decoder_layer.10} parent=23 // pred_fallthru
          _
        // Predicated region
        $region52: #{llama_decoder_layer.10} parent=23 // pred_check
          %p397 = pneg %p146
        $region53: #{llama_decoder_layer.10} parent=23 // pred_check_branch
          %399 = sbr.rel (%p397) target = $region55
        $region54: #{llama_decoder_layer.10} parent=23 // pred_region
          %s400 = sand.u32 %s136, 1
          %s401 = scalar_lea.sflag [#allocation5], %s400
          %s402 = sand.u32 %s136, 1
          %s403 = smul.addr %s402, 512
          %s404 = scalar_lea.vmem [#allocation4], %s403
          %s405 = smul.u32 4, %s23
          %s407 = ssub.s32 8192, 8192
          %408 = vsyncadd %s401, %s407
          %s409 = smul.addr %s405, 128
          %s410 = scalar_lea.hbm %s4, %s409
          %s411 = sshll.u32 %s404, 4
          %s412 = int_to_ptr.vmem [resolvable:$true] %s411
          %417 = dma.hbm_to_vmem [thread:$0]  %s410, 8192, %s412, %s401, 1024, 512, 32
        $region55: #{llama_decoder_layer.10} parent=23 // pred_fallthru
          _
        // Predicated region
        $region56: #{llama_decoder_layer.10} parent=23 // pred_check
          %p418 = pneg %p172
        $region57: #{llama_decoder_layer.10} parent=23 // pred_check_branch
          %420 = sbr.rel (%p418) target = $region59
        $region58: #{llama_decoder_layer.10} parent=23 // pred_region
          %s421 = smul.u32 4, %s23
          %p422 = scmp.lt.s32.totalorder %s421, 7
          %s423 = scalar_select %p422, %s421, 7
          %s424 = scalar_lea.vmem %s5, %s423
          %s425 = smul.u32 4, %s23
        $region59: #{llama_decoder_layer.10} parent=23 // pred_fallthru
          _
      $region24: #{llama_decoder_layer.10} parent=5 // pred_fallthru
        _
      %p426 = scmp.le.s32.totalorder 1, %s15
      %p427 = scmp.lt.s32.totalorder %s15, 3
      %p428 = pnand %p426, %p427
      %p429 = pneg %p428
      // Predicated region
      $region60: #{llama_decoder_layer.10} parent=5 // pred_check
        _
      $region61: #{llama_decoder_layer.10} parent=5 // pred_check_branch
        %431 = sbr.rel (%p428) target = $region63
      $region62: #{llama_decoder_layer.10} parent=5 // pred_region
        %s432 = ssub.s32 %s15, 1
        %s433 = sand.u32 %s87, 1
        %s434 = sand.u32 %s87, 1
        %s435 = smul.addr %s434, 512
        %s436 = scalar_lea.vmem [#allocation3], %s435
        // Predicated region
        $region64: #{llama_decoder_layer.10} parent=62 // pred_check
          %p437 = pneg %p100
        $region65: #{llama_decoder_layer.10} parent=62 // pred_check_branch
          %439 = sbr.rel (%p437) target = $region67
        $region66: #{llama_decoder_layer.10} parent=62 // pred_region
          _
        $region67: #{llama_decoder_layer.10} parent=62 // pred_fallthru
          _
        %s440 = sand.u32 %s139, 1
        %s441 = scalar_lea.sflag [#allocation5], %s440
        %s442 = sand.u32 %s139, 1
        %s443 = smul.addr %s442, 512
        %s444 = scalar_lea.vmem [#allocation4], %s443
        // Predicated region
        $region68: #{llama_decoder_layer.10} parent=62 // pred_check
          %p445 = pneg %p152
        $region69: #{llama_decoder_layer.10} parent=62 // pred_check_branch
          %447 = sbr.rel (%p445) target = $region71
        $region70: #{llama_decoder_layer.10} parent=62 // pred_region
          %448 = dma.done %s441, 8192
        $region71: #{llama_decoder_layer.10} parent=62 // pred_fallthru
          _
        %p449 = scmp.lt.s32.totalorder %s24, 0
        %s450 = scalar_select %p449, %s24, 0
        %s451 = smul.addr %s450, 4
        %s452 = smul.addr %s451, 8
        %s453 = scalar_lea.vmem %s0, %s452
        %p454 = pneg %p53
        %p455 = pneg %p50
        %p456 = pneg %p74
        %p457 = pneg %p71
        %s458 = sand.u32 %s87, 1
        %s459 = sand.u32 %s87, 1
        %s460 = smul.addr %s459, 512
        %s461 = scalar_lea.vmem [#allocation3], %s460
        %p462 = pneg %p100
        %p463 = pneg %p97
        %s464 = smul.u32 4, %s25
        %p465 = scmp.lt.s32.totalorder %s464, 7
        %s466 = scalar_select %p465, %s464, 7
        %s467 = scalar_lea.vmem %s3, %s466
        %p468 = pneg %p126
        %p469 = pneg %p123
        %s470 = sand.u32 %s139, 1
        %s471 = scalar_lea.sflag [#allocation5], %s470
        %s472 = sand.u32 %s139, 1
        %s473 = smul.addr %s472, 512
        %s474 = scalar_lea.vmem [#allocation4], %s473
        %p475 = pneg %p152
        %p476 = pneg %p149
        %s477 = smul.u32 4, %s25
        %p478 = scmp.lt.s32.totalorder %s477, 7
        %s479 = scalar_select %p478, %s477, 7
        %s480 = scalar_lea.vmem %s5, %s479
        %p481 = pneg %p178
        %p482 = pneg %p175
        %p483 = pneg %p206
        %p484 = pneg %p203
        %s485 = smul.u32 4, %s25
        %p486 = scmp.lt.s32.totalorder %s24, 0
        %s487 = scalar_select %p486, %s24, 0
        %p488 = scmp.lt.s32.totalorder %s485, 7
        %s489 = scalar_select %p488, %s485, 7
        %s490 = smul.addr %s487, 8
        %s491 = sadd.s32 %s489, %s490
        %s492 = smul.addr %s491, 4
        %s493 = scalar_lea.vmem %s6, %s492
        %p494 = scmp.lt.s32.totalorder %s24, 0
        %s495 = scalar_select %p494, %s24, 0
        %s496 = smul.addr %s495, 4
        %s497 = smul.addr %s496, 8
        %s498 = scalar_lea.vmem %s0, %s497
        %s499 = smul.u32 4, %s25
        %s500 = smul.u32 4, %s25
        %p501 = scmp.lt.s32.totalorder %s500, 7
        %s502 = scalar_select %p501, %s500, 7
        %s503 = scalar_lea.vmem %s3, %s502
        %s504 = smul.u32 4, %s25
        %s505 = smul.u32 4, %s25
        %s506 = smul.u32 4, %s25
        %p507 = scmp.lt.s32.totalorder %s506, 7
        %s508 = scalar_select %p507, %s506, 7
        %s509 = scalar_lea.vmem %s5, %s508
        %s510 = smul.u32 4, %s25
        %s511 = smul.u32 4, %s25
        %p512 = scmp.lt.s32.totalorder %s24, 0
        %s513 = scalar_select %p512, %s24, 0
        %p514 = scmp.lt.s32.totalorder %s511, 7
        %s515 = scalar_select %p514, %s511, 7
        %s516 = smul.addr %s513, 8
        %s517 = sadd.s32 %s515, %s516
        %s518 = smul.addr %s517, 4
        %s519 = scalar_lea.vmem %s6, %s518
        %s520 = smul.u32 4, %s25
        %p521 = scmp.eq.s32.totalorder %s25, 0
        // Predicated region
        $region72: #{llama_decoder_layer.10} parent=62 // pred_check
          %p522 = pneg %p521
        $region73: #{llama_decoder_layer.10} parent=62 // pred_check_branch
          %524 = sbr.rel (%p522) target = $region75
        $region74: #{llama_decoder_layer.10} parent=62 // pred_region
          %v525 = vld [vmem:[%s498] sm:$0xff]
          %v526 = vld [vmem:[%s498 + $0x8] sm:$0xff]
          %v527 = vld [vmem:[%s498 + $0x10] sm:$0xff]
          %v528 = vld [vmem:[%s498 + $0x18] sm:$0xff]
          %v529 = vmul.f32 %v525, %v525
          %v530 = vmul.f32 %v526, %v526
          %v531 = vmul.f32 %v527, %v527
          %v532 = vmul.f32 %v528, %v528
          %v533 = vadd.f32 %v529, %v530
          %v534 = vadd.f32 %v533, %v531
          %v535 = vadd.f32 %v534, %v532
          %536 = vadd.xlane.f32.xlu0 %v535
          %v537 = vpop.xlane.xlu0 %536
          %v538 = vrcp.pop 512.0
          %v539 = vmul.f32 %v537, %v538
          %v540 = vadd.f32 %v539, 1e-06
          %v541 = vrsqrt.pop %v540
          %v542 = vmul.f32 %v525, %v541
          %v543 = vmul.f32 %v526, %v541
          %v544 = vmul.f32 %v527, %v541
          %v545 = vmul.f32 %v528, %v541
          %v546 = vld [vmem:[%s1] sm:$0xf]
          %v548 = vlaneseq
          %v549 = vshrl.u32 %v548, 7
          %v550 = vsub.s32 0, %v549
          %v551 = vrot.slane %v546, %v550
          %v552 = vlaneseq
          %v553 = vshrl.u32 %v552, 7
          %v554 = vsub.s32 1, %v553
          %v555 = vrot.slane %v546, %v554
          %v556 = vlaneseq
          %v557 = vshrl.u32 %v556, 7
          %v558 = vsub.s32 2, %v557
          %v559 = vrot.slane %v546, %v558
          %v560 = vlaneseq
          %v561 = vshrl.u32 %v560, 7
          %v562 = vsub.s32 3, %v561
          %v563 = vrot.slane %v546, %v562
          %v568 = vmul.f32 %v542, %v551
          %v569 = vmul.f32 %v543, %v555
          %v570 = vmul.f32 %v544, %v559
          %v571 = vmul.f32 %v545, %v563
          %v572 = vpack.c.bf16 %v568, %v568
          %v573 = vpack.c.bf16 %v569, %v569
          %v574 = vpack.c.bf16 %v570, %v570
          %v575 = vpack.c.bf16 %v571, %v571
          %v580 = vunpack.c.l.b16 %v572
          %v581 = vunpack.c.l.b16 %v573
          %v582 = vunpack.c.l.b16 %v574
          %v583 = vunpack.c.l.b16 %v575
          %v584 = vpack.c.b16 %v581, %v580
          %v585 = vpack.c.b16 %v583, %v582
          %588 = vst [vmem:[#allocation2] sm:$0xff] %v584
          %589 = vst [vmem:[#allocation2 + $0x8] sm:$0xff] %v585
        $region75: #{llama_decoder_layer.10} parent=62 // pred_fallthru
          _
        %v590 = vld [vmem:[#allocation2] sm:$0xff]
        %v591 = vld [vmem:[#allocation2 + $0x8] sm:$0xff]
        %v592 = vld [vmem:[%s436] sm:$0xff]
        %v593 = vld [vmem:[%s436 + $0x8] sm:$0xff]
        %v594 = vld [vmem:[%s436 + $0x10] sm:$0xff]
        %v595 = vld [vmem:[%s436 + $0x18] sm:$0xff]
        %v596 = vld [vmem:[%s436 + $0x20] sm:$0xff]
        %v597 = vld [vmem:[%s436 + $0x28] sm:$0xff]
        %v598 = vld [vmem:[%s436 + $0x30] sm:$0xff]
        %v599 = vld [vmem:[%s436 + $0x38] sm:$0xff]
        %v600 = vld [vmem:[%s436 + $0x40] sm:$0xff]
        %v601 = vld [vmem:[%s436 + $0x48] sm:$0xff]
        %v602 = vld [vmem:[%s436 + $0x50] sm:$0xff]
        %v603 = vld [vmem:[%s436 + $0x58] sm:$0xff]
        %v604 = vld [vmem:[%s436 + $0x60] sm:$0xff]
        %v605 = vld [vmem:[%s436 + $0x68] sm:$0xff]
        %v606 = vld [vmem:[%s436 + $0x70] sm:$0xff]
        %v607 = vld [vmem:[%s436 + $0x78] sm:$0xff]
        %v608 = vld [vmem:[%s436 + $0x80] sm:$0xff]
        %v609 = vld [vmem:[%s436 + $0x88] sm:$0xff]
        %v610 = vld [vmem:[%s436 + $0x90] sm:$0xff]
        %v611 = vld [vmem:[%s436 + $0x98] sm:$0xff]
        %v612 = vld [vmem:[%s436 + $0xa0] sm:$0xff]
        %v613 = vld [vmem:[%s436 + $0xa8] sm:$0xff]
        %v614 = vld [vmem:[%s436 + $0xb0] sm:$0xff]
        %v615 = vld [vmem:[%s436 + $0xb8] sm:$0xff]
        %v616 = vld [vmem:[%s436 + $0xc0] sm:$0xff]
        %v617 = vld [vmem:[%s436 + $0xc8] sm:$0xff]
        %v618 = vld [vmem:[%s436 + $0xd0] sm:$0xff]
        %v619 = vld [vmem:[%s436 + $0xd8] sm:$0xff]
        %v620 = vld [vmem:[%s436 + $0xe0] sm:$0xff]
        %v621 = vld [vmem:[%s436 + $0xe8] sm:$0xff]
        %v622 = vld [vmem:[%s436 + $0xf0] sm:$0xff]
        %v623 = vld [vmem:[%s436 + $0xf8] sm:$0xff]
        %v624 = vld [vmem:[%s436 + $0x100] sm:$0xff]
        %v625 = vld [vmem:[%s436 + $0x108] sm:$0xff]
        %v626 = vld [vmem:[%s436 + $0x110] sm:$0xff]
        %v627 = vld [vmem:[%s436 + $0x118] sm:$0xff]
        %v628 = vld [vmem:[%s436 + $0x120] sm:$0xff]
        %v629 = vld [vmem:[%s436 + $0x128] sm:$0xff]
        %v630 = vld [vmem:[%s436 + $0x130] sm:$0xff]
        %v631 = vld [vmem:[%s436 + $0x138] sm:$0xff]
        %v632 = vld [vmem:[%s436 + $0x140] sm:$0xff]
        %v633 = vld [vmem:[%s436 + $0x148] sm:$0xff]
        %v634 = vld [vmem:[%s436 + $0x150] sm:$0xff]
        %v635 = vld [vmem:[%s436 + $0x158] sm:$0xff]
        %v636 = vld [vmem:[%s436 + $0x160] sm:$0xff]
        %v637 = vld [vmem:[%s436 + $0x168] sm:$0xff]
        %v638 = vld [vmem:[%s436 + $0x170] sm:$0xff]
        %v639 = vld [vmem:[%s436 + $0x178] sm:$0xff]
        %v640 = vld [vmem:[%s436 + $0x180] sm:$0xff]
        %v641 = vld [vmem:[%s436 + $0x188] sm:$0xff]
        %v642 = vld [vmem:[%s436 + $0x190] sm:$0xff]
        %v643 = vld [vmem:[%s436 + $0x198] sm:$0xff]
        %v644 = vld [vmem:[%s436 + $0x1a0] sm:$0xff]
        %v645 = vld [vmem:[%s436 + $0x1a8] sm:$0xff]
        %v646 = vld [vmem:[%s436 + $0x1b0] sm:$0xff]
        %v647 = vld [vmem:[%s436 + $0x1b8] sm:$0xff]
        %v648 = vld [vmem:[%s436 + $0x1c0] sm:$0xff]
        %v649 = vld [vmem:[%s436 + $0x1c8] sm:$0xff]
        %v650 = vld [vmem:[%s436 + $0x1d0] sm:$0xff]
        %v651 = vld [vmem:[%s436 + $0x1d8] sm:$0xff]
        %v652 = vld [vmem:[%s436 + $0x1e0] sm:$0xff]
        %v653 = vld [vmem:[%s436 + $0x1e8] sm:$0xff]
        %v654 = vld [vmem:[%s436 + $0x1f0] sm:$0xff]
        %v655 = vld [vmem:[%s436 + $0x1f8] sm:$0xff]
        %v656 = vunpack.c.l.s8.bf16 %v592
        %v657 = vunpack.c.l.s8.bf16 %v593
        %v658 = vunpack.c.l.s8.bf16 %v594
        %v659 = vunpack.c.l.s8.bf16 %v595
        %v660 = vunpack.c.h.s8.bf16 %v592
        %v661 = vunpack.c.h.s8.bf16 %v593
        %v662 = vunpack.c.h.s8.bf16 %v594
        %v663 = vunpack.c.h.s8.bf16 %v595
        %v664 = vunpack.c.l.s8.bf16 %v596
        %v665 = vunpack.c.l.s8.bf16 %v597
        %v666 = vunpack.c.l.s8.bf16 %v598
        %v667 = vunpack.c.l.s8.bf16 %v599
        %v668 = vunpack.c.h.s8.bf16 %v596
        %v669 = vunpack.c.h.s8.bf16 %v597
        %v670 = vunpack.c.h.s8.bf16 %v598
        %v671 = vunpack.c.h.s8.bf16 %v599
        %v672 = vunpack.c.l.s8.bf16 %v600
        %v673 = vunpack.c.l.s8.bf16 %v601
        %v674 = vunpack.c.l.s8.bf16 %v602
        %v675 = vunpack.c.l.s8.bf16 %v603
        %v676 = vunpack.c.h.s8.bf16 %v600
        %v677 = vunpack.c.h.s8.bf16 %v601
        %v678 = vunpack.c.h.s8.bf16 %v602
        %v679 = vunpack.c.h.s8.bf16 %v603
        %v680 = vunpack.c.l.s8.bf16 %v604
        %v681 = vunpack.c.l.s8.bf16 %v605
        %v682 = vunpack.c.l.s8.bf16 %v606
        %v683 = vunpack.c.l.s8.bf16 %v607
        %v684 = vunpack.c.h.s8.bf16 %v604
        %v685 = vunpack.c.h.s8.bf16 %v605
        %v686 = vunpack.c.h.s8.bf16 %v606
        %v687 = vunpack.c.h.s8.bf16 %v607
        %v688 = vunpack.c.l.s8.bf16 %v608
        %v689 = vunpack.c.l.s8.bf16 %v609
        %v690 = vunpack.c.l.s8.bf16 %v610
        %v691 = vunpack.c.l.s8.bf16 %v611
        %v692 = vunpack.c.h.s8.bf16 %v608
        %v693 = vunpack.c.h.s8.bf16 %v609
        %v694 = vunpack.c.h.s8.bf16 %v610
        %v695 = vunpack.c.h.s8.bf16 %v611
        %v696 = vunpack.c.l.s8.bf16 %v612
        %v697 = vunpack.c.l.s8.bf16 %v613
        %v698 = vunpack.c.l.s8.bf16 %v614
        %v699 = vunpack.c.l.s8.bf16 %v615
        %v700 = vunpack.c.h.s8.bf16 %v612
        %v701 = vunpack.c.h.s8.bf16 %v613
        %v702 = vunpack.c.h.s8.bf16 %v614
        %v703 = vunpack.c.h.s8.bf16 %v615
        %v704 = vunpack.c.l.s8.bf16 %v616
        %v705 = vunpack.c.l.s8.bf16 %v617
        %v706 = vunpack.c.l.s8.bf16 %v618
        %v707 = vunpack.c.l.s8.bf16 %v619
        %v708 = vunpack.c.h.s8.bf16 %v616
        %v709 = vunpack.c.h.s8.bf16 %v617
        %v710 = vunpack.c.h.s8.bf16 %v618
        %v711 = vunpack.c.h.s8.bf16 %v619
        %v712 = vunpack.c.l.s8.bf16 %v620
        %v713 = vunpack.c.l.s8.bf16 %v621
        %v714 = vunpack.c.l.s8.bf16 %v622
        %v715 = vunpack.c.l.s8.bf16 %v623
        %v716 = vunpack.c.h.s8.bf16 %v620
        %v717 = vunpack.c.h.s8.bf16 %v621
        %v718 = vunpack.c.h.s8.bf16 %v622
        %v719 = vunpack.c.h.s8.bf16 %v623
        %v720 = vunpack.c.l.s8.bf16 %v624
        %v721 = vunpack.c.l.s8.bf16 %v625
        %v722 = vunpack.c.l.s8.bf16 %v626
        %v723 = vunpack.c.l.s8.bf16 %v627
        %v724 = vunpack.c.h.s8.bf16 %v624
        %v725 = vunpack.c.h.s8.bf16 %v625
        %v726 = vunpack.c.h.s8.bf16 %v626
        %v727 = vunpack.c.h.s8.bf16 %v627
        %v728 = vunpack.c.l.s8.bf16 %v628
        %v729 = vunpack.c.l.s8.bf16 %v629
        %v730 = vunpack.c.l.s8.bf16 %v630
        %v731 = vunpack.c.l.s8.bf16 %v631
        %v732 = vunpack.c.h.s8.bf16 %v628
        %v733 = vunpack.c.h.s8.bf16 %v629
        %v734 = vunpack.c.h.s8.bf16 %v630
        %v735 = vunpack.c.h.s8.bf16 %v631
        %v736 = vunpack.c.l.s8.bf16 %v632
        %v737 = vunpack.c.l.s8.bf16 %v633
        %v738 = vunpack.c.l.s8.bf16 %v634
        %v739 = vunpack.c.l.s8.bf16 %v635
        %v740 = vunpack.c.h.s8.bf16 %v632
        %v741 = vunpack.c.h.s8.bf16 %v633
        %v742 = vunpack.c.h.s8.bf16 %v634
        %v743 = vunpack.c.h.s8.bf16 %v635
        %v744 = vunpack.c.l.s8.bf16 %v636
        %v745 = vunpack.c.l.s8.bf16 %v637
        %v746 = vunpack.c.l.s8.bf16 %v638
        %v747 = vunpack.c.l.s8.bf16 %v639
        %v748 = vunpack.c.h.s8.bf16 %v636
        %v749 = vunpack.c.h.s8.bf16 %v637
        %v750 = vunpack.c.h.s8.bf16 %v638
        %v751 = vunpack.c.h.s8.bf16 %v639
        %v752 = vunpack.c.l.s8.bf16 %v640
        %v753 = vunpack.c.l.s8.bf16 %v641
        %v754 = vunpack.c.l.s8.bf16 %v642
        %v755 = vunpack.c.l.s8.bf16 %v643
        %v756 = vunpack.c.h.s8.bf16 %v640
        %v757 = vunpack.c.h.s8.bf16 %v641
        %v758 = vunpack.c.h.s8.bf16 %v642
        %v759 = vunpack.c.h.s8.bf16 %v643
        %v760 = vunpack.c.l.s8.bf16 %v644
        %v761 = vunpack.c.l.s8.bf16 %v645
        %v762 = vunpack.c.l.s8.bf16 %v646
        %v763 = vunpack.c.l.s8.bf16 %v647
        %v764 = vunpack.c.h.s8.bf16 %v644
        %v765 = vunpack.c.h.s8.bf16 %v645
        %v766 = vunpack.c.h.s8.bf16 %v646
        %v767 = vunpack.c.h.s8.bf16 %v647
        %v768 = vunpack.c.l.s8.bf16 %v648
        %v769 = vunpack.c.l.s8.bf16 %v649
        %v770 = vunpack.c.l.s8.bf16 %v650
        %v771 = vunpack.c.l.s8.bf16 %v651
        %v772 = vunpack.c.h.s8.bf16 %v648
        %v773 = vunpack.c.h.s8.bf16 %v649
        %v774 = vunpack.c.h.s8.bf16 %v650
        %v775 = vunpack.c.h.s8.bf16 %v651
        %v776 = vunpack.c.l.s8.bf16 %v652
        %v777 = vunpack.c.l.s8.bf16 %v653
        %v778 = vunpack.c.l.s8.bf16 %v654
        %v779 = vunpack.c.l.s8.bf16 %v655
        %v780 = vunpack.c.h.s8.bf16 %v652
        %v781 = vunpack.c.h.s8.bf16 %v653
        %v782 = vunpack.c.h.s8.bf16 %v654
        %v783 = vunpack.c.h.s8.bf16 %v655
        %v786 = vunpack.c.l.b16 %v590
        %v787 = vunpack.c.h.b16 %v590
        %v788 = vunpack.c.l.b16 %v591
        %v789 = vunpack.c.h.b16 %v591
        %v790 = vpack.c.b16 %v786, %v786
        %v791 = vpack.c.b16 %v787, %v787
        %v792 = vpack.c.b16 %v788, %v788
        %v793 = vpack.c.b16 %v789, %v789
        %798 = vmatprep.subr.bf16.mxu0 %v685
        %799 = vmatpush1.bf16.msra.mxu0 %v684
        %800 = vmatprep.subr.bf16.mxu0 %v681
        %801 = vmatpush1.bf16.msra.mxu0 %v680
        %802 = vmatprep.subr.bf16.mxu0 %v677
        %803 = vmatpush1.bf16.msra.mxu0 %v676
        %804 = vmatprep.subr.bf16.mxu0 %v673
        %805 = vmatpush1.bf16.msra.mxu0 %v672
        %806 = vmatprep.subr.bf16.mxu0 %v669
        %807 = vmatpush1.bf16.msra.mxu0 %v668
        %808 = vmatprep.subr.bf16.mxu0 %v665
        %809 = vmatpush1.bf16.msra.mxu0 %v664
        %810 = vmatprep.subr.bf16.mxu0 %v661
        %811 = vmatpush1.bf16.msra.mxu0 %v660
        %812 = vmatprep.subr.bf16.mxu0 %v657
        %813 = vmatpush1.bf16.msra.mxu0 %v656
        %814 = vmatprep.subr.bf16.mxu0 %v717
        %815 = vmatpush2.bf16.msra.mxu0 %v716
        %816 = vmatprep.subr.bf16.mxu0 %v713
        %817 = vmatpush2.bf16.msra.mxu0 %v712
        %818 = vmatprep.subr.bf16.mxu0 %v709
        %819 = vmatpush2.bf16.msra.mxu0 %v708
        %820 = vmatprep.subr.bf16.mxu0 %v705
        %821 = vmatpush2.bf16.msra.mxu0 %v704
        %822 = vmatprep.subr.bf16.mxu0 %v701
        %823 = vmatpush2.bf16.msra.mxu0 %v700
        %824 = vmatprep.subr.bf16.mxu0 %v697
        %825 = vmatpush2.bf16.msra.mxu0 %v696
        %826 = vmatprep.subr.bf16.mxu0 %v693
        %827 = vmatpush2.bf16.msra.mxu0 %v692
        %828 = vmatprep.subr.bf16.mxu0 %v689
        %829 = vmatpush2.bf16.msra.mxu0 %v688
        %830 = vmatprep.mubr.bf16.mxu0 %v791
        %831 = vmatmul.mubr.bf16.gmra.mxu0 %v790
        %v832 = vpop.f32.mrf.mxu0
        %v833 = vadd.f32 0.0, %v832
        %v834 = vpop.f32.mrf.mxu0
        %v835 = vadd.f32 0.0, %v834
        %v836 = vpop.f32.mrf.mxu0
        %v837 = vpop.f32.mrf.mxu0
        %838 = vdwg.mxu0
        %839 = vmatprep.subr.bf16.mxu0 %v749
        %840 = vmatpush1.bf16.msra.mxu0 %v748
        %841 = vmatprep.subr.bf16.mxu0 %v745
        %842 = vmatpush1.bf16.msra.mxu0 %v744
        %843 = vmatprep.subr.bf16.mxu0 %v741
        %844 = vmatpush1.bf16.msra.mxu0 %v740
        %845 = vmatprep.subr.bf16.mxu0 %v737
        %846 = vmatpush1.bf16.msra.mxu0 %v736
        %847 = vmatprep.subr.bf16.mxu0 %v733
        %848 = vmatpush1.bf16.msra.mxu0 %v732
        %849 = vmatprep.subr.bf16.mxu0 %v729
        %850 = vmatpush1.bf16.msra.mxu0 %v728
        %851 = vmatprep.subr.bf16.mxu0 %v725
        %852 = vmatpush1.bf16.msra.mxu0 %v724
        %853 = vmatprep.subr.bf16.mxu0 %v721
        %854 = vmatpush1.bf16.msra.mxu0 %v720
        %855 = vmatprep.subr.bf16.mxu0 %v781
        %856 = vmatpush2.bf16.msra.mxu0 %v780
        %857 = vmatprep.subr.bf16.mxu0 %v777
        %858 = vmatpush2.bf16.msra.mxu0 %v776
        %859 = vmatprep.subr.bf16.mxu0 %v773
        %860 = vmatpush2.bf16.msra.mxu0 %v772
        %861 = vmatprep.subr.bf16.mxu0 %v769
        %862 = vmatpush2.bf16.msra.mxu0 %v768
        %863 = vmatprep.subr.bf16.mxu0 %v765
        %864 = vmatpush2.bf16.msra.mxu0 %v764
        %865 = vmatprep.subr.bf16.mxu0 %v761
        %866 = vmatpush2.bf16.msra.mxu0 %v760
        %867 = vmatprep.subr.bf16.mxu0 %v757
        %868 = vmatpush2.bf16.msra.mxu0 %v756
        %869 = vmatprep.subr.bf16.mxu0 %v753
        %870 = vmatpush2.bf16.msra.mxu0 %v752
        %871 = vmatprep.mubr.bf16.mxu0 %v793
        %872 = vmatmul.mubr.bf16.gmra.mxu0 %v792
        %v873 = vpop.f32.mrf.mxu0
        %v874 = vadd.f32 %v833, %v873
        %v875 = vpop.f32.mrf.mxu0
        %v876 = vadd.f32 %v835, %v875
        %v877 = vpop.f32.mrf.mxu0
        %v878 = vpop.f32.mrf.mxu0
        %879 = vdwg.mxu0
        %880 = vmatprep.subr.bf16.mxu0 %v687
        %881 = vmatpush1.bf16.msra.mxu0 %v686
        %882 = vmatprep.subr.bf16.mxu0 %v683
        %883 = vmatpush1.bf16.msra.mxu0 %v682
        %884 = vmatprep.subr.bf16.mxu0 %v679
        %885 = vmatpush1.bf16.msra.mxu0 %v678
        %886 = vmatprep.subr.bf16.mxu0 %v675
        %887 = vmatpush1.bf16.msra.mxu0 %v674
        %888 = vmatprep.subr.bf16.mxu0 %v671
        %889 = vmatpush1.bf16.msra.mxu0 %v670
        %890 = vmatprep.subr.bf16.mxu0 %v667
        %891 = vmatpush1.bf16.msra.mxu0 %v666
        %892 = vmatprep.subr.bf16.mxu0 %v663
        %893 = vmatpush1.bf16.msra.mxu0 %v662
        %894 = vmatprep.subr.bf16.mxu0 %v659
        %895 = vmatpush1.bf16.msra.mxu0 %v658
        %896 = vmatprep.subr.bf16.mxu0 %v719
        %897 = vmatpush2.bf16.msra.mxu0 %v718
        %898 = vmatprep.subr.bf16.mxu0 %v715
        %899 = vmatpush2.bf16.msra.mxu0 %v714
        %900 = vmatprep.subr.bf16.mxu0 %v711
        %901 = vmatpush2.bf16.msra.mxu0 %v710
        %902 = vmatprep.subr.bf16.mxu0 %v707
        %903 = vmatpush2.bf16.msra.mxu0 %v706
        %904 = vmatprep.subr.bf16.mxu0 %v703
        %905 = vmatpush2.bf16.msra.mxu0 %v702
        %906 = vmatprep.subr.bf16.mxu0 %v699
        %907 = vmatpush2.bf16.msra.mxu0 %v698
        %908 = vmatprep.subr.bf16.mxu0 %v695
        %909 = vmatpush2.bf16.msra.mxu0 %v694
        %910 = vmatprep.subr.bf16.mxu0 %v691
        %911 = vmatpush2.bf16.msra.mxu0 %v690
        %912 = vmatprep.mubr.bf16.mxu0 %v791
        %913 = vmatmul.mubr.bf16.gmra.mxu0 %v790
        %v914 = vpop.f32.mrf.mxu0
        %v915 = vadd.f32 0.0, %v914
        %v916 = vpop.f32.mrf.mxu0
        %v917 = vadd.f32 0.0, %v916
        %v918 = vpop.f32.mrf.mxu0
        %v919 = vpop.f32.mrf.mxu0
        %920 = vdwg.mxu0
        %921 = vmatprep.subr.bf16.mxu0 %v751
        %922 = vmatpush1.bf16.msra.mxu0 %v750
        %923 = vmatprep.subr.bf16.mxu0 %v747
        %924 = vmatpush1.bf16.msra.mxu0 %v746
        %925 = vmatprep.subr.bf16.mxu0 %v743
        %926 = vmatpush1.bf16.msra.mxu0 %v742
        %927 = vmatprep.subr.bf16.mxu0 %v739
        %928 = vmatpush1.bf16.msra.mxu0 %v738
        %929 = vmatprep.subr.bf16.mxu0 %v735
        %930 = vmatpush1.bf16.msra.mxu0 %v734
        %931 = vmatprep.subr.bf16.mxu0 %v731
        %932 = vmatpush1.bf16.msra.mxu0 %v730
        %933 = vmatprep.subr.bf16.mxu0 %v727
        %934 = vmatpush1.bf16.msra.mxu0 %v726
        %935 = vmatprep.subr.bf16.mxu0 %v723
        %936 = vmatpush1.bf16.msra.mxu0 %v722
        %937 = vmatprep.subr.bf16.mxu0 %v783
        %938 = vmatpush2.bf16.msra.mxu0 %v782
        %939 = vmatprep.subr.bf16.mxu0 %v779
        %940 = vmatpush2.bf16.msra.mxu0 %v778
        %941 = vmatprep.subr.bf16.mxu0 %v775
        %942 = vmatpush2.bf16.msra.mxu0 %v774
        %943 = vmatprep.subr.bf16.mxu0 %v771
        %944 = vmatpush2.bf16.msra.mxu0 %v770
        %945 = vmatprep.subr.bf16.mxu0 %v767
        %946 = vmatpush2.bf16.msra.mxu0 %v766
        %947 = vmatprep.subr.bf16.mxu0 %v763
        %948 = vmatpush2.bf16.msra.mxu0 %v762
        %949 = vmatprep.subr.bf16.mxu0 %v759
        %950 = vmatpush2.bf16.msra.mxu0 %v758
        %951 = vmatprep.subr.bf16.mxu0 %v755
        %952 = vmatpush2.bf16.msra.mxu0 %v754
        %953 = vmatprep.mubr.bf16.mxu0 %v793
        %954 = vmatmul.mubr.bf16.gmra.mxu0 %v792
        %v955 = vpop.f32.mrf.mxu0
        %v956 = vadd.f32 %v915, %v955
        %v957 = vpop.f32.mrf.mxu0
        %v958 = vadd.f32 %v917, %v957
        %v959 = vpop.f32.mrf.mxu0
        %v960 = vpop.f32.mrf.mxu0
        %961 = vdwg.mxu0
        %v962 = vld [vmem:[%s503] sm:$0xf]
        %v964 = vlaneseq
        %v965 = vshrl.u32 %v964, 7
        %v966 = vsub.s32 0, %v965
        %v967 = vrot.slane %v962, %v966
        %v968 = vlaneseq
        %v969 = vshrl.u32 %v968, 7
        %v970 = vsub.s32 1, %v969
        %v971 = vrot.slane %v962, %v970
        %v972 = vlaneseq
        %v973 = vshrl.u32 %v972, 7
        %v974 = vsub.s32 2, %v973
        %v975 = vrot.slane %v962, %v974
        %v976 = vlaneseq
        %v977 = vshrl.u32 %v976, 7
        %v978 = vsub.s32 3, %v977
        %v979 = vrot.slane %v962, %v978
        %v984 = vmul.f32 %v874, %v967
        %v985 = vmul.f32 %v876, %v971
        %v986 = vmul.f32 %v956, %v975
        %v987 = vmul.f32 %v958, %v979
        %v988 = vld [vmem:[%s444] sm:$0xff]
        %v989 = vld [vmem:[%s444 + $0x8] sm:$0xff]
        %v990 = vld [vmem:[%s444 + $0x10] sm:$0xff]
        %v991 = vld [vmem:[%s444 + $0x18] sm:$0xff]
        %v992 = vld [vmem:[%s444 + $0x20] sm:$0xff]
        %v993 = vld [vmem:[%s444 + $0x28] sm:$0xff]
        %v994 = vld [vmem:[%s444 + $0x30] sm:$0xff]
        %v995 = vld [vmem:[%s444 + $0x38] sm:$0xff]
        %v996 = vld [vmem:[%s444 + $0x40] sm:$0xff]
        %v997 = vld [vmem:[%s444 + $0x48] sm:$0xff]
        %v998 = vld [vmem:[%s444 + $0x50] sm:$0xff]
        %v999 = vld [vmem:[%s444 + $0x58] sm:$0xff]
        %v1000 = vld [vmem:[%s444 + $0x60] sm:$0xff]
        %v1001 = vld [vmem:[%s444 + $0x68] sm:$0xff]
        %v1002 = vld [vmem:[%s444 + $0x70] sm:$0xff]
        %v1003 = vld [vmem:[%s444 + $0x78] sm:$0xff]
        %v1004 = vld [vmem:[%s444 + $0x80] sm:$0xff]
        %v1005 = vld [vmem:[%s444 + $0x88] sm:$0xff]
        %v1006 = vld [vmem:[%s444 + $0x90] sm:$0xff]
        %v1007 = vld [vmem:[%s444 + $0x98] sm:$0xff]
        %v1008 = vld [vmem:[%s444 + $0xa0] sm:$0xff]
        %v1009 = vld [vmem:[%s444 + $0xa8] sm:$0xff]
        %v1010 = vld [vmem:[%s444 + $0xb0] sm:$0xff]
        %v1011 = vld [vmem:[%s444 + $0xb8] sm:$0xff]
        %v1012 = vld [vmem:[%s444 + $0xc0] sm:$0xff]
        %v1013 = vld [vmem:[%s444 + $0xc8] sm:$0xff]
        %v1014 = vld [vmem:[%s444 + $0xd0] sm:$0xff]
        %v1015 = vld [vmem:[%s444 + $0xd8] sm:$0xff]
        %v1016 = vld [vmem:[%s444 + $0xe0] sm:$0xff]
        %v1017 = vld [vmem:[%s444 + $0xe8] sm:$0xff]
        %v1018 = vld [vmem:[%s444 + $0xf0] sm:$0xff]
        %v1019 = vld [vmem:[%s444 + $0xf8] sm:$0xff]
        %v1020 = vld [vmem:[%s444 + $0x100] sm:$0xff]
        %v1021 = vld [vmem:[%s444 + $0x108] sm:$0xff]
        %v1022 = vld [vmem:[%s444 + $0x110] sm:$0xff]
        %v1023 = vld [vmem:[%s444 + $0x118] sm:$0xff]
        %v1024 = vld [vmem:[%s444 + $0x120] sm:$0xff]
        %v1025 = vld [vmem:[%s444 + $0x128] sm:$0xff]
        %v1026 = vld [vmem:[%s444 + $0x130] sm:$0xff]
        %v1027 = vld [vmem:[%s444 + $0x138] sm:$0xff]
        %v1028 = vld [vmem:[%s444 + $0x140] sm:$0xff]
        %v1029 = vld [vmem:[%s444 + $0x148] sm:$0xff]
        %v1030 = vld [vmem:[%s444 + $0x150] sm:$0xff]
        %v1031 = vld [vmem:[%s444 + $0x158] sm:$0xff]
        %v1032 = vld [vmem:[%s444 + $0x160] sm:$0xff]
        %v1033 = vld [vmem:[%s444 + $0x168] sm:$0xff]
        %v1034 = vld [vmem:[%s444 + $0x170] sm:$0xff]
        %v1035 = vld [vmem:[%s444 + $0x178] sm:$0xff]
        %v1036 = vld [vmem:[%s444 + $0x180] sm:$0xff]
        %v1037 = vld [vmem:[%s444 + $0x188] sm:$0xff]
        %v1038 = vld [vmem:[%s444 + $0x190] sm:$0xff]
        %v1039 = vld [vmem:[%s444 + $0x198] sm:$0xff]
        %v1040 = vld [vmem:[%s444 + $0x1a0] sm:$0xff]
        %v1041 = vld [vmem:[%s444 + $0x1a8] sm:$0xff]
        %v1042 = vld [vmem:[%s444 + $0x1b0] sm:$0xff]
        %v1043 = vld [vmem:[%s444 + $0x1b8] sm:$0xff]
        %v1044 = vld [vmem:[%s444 + $0x1c0] sm:$0xff]
        %v1045 = vld [vmem:[%s444 + $0x1c8] sm:$0xff]
        %v1046 = vld [vmem:[%s444 + $0x1d0] sm:$0xff]
        %v1047 = vld [vmem:[%s444 + $0x1d8] sm:$0xff]
        %v1048 = vld [vmem:[%s444 + $0x1e0] sm:$0xff]
        %v1049 = vld [vmem:[%s444 + $0x1e8] sm:$0xff]
        %v1050 = vld [vmem:[%s444 + $0x1f0] sm:$0xff]
        %v1051 = vld [vmem:[%s444 + $0x1f8] sm:$0xff]
        %v1052 = vunpack.c.l.s8.bf16 %v988
        %v1053 = vunpack.c.l.s8.bf16 %v989
        %v1054 = vunpack.c.l.s8.bf16 %v990
        %v1055 = vunpack.c.l.s8.bf16 %v991
        %v1056 = vunpack.c.h.s8.bf16 %v988
        %v1057 = vunpack.c.h.s8.bf16 %v989
        %v1058 = vunpack.c.h.s8.bf16 %v990
        %v1059 = vunpack.c.h.s8.bf16 %v991
        %v1060 = vunpack.c.l.s8.bf16 %v992
        %v1061 = vunpack.c.l.s8.bf16 %v993
        %v1062 = vunpack.c.l.s8.bf16 %v994
        %v1063 = vunpack.c.l.s8.bf16 %v995
        %v1064 = vunpack.c.h.s8.bf16 %v992
        %v1065 = vunpack.c.h.s8.bf16 %v993
        %v1066 = vunpack.c.h.s8.bf16 %v994
        %v1067 = vunpack.c.h.s8.bf16 %v995
        %v1068 = vunpack.c.l.s8.bf16 %v996
        %v1069 = vunpack.c.l.s8.bf16 %v997
        %v1070 = vunpack.c.l.s8.bf16 %v998
        %v1071 = vunpack.c.l.s8.bf16 %v999
        %v1072 = vunpack.c.h.s8.bf16 %v996
        %v1073 = vunpack.c.h.s8.bf16 %v997
        %v1074 = vunpack.c.h.s8.bf16 %v998
        %v1075 = vunpack.c.h.s8.bf16 %v999
        %v1076 = vunpack.c.l.s8.bf16 %v1000
        %v1077 = vunpack.c.l.s8.bf16 %v1001
        %v1078 = vunpack.c.l.s8.bf16 %v1002
        %v1079 = vunpack.c.l.s8.bf16 %v1003
        %v1080 = vunpack.c.h.s8.bf16 %v1000
        %v1081 = vunpack.c.h.s8.bf16 %v1001
        %v1082 = vunpack.c.h.s8.bf16 %v1002
        %v1083 = vunpack.c.h.s8.bf16 %v1003
        %v1084 = vunpack.c.l.s8.bf16 %v1004
        %v1085 = vunpack.c.l.s8.bf16 %v1005
        %v1086 = vunpack.c.l.s8.bf16 %v1006
        %v1087 = vunpack.c.l.s8.bf16 %v1007
        %v1088 = vunpack.c.h.s8.bf16 %v1004
        %v1089 = vunpack.c.h.s8.bf16 %v1005
        %v1090 = vunpack.c.h.s8.bf16 %v1006
        %v1091 = vunpack.c.h.s8.bf16 %v1007
        %v1092 = vunpack.c.l.s8.bf16 %v1008
        %v1093 = vunpack.c.l.s8.bf16 %v1009
        %v1094 = vunpack.c.l.s8.bf16 %v1010
        %v1095 = vunpack.c.l.s8.bf16 %v1011
        %v1096 = vunpack.c.h.s8.bf16 %v1008
        %v1097 = vunpack.c.h.s8.bf16 %v1009
        %v1098 = vunpack.c.h.s8.bf16 %v1010
        %v1099 = vunpack.c.h.s8.bf16 %v1011
        %v1100 = vunpack.c.l.s8.bf16 %v1012
        %v1101 = vunpack.c.l.s8.bf16 %v1013
        %v1102 = vunpack.c.l.s8.bf16 %v1014
        %v1103 = vunpack.c.l.s8.bf16 %v1015
        %v1104 = vunpack.c.h.s8.bf16 %v1012
        %v1105 = vunpack.c.h.s8.bf16 %v1013
        %v1106 = vunpack.c.h.s8.bf16 %v1014
        %v1107 = vunpack.c.h.s8.bf16 %v1015
        %v1108 = vunpack.c.l.s8.bf16 %v1016
        %v1109 = vunpack.c.l.s8.bf16 %v1017
        %v1110 = vunpack.c.l.s8.bf16 %v1018
        %v1111 = vunpack.c.l.s8.bf16 %v1019
        %v1112 = vunpack.c.h.s8.bf16 %v1016
        %v1113 = vunpack.c.h.s8.bf16 %v1017
        %v1114 = vunpack.c.h.s8.bf16 %v1018
        %v1115 = vunpack.c.h.s8.bf16 %v1019
        %v1116 = vunpack.c.l.s8.bf16 %v1020
        %v1117 = vunpack.c.l.s8.bf16 %v1021
        %v1118 = vunpack.c.l.s8.bf16 %v1022
        %v1119 = vunpack.c.l.s8.bf16 %v1023
        %v1120 = vunpack.c.h.s8.bf16 %v1020
        %v1121 = vunpack.c.h.s8.bf16 %v1021
        %v1122 = vunpack.c.h.s8.bf16 %v1022
        %v1123 = vunpack.c.h.s8.bf16 %v1023
        %v1124 = vunpack.c.l.s8.bf16 %v1024
        %v1125 = vunpack.c.l.s8.bf16 %v1025
        %v1126 = vunpack.c.l.s8.bf16 %v1026
        %v1127 = vunpack.c.l.s8.bf16 %v1027
        %v1128 = vunpack.c.h.s8.bf16 %v1024
        %v1129 = vunpack.c.h.s8.bf16 %v1025
        %v1130 = vunpack.c.h.s8.bf16 %v1026
        %v1131 = vunpack.c.h.s8.bf16 %v1027
        %v1132 = vunpack.c.l.s8.bf16 %v1028
        %v1133 = vunpack.c.l.s8.bf16 %v1029
        %v1134 = vunpack.c.l.s8.bf16 %v1030
        %v1135 = vunpack.c.l.s8.bf16 %v1031
        %v1136 = vunpack.c.h.s8.bf16 %v1028
        %v1137 = vunpack.c.h.s8.bf16 %v1029
        %v1138 = vunpack.c.h.s8.bf16 %v1030
        %v1139 = vunpack.c.h.s8.bf16 %v1031
        %v1140 = vunpack.c.l.s8.bf16 %v1032
        %v1141 = vunpack.c.l.s8.bf16 %v1033
        %v1142 = vunpack.c.l.s8.bf16 %v1034
        %v1143 = vunpack.c.l.s8.bf16 %v1035
        %v1144 = vunpack.c.h.s8.bf16 %v1032
        %v1145 = vunpack.c.h.s8.bf16 %v1033
        %v1146 = vunpack.c.h.s8.bf16 %v1034
        %v1147 = vunpack.c.h.s8.bf16 %v1035
        %v1148 = vunpack.c.l.s8.bf16 %v1036
        %v1149 = vunpack.c.l.s8.bf16 %v1037
        %v1150 = vunpack.c.l.s8.bf16 %v1038
        %v1151 = vunpack.c.l.s8.bf16 %v1039
        %v1152 = vunpack.c.h.s8.bf16 %v1036
        %v1153 = vunpack.c.h.s8.bf16 %v1037
        %v1154 = vunpack.c.h.s8.bf16 %v1038
        %v1155 = vunpack.c.h.s8.bf16 %v1039
        %v1156 = vunpack.c.l.s8.bf16 %v1040
        %v1157 = vunpack.c.l.s8.bf16 %v1041
        %v1158 = vunpack.c.l.s8.bf16 %v1042
        %v1159 = vunpack.c.l.s8.bf16 %v1043
        %v1160 = vunpack.c.h.s8.bf16 %v1040
        %v1161 = vunpack.c.h.s8.bf16 %v1041
        %v1162 = vunpack.c.h.s8.bf16 %v1042
        %v1163 = vunpack.c.h.s8.bf16 %v1043
        %v1164 = vunpack.c.l.s8.bf16 %v1044
        %v1165 = vunpack.c.l.s8.bf16 %v1045
        %v1166 = vunpack.c.l.s8.bf16 %v1046
        %v1167 = vunpack.c.l.s8.bf16 %v1047
        %v1168 = vunpack.c.h.s8.bf16 %v1044
        %v1169 = vunpack.c.h.s8.bf16 %v1045
        %v1170 = vunpack.c.h.s8.bf16 %v1046
        %v1171 = vunpack.c.h.s8.bf16 %v1047
        %v1172 = vunpack.c.l.s8.bf16 %v1048
        %v1173 = vunpack.c.l.s8.bf16 %v1049
        %v1174 = vunpack.c.l.s8.bf16 %v1050
        %v1175 = vunpack.c.l.s8.bf16 %v1051
        %v1176 = vunpack.c.h.s8.bf16 %v1048
        %v1177 = vunpack.c.h.s8.bf16 %v1049
        %v1178 = vunpack.c.h.s8.bf16 %v1050
        %v1179 = vunpack.c.h.s8.bf16 %v1051
        %1180 = vmatprep.subr.bf16.mxu0 %v1081
        %1181 = vmatpush1.bf16.msra.mxu0 %v1080
        %1182 = vmatprep.subr.bf16.mxu0 %v1077
        %1183 = vmatpush1.bf16.msra.mxu0 %v1076
        %1184 = vmatprep.subr.bf16.mxu0 %v1073
        %1185 = vmatpush1.bf16.msra.mxu0 %v1072
        %1186 = vmatprep.subr.bf16.mxu0 %v1069
        %1187 = vmatpush1.bf16.msra.mxu0 %v1068
        %1188 = vmatprep.subr.bf16.mxu0 %v1065
        %1189 = vmatpush1.bf16.msra.mxu0 %v1064
        %1190 = vmatprep.subr.bf16.mxu0 %v1061
        %1191 = vmatpush1.bf16.msra.mxu0 %v1060
        %1192 = vmatprep.subr.bf16.mxu0 %v1057
        %1193 = vmatpush1.bf16.msra.mxu0 %v1056
        %1194 = vmatprep.subr.bf16.mxu0 %v1053
        %1195 = vmatpush1.bf16.msra.mxu0 %v1052
        %1196 = vmatprep.subr.bf16.mxu0 %v1113
        %1197 = vmatpush2.bf16.msra.mxu0 %v1112
        %1198 = vmatprep.subr.bf16.mxu0 %v1109
        %1199 = vmatpush2.bf16.msra.mxu0 %v1108
        %1200 = vmatprep.subr.bf16.mxu0 %v1105
        %1201 = vmatpush2.bf16.msra.mxu0 %v1104
        %1202 = vmatprep.subr.bf16.mxu0 %v1101
        %1203 = vmatpush2.bf16.msra.mxu0 %v1100
        %1204 = vmatprep.subr.bf16.mxu0 %v1097
        %1205 = vmatpush2.bf16.msra.mxu0 %v1096
        %1206 = vmatprep.subr.bf16.mxu0 %v1093
        %1207 = vmatpush2.bf16.msra.mxu0 %v1092
        %1208 = vmatprep.subr.bf16.mxu0 %v1089
        %1209 = vmatpush2.bf16.msra.mxu0 %v1088
        %1210 = vmatprep.subr.bf16.mxu0 %v1085
        %1211 = vmatpush2.bf16.msra.mxu0 %v1084
        %1212 = vmatprep.mubr.bf16.mxu0 %v791
        %1213 = vmatmul.mubr.bf16.gmra.mxu0 %v790
        %v1214 = vpop.f32.mrf.mxu0
        %v1215 = vadd.f32 0.0, %v1214
        %v1216 = vpop.f32.mrf.mxu0
        %v1217 = vadd.f32 0.0, %v1216
        %v1218 = vpop.f32.mrf.mxu0
        %v1219 = vpop.f32.mrf.mxu0
        %1220 = vdwg.mxu0
        %1221 = vmatprep.subr.bf16.mxu0 %v1145
        %1222 = vmatpush1.bf16.msra.mxu0 %v1144
        %1223 = vmatprep.subr.bf16.mxu0 %v1141
        %1224 = vmatpush1.bf16.msra.mxu0 %v1140
        %1225 = vmatprep.subr.bf16.mxu0 %v1137
        %1226 = vmatpush1.bf16.msra.mxu0 %v1136
        %1227 = vmatprep.subr.bf16.mxu0 %v1133
        %1228 = vmatpush1.bf16.msra.mxu0 %v1132
        %1229 = vmatprep.subr.bf16.mxu0 %v1129
        %1230 = vmatpush1.bf16.msra.mxu0 %v1128
        %1231 = vmatprep.subr.bf16.mxu0 %v1125
        %1232 = vmatpush1.bf16.msra.mxu0 %v1124
        %1233 = vmatprep.subr.bf16.mxu0 %v1121
        %1234 = vmatpush1.bf16.msra.mxu0 %v1120
        %1235 = vmatprep.subr.bf16.mxu0 %v1117
        %1236 = vmatpush1.bf16.msra.mxu0 %v1116
        %1237 = vmatprep.subr.bf16.mxu0 %v1177
        %1238 = vmatpush2.bf16.msra.mxu0 %v1176
        %1239 = vmatprep.subr.bf16.mxu0 %v1173
        %1240 = vmatpush2.bf16.msra.mxu0 %v1172
        %1241 = vmatprep.subr.bf16.mxu0 %v1169
        %1242 = vmatpush2.bf16.msra.mxu0 %v1168
        %1243 = vmatprep.subr.bf16.mxu0 %v1165
        %1244 = vmatpush2.bf16.msra.mxu0 %v1164
        %1245 = vmatprep.subr.bf16.mxu0 %v1161
        %1246 = vmatpush2.bf16.msra.mxu0 %v1160
        %1247 = vmatprep.subr.bf16.mxu0 %v1157
        %1248 = vmatpush2.bf16.msra.mxu0 %v1156
        %1249 = vmatprep.subr.bf16.mxu0 %v1153
        %1250 = vmatpush2.bf16.msra.mxu0 %v1152
        %1251 = vmatprep.subr.bf16.mxu0 %v1149
        %1252 = vmatpush2.bf16.msra.mxu0 %v1148
        %1253 = vmatprep.mubr.bf16.mxu0 %v793
        %1254 = vmatmul.mubr.bf16.gmra.mxu0 %v792
        %v1255 = vpop.f32.mrf.mxu0
        %v1256 = vadd.f32 %v1215, %v1255
        %v1257 = vpop.f32.mrf.mxu0
        %v1258 = vadd.f32 %v1217, %v1257
        %v1259 = vpop.f32.mrf.mxu0
        %v1260 = vpop.f32.mrf.mxu0
        %1261 = vdwg.mxu0
        %1262 = vmatprep.subr.bf16.mxu0 %v1083
        %1263 = vmatpush1.bf16.msra.mxu0 %v1082
        %1264 = vmatprep.subr.bf16.mxu0 %v1079
        %1265 = vmatpush1.bf16.msra.mxu0 %v1078
        %1266 = vmatprep.subr.bf16.mxu0 %v1075
        %1267 = vmatpush1.bf16.msra.mxu0 %v1074
        %1268 = vmatprep.subr.bf16.mxu0 %v1071
        %1269 = vmatpush1.bf16.msra.mxu0 %v1070
        %1270 = vmatprep.subr.bf16.mxu0 %v1067
        %1271 = vmatpush1.bf16.msra.mxu0 %v1066
        %1272 = vmatprep.subr.bf16.mxu0 %v1063
        %1273 = vmatpush1.bf16.msra.mxu0 %v1062
        %1274 = vmatprep.subr.bf16.mxu0 %v1059
        %1275 = vmatpush1.bf16.msra.mxu0 %v1058
        %1276 = vmatprep.subr.bf16.mxu0 %v1055
        %1277 = vmatpush1.bf16.msra.mxu0 %v1054
        %1278 = vmatprep.subr.bf16.mxu0 %v1115
        %1279 = vmatpush2.bf16.msra.mxu0 %v1114
        %1280 = vmatprep.subr.bf16.mxu0 %v1111
        %1281 = vmatpush2.bf16.msra.mxu0 %v1110
        %1282 = vmatprep.subr.bf16.mxu0 %v1107
        %1283 = vmatpush2.bf16.msra.mxu0 %v1106
        %1284 = vmatprep.subr.bf16.mxu0 %v1103
        %1285 = vmatpush2.bf16.msra.mxu0 %v1102
        %1286 = vmatprep.subr.bf16.mxu0 %v1099
        %1287 = vmatpush2.bf16.msra.mxu0 %v1098
        %1288 = vmatprep.subr.bf16.mxu0 %v1095
        %1289 = vmatpush2.bf16.msra.mxu0 %v1094
        %1290 = vmatprep.subr.bf16.mxu0 %v1091
        %1291 = vmatpush2.bf16.msra.mxu0 %v1090
        %1292 = vmatprep.subr.bf16.mxu0 %v1087
        %1293 = vmatpush2.bf16.msra.mxu0 %v1086
        %1294 = vmatprep.mubr.bf16.mxu0 %v791
        %1295 = vmatmul.mubr.bf16.gmra.mxu0 %v790
        %v1296 = vpop.f32.mrf.mxu0
        %v1297 = vadd.f32 0.0, %v1296
        %v1298 = vpop.f32.mrf.mxu0
        %v1299 = vadd.f32 0.0, %v1298
        %v1300 = vpop.f32.mrf.mxu0
        %v1301 = vpop.f32.mrf.mxu0
        %1302 = vdwg.mxu0
        %1303 = vmatprep.subr.bf16.mxu0 %v1147
        %1304 = vmatpush1.bf16.msra.mxu0 %v1146
        %1305 = vmatprep.subr.bf16.mxu0 %v1143
        %1306 = vmatpush1.bf16.msra.mxu0 %v1142
        %1307 = vmatprep.subr.bf16.mxu0 %v1139
        %1308 = vmatpush1.bf16.msra.mxu0 %v1138
        %1309 = vmatprep.subr.bf16.mxu0 %v1135
        %1310 = vmatpush1.bf16.msra.mxu0 %v1134
        %1311 = vmatprep.subr.bf16.mxu0 %v1131
        %1312 = vmatpush1.bf16.msra.mxu0 %v1130
        %1313 = vmatprep.subr.bf16.mxu0 %v1127
        %1314 = vmatpush1.bf16.msra.mxu0 %v1126
        %1315 = vmatprep.subr.bf16.mxu0 %v1123
        %1316 = vmatpush1.bf16.msra.mxu0 %v1122
        %1317 = vmatprep.subr.bf16.mxu0 %v1119
        %1318 = vmatpush1.bf16.msra.mxu0 %v1118
        %1319 = vmatprep.subr.bf16.mxu0 %v1179
        %1320 = vmatpush2.bf16.msra.mxu0 %v1178
        %1321 = vmatprep.subr.bf16.mxu0 %v1175
        %1322 = vmatpush2.bf16.msra.mxu0 %v1174
        %1323 = vmatprep.subr.bf16.mxu0 %v1171
        %1324 = vmatpush2.bf16.msra.mxu0 %v1170
        %1325 = vmatprep.subr.bf16.mxu0 %v1167
        %1326 = vmatpush2.bf16.msra.mxu0 %v1166
        %1327 = vmatprep.subr.bf16.mxu0 %v1163
        %1328 = vmatpush2.bf16.msra.mxu0 %v1162
        %1329 = vmatprep.subr.bf16.mxu0 %v1159
        %1330 = vmatpush2.bf16.msra.mxu0 %v1158
        %1331 = vmatprep.subr.bf16.mxu0 %v1155
        %1332 = vmatpush2.bf16.msra.mxu0 %v1154
        %1333 = vmatprep.subr.bf16.mxu0 %v1151
        %1334 = vmatpush2.bf16.msra.mxu0 %v1150
        %1335 = vmatprep.mubr.bf16.mxu0 %v793
        %1336 = vmatmul.mubr.bf16.gmra.mxu0 %v792
        %v1337 = vpop.f32.mrf.mxu0
        %v1338 = vadd.f32 %v1297, %v1337
        %v1339 = vpop.f32.mrf.mxu0
        %v1340 = vadd.f32 %v1299, %v1339
        %v1341 = vpop.f32.mrf.mxu0
        %v1342 = vpop.f32.mrf.mxu0
        %1343 = vdwg.mxu0
        %v1344 = vld [vmem:[%s509] sm:$0xf]
        %v1346 = vlaneseq
        %v1347 = vshrl.u32 %v1346, 7
        %v1348 = vsub.s32 0, %v1347
        %v1349 = vrot.slane %v1344, %v1348
        %v1350 = vlaneseq
        %v1351 = vshrl.u32 %v1350, 7
        %v1352 = vsub.s32 1, %v1351
        %v1353 = vrot.slane %v1344, %v1352
        %v1354 = vlaneseq
        %v1355 = vshrl.u32 %v1354, 7
        %v1356 = vsub.s32 2, %v1355
        %v1357 = vrot.slane %v1344, %v1356
        %v1358 = vlaneseq
        %v1359 = vshrl.u32 %v1358, 7
        %v1360 = vsub.s32 3, %v1359
        %v1361 = vrot.slane %v1344, %v1360
        %v1366 = vmul.f32 %v1256, %v1349
        %v1367 = vmul.f32 %v1258, %v1353
        %v1368 = vmul.f32 %v1338, %v1357
        %v1369 = vmul.f32 %v1340, %v1361
        %v1370 = vxor.u32 %v984, 2147483648
        %v1371 = vxor.u32 %v985, 2147483648
        %v1372 = vxor.u32 %v986, 2147483648
        %v1373 = vxor.u32 %v987, 2147483648
        %v1374 = vmul.f32 %v1370, 1.442695
        %v1375 = vpow.pop %v1374
        %v1376 = vmul.f32 %v1371, 1.442695
        %v1377 = vpow.pop %v1376
        %v1378 = vmul.f32 %v1372, 1.442695
        %v1379 = vpow.pop %v1378
        %v1380 = vmul.f32 %v1373, 1.442695
        %v1381 = vpow.pop %v1380
        %v1382 = vadd.f32 %v1375, 1.0
        %v1383 = vadd.f32 %v1377, 1.0
        %v1384 = vadd.f32 %v1379, 1.0
        %v1385 = vadd.f32 %v1381, 1.0
        %v1386 = vrcp.pop %v1382
        %v1387 = vmul.f32 1.0, %v1386
        %v1388 = vrcp.pop %v1383
        %v1389 = vmul.f32 1.0, %v1388
        %v1390 = vrcp.pop %v1384
        %v1391 = vmul.f32 1.0, %v1390
        %v1392 = vrcp.pop %v1385
        %v1393 = vmul.f32 1.0, %v1392
        %v1394 = vmul.f32 %v984, %v1387
        %v1395 = vmul.f32 %v985, %v1389
        %v1396 = vmul.f32 %v986, %v1391
        %v1397 = vmul.f32 %v987, %v1393
        %v1398 = vmul.f32 %v1394, %v1366
        %v1399 = vmul.f32 %v1395, %v1367
        %v1400 = vmul.f32 %v1396, %v1368
        %v1401 = vmul.f32 %v1397, %v1369
        %v1402 = vpack.c.bf16 %v1398, %v1398
        %v1403 = vpack.c.bf16 %v1399, %v1399
        %v1404 = vpack.c.bf16 %v1400, %v1400
        %v1405 = vpack.c.bf16 %v1401, %v1401
        %v1410 = vunpack.c.l.b16 %v1402
        %v1411 = vunpack.c.l.b16 %v1403
        %v1412 = vunpack.c.l.b16 %v1404
        %v1413 = vunpack.c.l.b16 %v1405
        %v1414 = vpack.c.b16 %v1411, %v1410
        %v1415 = vpack.c.b16 %v1413, %v1412
        %1418 = vst [vmem:[%s519] sm:$0xff] %v1414
        %1419 = vst [vmem:[%s519 + $0x8] sm:$0xff] %v1415
        %s1420 = smul.u32 4, %s25
        %p1421 = scmp.lt.s32.totalorder %s24, 0
        %s1422 = scalar_select %p1421, %s24, 0
        %p1423 = scmp.lt.s32.totalorder %s1420, 7
        %s1424 = scalar_select %p1423, %s1420, 7
        %s1425 = smul.addr %s1422, 8
        %s1426 = sadd.s32 %s1424, %s1425
        %s1427 = smul.addr %s1426, 4
        %s1428 = scalar_lea.vmem %s6, %s1427
        // Predicated region
        $region76: #{llama_decoder_layer.10} parent=62 // pred_check
          %p1429 = pneg %p203
        $region77: #{llama_decoder_layer.10} parent=62 // pred_check_branch
          %1431 = sbr.rel (%p1429) target = $region79
        $region78: #{llama_decoder_layer.10} parent=62 // pred_region
          %s1432 = smul.u32 4, %s25
        $region79: #{llama_decoder_layer.10} parent=62 // pred_fallthru
          _
      $region63: #{llama_decoder_layer.10} parent=5 // pred_fallthru
        _
      %p1433 = scmp.le.s32.totalorder 2, %s15
      // Predicated region
      $region80: #{llama_decoder_layer.10} parent=5 // pred_check
        %p1434 = pneg %p1433
      $region81: #{llama_decoder_layer.10} parent=5 // pred_check_branch
        %1436 = sbr.rel (%p1434) target = $region83
      $region82: #{llama_decoder_layer.10} parent=5 // pred_region
        %s1437 = ssub.s32 %s15, 2
        // Predicated region
        $region84: #{llama_decoder_layer.10} parent=82 // pred_check
          %p1438 = pneg %p209
        $region85: #{llama_decoder_layer.10} parent=82 // pred_check_branch
          %1440 = sbr.rel (%p1438) target = $region87
        $region86: #{llama_decoder_layer.10} parent=82 // pred_region
          %s1441 = smul.u32 4, %s27
          %p1442 = scmp.lt.s32.totalorder %s26, 0
          %s1443 = scalar_select %p1442, %s26, 0
          %p1444 = scmp.lt.s32.totalorder %s1441, 7
          %s1445 = scalar_select %p1444, %s1441, 7
          %s1446 = smul.addr %s1443, 8
          %s1447 = sadd.s32 %s1445, %s1446
          %s1448 = smul.addr %s1447, 4
          %s1449 = scalar_lea.vmem %s6, %s1448
        $region87: #{llama_decoder_layer.10} parent=82 // pred_fallthru
          _
      $region83: #{llama_decoder_layer.10} parent=5 // pred_fallthru
        _
    $region6: #{llama_decoder_layer.10} parent=1 // loop_footer
      %s19 = sadd.s32 1, %s15
    $region7: #{llama_decoder_layer.10} parent=1 // loop_footer_branch
      %14 = sbr.rel target = $region3
    $region8: #{llama_decoder_layer.10} parent=1 // loop_exit
      _
    %1450 = vsyncpa [#allocation5], 1
    %s1451 = scalar_lea.sflag [#allocation5], 1
    %1452 = vsyncpa %s1451, 1

</llo_original>
